<compile_context>
chip_gen: v5e
topology: v5e:2x2
jax: 0.10.0
libtpu: 0.0.40
codegen_flags: <defaults>
</compile_context>

<pallas_src>
import functools
import math

import jax
import jax.numpy as jnp
from jax.experimental import pallas as pl
from jax.experimental.pallas import tpu as pltpu

# ----------------------------- model config ---------------------------------
VOCAB = 33           # ESM alphabet size
VOCAB_PAD = 128      # lane-dense logits; sliced back to VOCAB in the wrapper
PAD_IDX = 1          # esm padding_idx
MASK_IDX = 32        # esm mask_idx (unused in forward math, kept for fidelity)
HIDDEN = 32
NUM_HEADS = 4
HEAD_DIM = HIDDEN // NUM_HEADS
FFN = 4 * HIDDEN
NUM_LAYERS = 2
MAX_LEN = 64
MARGIN = 0.5


# ------------------------------ helpers -------------------------------------
def _layer_norm(x, g, b, eps=1e-5):
    mu = jnp.mean(x, axis=-1, keepdims=True)
    var = jnp.mean((x - mu) ** 2, axis=-1, keepdims=True)
    return (x - mu) * jax.lax.rsqrt(var + eps) * g + b


def _gelu(x):
    # TODO(synk): ESM/RobertaLMHead use exact erf GELU; tanh approximation kept
    # here (erf lowering in Mosaic is not guaranteed) -> ~1e-3-level deviation.
    return jax.nn.gelu(x, approximate=True)


# ------------------------- fused forward kernel -----------------------------
def fused_forward_kernel(x_ref, bias_ref,
                         embg_ref, embb_ref,
                         ln1g_ref, ln1b_ref,
                         wq_ref, bq_ref, wk_ref, bk_ref, wv_ref, bv_ref,
                         wo_ref, bo_ref,
                         ln2g_ref, ln2b_ref,
                         w1_ref, b1_ref, w2_ref, b2_ref,
                         lnfg_ref, lnfb_ref,
                         dw_ref, db_ref, lng_ref, lnb_ref, pw_ref, pb_ref,
                         out_ref, *, with_lm_head):
    Bc, L, H = x_ref.shape
    rows = Bc * L
    scale = 1.0 / math.sqrt(HEAD_DIM)

    bias = bias_ref[...]                                  # (Bc, 1, L): 0 / -1e9
    x = x_ref[...].reshape(rows, H).astype(jnp.float32)   # row-flattened activation

    # ESM emb_layer_norm_before
    xf = _layer_norm(x, embg_ref[...], embb_ref[...])

    for layer in range(NUM_LAYERS):                       # static unroll (2 layers)
        # ---------------- self-attention (pre-LN) ----------------
        h = _layer_norm(xf, ln1g_ref[layer], ln1b_ref[layer])     # (rows, H) f32
        hb = h.astype(jnp.bfloat16)                               # bf16 MXU inputs
        attn = jnp.zeros((rows, H), jnp.float32)
        for hd in range(NUM_HEADS):                               # static unroll
            qh = (jnp.dot(hb, wq_ref[layer, hd],
                          preferred_element_type=jnp.float32) + bq_ref[layer, hd]) * scale
            kh = jnp.dot(hb, wk_ref[layer, hd],
                         preferred_element_type=jnp.float32) + bk_ref[layer, hd]
            vh = jnp.dot(hb, wv_ref[layer, hd],
                         preferred_element_type=jnp.float32) + bv_ref[layer, hd]
            qh = qh.reshape(Bc, L, HEAD_DIM)
            kh = kh.reshape(Bc, L, HEAD_DIM)
            vh = vh.reshape(Bc, L, HEAD_DIM)
            s = jnp.einsum("bld,bmd->blm", qh, kh,
                           preferred_element_type=jnp.float32) + bias     # (Bc, L, L)
            s = s - jnp.max(s, axis=-1, keepdims=True)
            p = jnp.exp(s)
            p = p * pl.reciprocal(jnp.sum(p, axis=-1, keepdims=True), approx=True)
            oh = jnp.einsum("blm,bmd->bld", p, vh,
                            preferred_element_type=jnp.float32)           # (Bc, L, HD)
            # head merge folded into the output projection (accumulate per head)
            attn = attn + jnp.dot(oh.reshape(rows, HEAD_DIM).astype(jnp.bfloat16),
                                  wo_ref[layer, hd],
                                  preferred_element_type=jnp.float32)
        xf = xf + attn + bo_ref[layer]

        # ---------------- feed-forward (pre-LN) ----------------
        h2 = _layer_norm(xf, ln2g_ref[layer], ln2b_ref[layer])
        f = _gelu(jnp.dot(h2.astype(jnp.bfloat16), w1_ref[layer],
                          preferred_element_type=jnp.float32) + b1_ref[layer])
        xf = xf + jnp.dot(f.astype(jnp.bfloat16), w2_ref[layer],
                          preferred_element_type=jnp.float32) + b2_ref[layer]

    # ESM emb_layer_norm_after -> final representation
    rep = _layer_norm(xf, lnfg_ref[...], lnfb_ref[...])            # (rows, H)

    if with_lm_head:
        # RobertaLMHead: dense -> gelu -> LN -> vocab projection (padded to 128)
        hh = _gelu(jnp.dot(rep.astype(jnp.bfloat16), dw_ref[...],
                           preferred_element_type=jnp.float32) + db_ref[...])
        hh = _layer_norm(hh, lng_ref[...], lnb_ref[...])
        logits = jnp.dot(hh.astype(jnp.bfloat16), pw_ref[...],
                         preferred_element_type=jnp.float32) + pb_ref[...]
        out_ref[...] = logits.reshape(Bc, L, VOCAB_PAD)
    else:
        out_ref[...] = rep.reshape(Bc, L, H)


def _bcast_spec(shape):
    nd = len(shape)
    return pl.BlockSpec(shape, lambda c: (0,) * nd)


def fused_forward(x_emb, bias, params, with_lm_head):
    B, L, H = x_emb.shape
    n_chunks = 2 if B % 2 == 0 else 1        # feed both v7x TensorCores
    Bc = B // n_chunks

    weights = [
        params["emb_ln_g"], params["emb_ln_b"],
        params["ln1_g"], params["ln1_b"],
        params["wq"], params["bq"], params["wk"], params["bk"],
        params["wv"], params["bv"], params["wo"], params["bo"],
        params["ln2_g"], params["ln2_b"],
        params["w1"], params["b1"], params["w2"], params["b2"],
        params["lnf_g"], params["lnf_b"],
        params["head_dw"], params["head_db"],
        params["head_lng"], params["head_lnb"],
        params["head_pw"], params["head_pb"],
    ]

    in_specs = [pl.BlockSpec((Bc, L, H), lambda c: (c, 0, 0)),
                pl.BlockSpec((Bc, 1, L), lambda c: (c, 0, 0))]
    in_specs += [_bcast_spec(w.shape) for w in weights]

    out_dim = VOCAB_PAD if with_lm_head else H
    kernel = functools.partial(fused_forward_kernel, with_lm_head=with_lm_head)
    return pl.pallas_call(
        kernel,
        out_shape=jax.ShapeDtypeStruct((B, L, out_dim), jnp.float32),
        grid=(n_chunks,),
        in_specs=in_specs,
        out_specs=pl.BlockSpec((Bc, L, out_dim), lambda c: (c, 0, 0)),
        compiler_params=pltpu.CompilerParams(
            dimension_semantics=("parallel",),
            vmem_limit_bytes=16 * 1024 * 1024),
    )(x_emb, bias, *weights)


# --------------------------- parameter creation -------------------------------
def init_params(key):
    ki = iter(jax.random.split(key, 16))

    def nrm(shape, scale=0.02):
        return (scale * jax.random.normal(next(ki), shape)).astype(jnp.float32)

    def ones(shape):
        return jnp.ones(shape, jnp.float32)

    def zeros(shape):
        return jnp.zeros(shape, jnp.float32)

    bf = jnp.bfloat16
    return {
        "tok_emb": nrm((VOCAB, HIDDEN)),
        "pos_emb": nrm((MAX_LEN, HIDDEN)),
        "emb_ln_g": ones((1, HIDDEN)), "emb_ln_b": zeros((1, HIDDEN)),
        # encoder layers, stacked on a leading NUM_LAYERS axis; attention
        # weights pre-split per head (leading-axis indexing, no lane slicing).
        "ln1_g": ones((NUM_LAYERS, 1, HIDDEN)), "ln1_b": zeros((NUM_LAYERS, 1, HIDDEN)),
        "wq": nrm((NUM_LAYERS, NUM_HEADS, HIDDEN, HEAD_DIM)).astype(bf),
        "bq": zeros((NUM_LAYERS, NUM_HEADS, 1, HEAD_DIM)),
        "wk": nrm((NUM_LAYERS, NUM_HEADS, HIDDEN, HEAD_DIM)).astype(bf),
        "bk": zeros((NUM_LAYERS, NUM_HEADS, 1, HEAD_DIM)),
        "wv": nrm((NUM_LAYERS, NUM_HEADS, HIDDEN, HEAD_DIM)).astype(bf),
        "bv": zeros((NUM_LAYERS, NUM_HEADS, 1, HEAD_DIM)),
        "wo": nrm((NUM_LAYERS, NUM_HEADS, HEAD_DIM, HIDDEN)).astype(bf),
        "bo": zeros((NUM_LAYERS, 1, HIDDEN)),
        "ln2_g": ones((NUM_LAYERS, 1, HIDDEN)), "ln2_b": zeros((NUM_LAYERS, 1, HIDDEN)),
        "w1": nrm((NUM_LAYERS, HIDDEN, FFN)).astype(bf),
        "b1": zeros((NUM_LAYERS, 1, FFN)),
        "w2": nrm((NUM_LAYERS, FFN, HIDDEN)).astype(bf),
        "b2": zeros((NUM_LAYERS, 1, HIDDEN)),
        "lnf_g": ones((1, HIDDEN)), "lnf_b": zeros((1, HIDDEN)),
        # RobertaLMHead (vocab projection zero-padded to 128 lanes)
        "head_dw": nrm((HIDDEN, HIDDEN)).astype(bf),
        "head_db": zeros((1, HIDDEN)),
        "head_lng": ones((1, HIDDEN)), "head_lnb": zeros((1, HIDDEN)),
        "head_pw": jnp.pad(nrm((HIDDEN, VOCAB)),
                           ((0, 0), (0, VOCAB_PAD - VOCAB))).astype(bf),
        "head_pb": zeros((1, VOCAB_PAD)),
    }


# ------------------------------- forward --------------------------------------
def simplm_forward(params, inputs, task="MLM"):
    tokens = inputs.reshape(-1, inputs.shape[-1])                  # (B, L)
    B, L = tokens.shape
    mask = tokens != PAD_IDX                                       # (B, L) bool

    # glue: data-dependent embedding gather stays in JAX
    x = (params["tok_emb"][tokens] + params["pos_emb"][:L][None, :, :]).astype(jnp.float32)

    # additive key-padding bias, computed once: 0 for valid, -1e9 for padding
    bias = ((mask.astype(jnp.float32) - 1.0) * 1e9)[:, None, :]    # (B, 1, L)

    if task == "MLM":
        logits = fused_forward(x, bias, params, with_lm_head=True)     # (B, L, 128)
        return jnp.transpose(logits[:, :, :VOCAB], (0, 2, 1))          # (B, V, L)

    reps = fused_forward(x, bias, params, with_lm_head=False)          # (B, L, H)

    if task == "SIM":
        # masked-mean pooling + triplet margin term (KB-scale -> scalar: plain JAX)
        m = mask.astype(jnp.float32)
        pooled = jnp.sum(reps * m[:, :, None], axis=1) / jnp.sum(m, axis=1, keepdims=True)
        pooled = pooled.reshape(-1, 3, HIDDEN)
        anc, pos, neg = pooled[:, 0], pooled[:, 1], pooled[:, 2]
        d1 = jnp.sqrt(jnp.sum((anc - pos) ** 2, axis=-1))   # torch.cdist(anchor, positive)
        d2 = jnp.sqrt(jnp.sum((pos - neg) ** 2, axis=-1))   # torch.cdist(positive, negative) — matches spec
        return jnp.mean(jax.nn.relu(d1 + MARGIN - d2))

    # default branch: (representations, masks)
    return reps, mask


# --------------------------------- main ----------------------------------------
if __name__ == "__main__":
    key = jax.random.PRNGKey(0)
    k_par, k_tok = jax.random.split(key)
    params = init_params(k_par)

    # inputs: (batch=2, triplet=3, seq=8) token ids; last position padded.
    inputs = jax.random.randint(k_tok, (2, 3, 8), 4, 30, dtype=jnp.int32)
    inputs = inputs.at[..., -1].set(PAD_IDX)

    fwd = jax.jit(simplm_forward, static_argnames="task")

    mlm_out = jax.block_until_ready(fwd(params, inputs, task="MLM"))
    assert mlm_out.shape == (6, VOCAB, 8), mlm_out.shape

    sim_out = jax.block_until_ready(fwd(params, inputs, task="SIM"))
    assert sim_out.shape == (), sim_out.shape

    reps, masks = jax.block_until_ready(fwd(params, inputs, task="REPR"))
    assert reps.shape == (6, 8, HIDDEN) and masks.shape == (6, 8)

    print("KERNEL_OK")
</pallas_src>

<mosaic_0001>
module attributes {stable_mosaic.version = 11 : i64} {
  func.func @fused_forward_kernel(%arg0: i32, %arg1: memref<3x8x32xf32, #tpu.memory_space<vmem>>, %arg2: memref<3x1x8xf32, #tpu.memory_space<vmem>>, %arg3: memref<1x32xf32, #tpu.memory_space<vmem>>, %arg4: memref<1x32xf32, #tpu.memory_space<vmem>>, %arg5: memref<2x1x32xf32, #tpu.memory_space<vmem>>, %arg6: memref<2x1x32xf32, #tpu.memory_space<vmem>>, %arg7: memref<2x4x32x8xbf16, #tpu.memory_space<vmem>>, %arg8: memref<2x4x1x8xf32, #tpu.memory_space<vmem>>, %arg9: memref<2x4x32x8xbf16, #tpu.memory_space<vmem>>, %arg10: memref<2x4x1x8xf32, #tpu.memory_space<vmem>>, %arg11: memref<2x4x32x8xbf16, #tpu.memory_space<vmem>>, %arg12: memref<2x4x1x8xf32, #tpu.memory_space<vmem>>, %arg13: memref<2x4x8x32xbf16, #tpu.memory_space<vmem>>, %arg14: memref<2x1x32xf32, #tpu.memory_space<vmem>>, %arg15: memref<2x1x32xf32, #tpu.memory_space<vmem>>, %arg16: memref<2x1x32xf32, #tpu.memory_space<vmem>>, %arg17: memref<2x32x128xbf16, #tpu.memory_space<vmem>>, %arg18: memref<2x1x128xf32, #tpu.memory_space<vmem>>, %arg19: memref<2x128x32xbf16, #tpu.memory_space<vmem>>, %arg20: memref<2x1x32xf32, #tpu.memory_space<vmem>>, %arg21: memref<1x32xf32, #tpu.memory_space<vmem>>, %arg22: memref<1x32xf32, #tpu.memory_space<vmem>>, %arg23: memref<32x32xbf16, #tpu.memory_space<vmem>>, %arg24: memref<1x32xf32, #tpu.memory_space<vmem>>, %arg25: memref<1x32xf32, #tpu.memory_space<vmem>>, %arg26: memref<1x32xf32, #tpu.memory_space<vmem>>, %arg27: memref<32x128xbf16, #tpu.memory_space<vmem>>, %arg28: memref<1x128xf32, #tpu.memory_space<vmem>>, %arg29: memref<3x8x128xf32, #tpu.memory_space<vmem>>) attributes {dimension_semantics = [#tpu.dimension_semantics<parallel>], iteration_bounds = array<i64: 2>, scalar_prefetch = 0 : i64, scratch_operands = 0 : i64, tpu.core_type = #tpu.core_type<tc>, window_params = [{transform_indices = @transform_0, window_bounds = array<i64: 3, 8, 32>}, {transform_indices = @transform_1, window_bounds = array<i64: 3, 1, 8>}, {pipeline_mode = #tpu.pipeline_mode<synchronous>, transform_indices = @transform_2, window_bounds = array<i64: 1, 32>}, {pipeline_mode = #tpu.pipeline_mode<synchronous>, transform_indices = @transform_3, window_bounds = array<i64: 1, 32>}, {pipeline_mode = #tpu.pipeline_mode<synchronous>, transform_indices = @transform_4, window_bounds = array<i64: 2, 1, 32>}, {pipeline_mode = #tpu.pipeline_mode<synchronous>, transform_indices = @transform_5, window_bounds = array<i64: 2, 1, 32>}, {pipeline_mode = #tpu.pipeline_mode<synchronous>, transform_indices = @transform_6, window_bounds = array<i64: 2, 4, 32, 8>}, {pipeline_mode = #tpu.pipeline_mode<synchronous>, transform_indices = @transform_7, window_bounds = array<i64: 2, 4, 1, 8>}, {pipeline_mode = #tpu.pipeline_mode<synchronous>, transform_indices = @transform_8, window_bounds = array<i64: 2, 4, 32, 8>}, {pipeline_mode = #tpu.pipeline_mode<synchronous>, transform_indices = @transform_9, window_bounds = array<i64: 2, 4, 1, 8>}, {pipeline_mode = #tpu.pipeline_mode<synchronous>, transform_indices = @transform_10, window_bounds = array<i64: 2, 4, 32, 8>}, {pipeline_mode = #tpu.pipeline_mode<synchronous>, transform_indices = @transform_11, window_bounds = array<i64: 2, 4, 1, 8>}, {pipeline_mode = #tpu.pipeline_mode<synchronous>, transform_indices = @transform_12, window_bounds = array<i64: 2, 4, 8, 32>}, {pipeline_mode = #tpu.pipeline_mode<synchronous>, transform_indices = @transform_13, window_bounds = array<i64: 2, 1, 32>}, {pipeline_mode = #tpu.pipeline_mode<synchronous>, transform_indices = @transform_14, window_bounds = array<i64: 2, 1, 32>}, {pipeline_mode = #tpu.pipeline_mode<synchronous>, transform_indices = @transform_15, window_bounds = array<i64: 2, 1, 32>}, {pipeline_mode = #tpu.pipeline_mode<synchronous>, transform_indices = @transform_16, window_bounds = array<i64: 2, 32, 128>}, {pipeline_mode = #tpu.pipeline_mode<synchronous>, transform_indices = @transform_17, window_bounds = array<i64: 2, 1, 128>}, {pipeline_mode = #tpu.pipeline_mode<synchronous>, transform_indices = @transform_18, window_bounds = array<i64: 2, 128, 32>}, {pipeline_mode = #tpu.pipeline_mode<synchronous>, transform_indices = @transform_19, window_bounds = array<i64: 2, 1, 32>}, {pipeline_mode = #tpu.pipeline_mode<synchronous>, transform_indices = @transform_20, window_bounds = array<i64: 1, 32>}, {pipeline_mode = #tpu.pipeline_mode<synchronous>, transform_indices = @transform_21, window_bounds = array<i64: 1, 32>}, {pipeline_mode = #tpu.pipeline_mode<synchronous>, transform_indices = @transform_22, window_bounds = array<i64: 32, 32>}, {pipeline_mode = #tpu.pipeline_mode<synchronous>, transform_indices = @transform_23, window_bounds = array<i64: 1, 32>}, {pipeline_mode = #tpu.pipeline_mode<synchronous>, transform_indices = @transform_24, window_bounds = array<i64: 1, 32>}, {pipeline_mode = #tpu.pipeline_mode<synchronous>, transform_indices = @transform_25, window_bounds = array<i64: 1, 32>}, {pipeline_mode = #tpu.pipeline_mode<synchronous>, transform_indices = @transform_26, window_bounds = array<i64: 32, 128>}, {pipeline_mode = #tpu.pipeline_mode<synchronous>, transform_indices = @transform_27, window_bounds = array<i64: 1, 128>}, {transform_indices = @transform_28, window_bounds = array<i64: 3, 8, 128>}]} {
    %c0 = arith.constant 0 : index
    %c0_0 = arith.constant 0 : index
    %c0_1 = arith.constant 0 : index
    %0 = vector.load %arg2[%c0, %c0_0, %c0_1] : memref<3x1x8xf32, #tpu.memory_space<vmem>>, vector<3x1x8xf32>
    %c0_2 = arith.constant 0 : index
    %c0_3 = arith.constant 0 : index
    %c0_4 = arith.constant 0 : index
    %1 = vector.load %arg1[%c0_2, %c0_3, %c0_4] : memref<3x8x32xf32, #tpu.memory_space<vmem>>, vector<3x8x32xf32>
    %2 = vector.shape_cast %1 : vector<3x8x32xf32> to vector<24x32xf32>
    %c0_5 = arith.constant 0 : index
    %c0_6 = arith.constant 0 : index
    %3 = vector.load %arg3[%c0_5, %c0_6] : memref<1x32xf32, #tpu.memory_space<vmem>>, vector<1x32xf32>
    %c0_7 = arith.constant 0 : index
    %c0_8 = arith.constant 0 : index
    %4 = vector.load %arg4[%c0_7, %c0_8] : memref<1x32xf32, #tpu.memory_space<vmem>>, vector<1x32xf32>
    %cst = arith.constant dense<0.000000e+00> : vector<24xf32>
    %5 = vector.multi_reduction <add>, %2, %cst [1] : vector<24x32xf32> to vector<24xf32>
    %6 = vector.shape_cast %5 : vector<24xf32> to vector<24x1xf32>
    %cst_9 = arith.constant 3.200000e+01 : f32
    %7 = vector.broadcast %cst_9 : f32 to vector<24x1xf32>
    %8 = arith.divf %6, %7 : vector<24x1xf32>
    %9 = vector.broadcast %8 : vector<24x1xf32> to vector<24x32xf32>
    %10 = arith.subf %2, %9 : vector<24x32xf32>
    %11 = arith.mulf %10, %10 : vector<24x32xf32>
    %cst_10 = arith.constant dense<0.000000e+00> : vector<24xf32>
    %12 = vector.multi_reduction <add>, %11, %cst_10 [1] : vector<24x32xf32> to vector<24xf32>
    %13 = vector.shape_cast %12 : vector<24xf32> to vector<24x1xf32>
    %cst_11 = arith.constant 3.200000e+01 : f32
    %14 = vector.broadcast %cst_11 : f32 to vector<24x1xf32>
    %15 = arith.divf %13, %14 : vector<24x1xf32>
    %16 = vector.broadcast %8 : vector<24x1xf32> to vector<24x32xf32>
    %17 = arith.subf %2, %16 : vector<24x32xf32>
    %cst_12 = arith.constant 9.99999974E-6 : f32
    %18 = vector.broadcast %cst_12 : f32 to vector<24x1xf32>
    %19 = arith.addf %15, %18 : vector<24x1xf32>
    %20 = math.rsqrt %19 : vector<24x1xf32>
    %21 = vector.broadcast %20 : vector<24x1xf32> to vector<24x32xf32>
    %22 = arith.mulf %17, %21 : vector<24x32xf32>
    %23 = vector.broadcast %3 : vector<1x32xf32> to vector<24x32xf32>
    %24 = arith.mulf %22, %23 : vector<24x32xf32>
    %25 = vector.broadcast %4 : vector<1x32xf32> to vector<24x32xf32>
    %26 = arith.addf %24, %25 : vector<24x32xf32>
    %c0_13 = arith.constant 0 : index
    %c0_14 = arith.constant 0 : index
    %c0_15 = arith.constant 0 : index
    %27 = vector.load %arg5[%c0_13, %c0_14, %c0_15] : memref<2x1x32xf32, #tpu.memory_space<vmem>>, vector<1x1x32xf32>
    %28 = vector.shape_cast %27 : vector<1x1x32xf32> to vector<1x32xf32>
    %c0_16 = arith.constant 0 : index
    %c0_17 = arith.constant 0 : index
    %c0_18 = arith.constant 0 : index
    %29 = vector.load %arg6[%c0_16, %c0_17, %c0_18] : memref<2x1x32xf32, #tpu.memory_space<vmem>>, vector<1x1x32xf32>
    %30 = vector.shape_cast %29 : vector<1x1x32xf32> to vector<1x32xf32>
    %cst_19 = arith.constant dense<0.000000e+00> : vector<24xf32>
    %31 = vector.multi_reduction <add>, %26, %cst_19 [1] : vector<24x32xf32> to vector<24xf32>
    %32 = vector.shape_cast %31 : vector<24xf32> to vector<24x1xf32>
    %cst_20 = arith.constant 3.200000e+01 : f32
    %33 = vector.broadcast %cst_20 : f32 to vector<24x1xf32>
    %34 = arith.divf %32, %33 : vector<24x1xf32>
    %35 = vector.broadcast %34 : vector<24x1xf32> to vector<24x32xf32>
    %36 = arith.subf %26, %35 : vector<24x32xf32>
    %37 = arith.mulf %36, %36 : vector<24x32xf32>
    %cst_21 = arith.constant dense<0.000000e+00> : vector<24xf32>
    %38 = vector.multi_reduction <add>, %37, %cst_21 [1] : vector<24x32xf32> to vector<24xf32>
    %39 = vector.shape_cast %38 : vector<24xf32> to vector<24x1xf32>
    %cst_22 = arith.constant 3.200000e+01 : f32
    %40 = vector.broadcast %cst_22 : f32 to vector<24x1xf32>
    %41 = arith.divf %39, %40 : vector<24x1xf32>
    %42 = vector.broadcast %34 : vector<24x1xf32> to vector<24x32xf32>
    %43 = arith.subf %26, %42 : vector<24x32xf32>
    %cst_23 = arith.constant 9.99999974E-6 : f32
    %44 = vector.broadcast %cst_23 : f32 to vector<24x1xf32>
    %45 = arith.addf %41, %44 : vector<24x1xf32>
    %46 = math.rsqrt %45 : vector<24x1xf32>
    %47 = vector.broadcast %46 : vector<24x1xf32> to vector<24x32xf32>
    %48 = arith.mulf %43, %47 : vector<24x32xf32>
    %49 = vector.broadcast %28 : vector<1x32xf32> to vector<24x32xf32>
    %50 = arith.mulf %48, %49 : vector<24x32xf32>
    %51 = vector.broadcast %30 : vector<1x32xf32> to vector<24x32xf32>
    %52 = arith.addf %50, %51 : vector<24x32xf32>
    %53 = arith.truncf %52 : vector<24x32xf32> to vector<24x32xbf16>
    %cst_24 = arith.constant 0.000000e+00 : f32
    %54 = vector.broadcast %cst_24 : f32 to vector<24x32xf32>
    %c0_25 = arith.constant 0 : index
    %c0_26 = arith.constant 0 : index
    %c0_27 = arith.constant 0 : index
    %c0_28 = arith.constant 0 : index
    %55 = vector.load %arg7[%c0_25, %c0_26, %c0_27, %c0_28] : memref<2x4x32x8xbf16, #tpu.memory_space<vmem>>, vector<1x1x32x8xbf16>
    %56 = vector.shape_cast %55 : vector<1x1x32x8xbf16> to vector<32x8xbf16>
    %cst_29 = arith.constant dense<0.000000e+00> : vector<24x8xf32>
    %57 = tpu.matmul %53, %56, %cst_29 {dimension_numbers = #tpu.dot_dimension_numbers<[1], [0], [0], [1], [0, 0, 1, 1], [], []>} : vector<24x32xbf16>, vector<32x8xbf16>, vector<24x8xf32> -> vector<24x8xf32>
    %c0_30 = arith.constant 0 : index
    %c0_31 = arith.constant 0 : index
    %c0_32 = arith.constant 0 : index
    %c0_33 = arith.constant 0 : index
    %58 = vector.load %arg8[%c0_30, %c0_31, %c0_32, %c0_33] : memref<2x4x1x8xf32, #tpu.memory_space<vmem>>, vector<1x1x1x8xf32>
    %59 = vector.shape_cast %58 : vector<1x1x1x8xf32> to vector<1x8xf32>
    %60 = vector.broadcast %59 : vector<1x8xf32> to vector<24x8xf32>
    %61 = arith.addf %57, %60 : vector<24x8xf32>
    %cst_34 = arith.constant 0.353553385 : f32
    %62 = vector.broadcast %cst_34 : f32 to vector<24x8xf32>
    %63 = arith.mulf %61, %62 : vector<24x8xf32>
    %c0_35 = arith.constant 0 : index
    %c0_36 = arith.constant 0 : index
    %c0_37 = arith.constant 0 : index
    %c0_38 = arith.constant 0 : index
    %64 = vector.load %arg9[%c0_35, %c0_36, %c0_37, %c0_38] : memref<2x4x32x8xbf16, #tpu.memory_space<vmem>>, vector<1x1x32x8xbf16>
    %65 = vector.shape_cast %64 : vector<1x1x32x8xbf16> to vector<32x8xbf16>
    %cst_39 = arith.constant dense<0.000000e+00> : vector<24x8xf32>
    %66 = tpu.matmul %53, %65, %cst_39 {dimension_numbers = #tpu.dot_dimension_numbers<[1], [0], [0], [1], [0, 0, 1, 1], [], []>} : vector<24x32xbf16>, vector<32x8xbf16>, vector<24x8xf32> -> vector<24x8xf32>
    %c0_40 = arith.constant 0 : index
    %c0_41 = arith.constant 0 : index
    %c0_42 = arith.constant 0 : index
    %c0_43 = arith.constant 0 : index
    %67 = vector.load %arg10[%c0_40, %c0_41, %c0_42, %c0_43] : memref<2x4x1x8xf32, #tpu.memory_space<vmem>>, vector<1x1x1x8xf32>
    %68 = vector.shape_cast %67 : vector<1x1x1x8xf32> to vector<1x8xf32>
    %69 = vector.broadcast %68 : vector<1x8xf32> to vector<24x8xf32>
    %70 = arith.addf %66, %69 : vector<24x8xf32>
    %c0_44 = arith.constant 0 : index
    %c0_45 = arith.constant 0 : index
    %c0_46 = arith.constant 0 : index
    %c0_47 = arith.constant 0 : index
    %71 = vector.load %arg11[%c0_44, %c0_45, %c0_46, %c0_47] : memref<2x4x32x8xbf16, #tpu.memory_space<vmem>>, vector<1x1x32x8xbf16>
    %72 = vector.shape_cast %71 : vector<1x1x32x8xbf16> to vector<32x8xbf16>
    %cst_48 = arith.constant dense<0.000000e+00> : vector<24x8xf32>
    %73 = tpu.matmul %53, %72, %cst_48 {dimension_numbers = #tpu.dot_dimension_numbers<[1], [0], [0], [1], [0, 0, 1, 1], [], []>} : vector<24x32xbf16>, vector<32x8xbf16>, vector<24x8xf32> -> vector<24x8xf32>
    %c0_49 = arith.constant 0 : index
    %c0_50 = arith.constant 0 : index
    %c0_51 = arith.constant 0 : index
    %c0_52 = arith.constant 0 : index
    %74 = vector.load %arg12[%c0_49, %c0_50, %c0_51, %c0_52] : memref<2x4x1x8xf32, #tpu.memory_space<vmem>>, vector<1x1x1x8xf32>
    %75 = vector.shape_cast %74 : vector<1x1x1x8xf32> to vector<1x8xf32>
    %76 = vector.broadcast %75 : vector<1x8xf32> to vector<24x8xf32>
    %77 = arith.addf %73, %76 : vector<24x8xf32>
    %78 = vector.shape_cast %63 : vector<24x8xf32> to vector<3x8x8xf32>
    %79 = vector.shape_cast %70 : vector<24x8xf32> to vector<3x8x8xf32>
    %80 = vector.shape_cast %77 : vector<24x8xf32> to vector<3x8x8xf32>
    "tpu.trace_start"() <{level = 10 : i32, message = "bld,bmd->blm"}> : () -> ()
    %cst_53 = arith.constant dense<0.000000e+00> : vector<3x8x8xf32>
    %81 = tpu.matmul %78, %79, %cst_53 {dimension_numbers = #tpu.dot_dimension_numbers<[2], [2], [1], [1], [0, 0, 0, 1, 1, 1], [0], [0]>} : vector<3x8x8xf32>, vector<3x8x8xf32>, vector<3x8x8xf32> -> vector<3x8x8xf32>
    "tpu.trace_stop"() : () -> ()
    %82 = vector.broadcast %0 : vector<3x1x8xf32> to vector<3x8x8xf32>
    %83 = arith.addf %81, %82 : vector<3x8x8xf32>
    %cst_54 = arith.constant dense<0xFF800000> : vector<3x8xf32>
    %84 = vector.multi_reduction <maximumf>, %83, %cst_54 [2] : vector<3x8x8xf32> to vector<3x8xf32>
    %85 = vector.shape_cast %84 : vector<3x8xf32> to vector<3x8x1xf32>
    %86 = vector.broadcast %85 : vector<3x8x1xf32> to vector<3x8x8xf32>
    %87 = arith.subf %83, %86 : vector<3x8x8xf32>
    %88 = math.exp %87 : vector<3x8x8xf32>
    %cst_55 = arith.constant dense<0.000000e+00> : vector<3x8xf32>
    %89 = vector.multi_reduction <add>, %88, %cst_55 [2] : vector<3x8x8xf32> to vector<3x8xf32>
    %90 = vector.shape_cast %89 : vector<3x8xf32> to vector<3x8x1xf32>
    %91 = tpu.reciprocal %90 {approx = true} : vector<3x8x1xf32> -> vector<3x8x1xf32>
    %92 = vector.broadcast %91 : vector<3x8x1xf32> to vector<3x8x8xf32>
    %93 = arith.mulf %88, %92 : vector<3x8x8xf32>
    "tpu.trace_start"() <{level = 10 : i32, message = "blm,bmd->bld"}> : () -> ()
    %cst_56 = arith.constant dense<0.000000e+00> : vector<3x8x8xf32>
    %94 = tpu.matmul %93, %80, %cst_56 {dimension_numbers = #tpu.dot_dimension_numbers<[2], [1], [1], [2], [0, 0, 0, 1, 1, 2], [0], [0]>} : vector<3x8x8xf32>, vector<3x8x8xf32>, vector<3x8x8xf32> -> vector<3x8x8xf32>
    "tpu.trace_stop"() : () -> ()
    %95 = vector.shape_cast %94 : vector<3x8x8xf32> to vector<24x8xf32>
    %96 = arith.truncf %95 : vector<24x8xf32> to vector<24x8xbf16>
    %c0_57 = arith.constant 0 : index
    %c0_58 = arith.constant 0 : index
    %c0_59 = arith.constant 0 : index
    %c0_60 = arith.constant 0 : index
    %97 = vector.load %arg13[%c0_57, %c0_58, %c0_59, %c0_60] : memref<2x4x8x32xbf16, #tpu.memory_space<vmem>>, vector<1x1x8x32xbf16>
    %98 = vector.shape_cast %97 : vector<1x1x8x32xbf16> to vector<8x32xbf16>
    %cst_61 = arith.constant dense<0.000000e+00> : vector<24x32xf32>
    %99 = tpu.matmul %96, %98, %cst_61 {dimension_numbers = #tpu.dot_dimension_numbers<[1], [0], [0], [1], [0, 0, 1, 1], [], []>} : vector<24x8xbf16>, vector<8x32xbf16>, vector<24x32xf32> -> vector<24x32xf32>
    %100 = arith.addf %54, %99 : vector<24x32xf32>
    %c0_62 = arith.constant 0 : index
    %c1 = arith.constant 1 : index
    %c0_63 = arith.constant 0 : index
    %c0_64 = arith.constant 0 : index
    %101 = vector.load %arg7[%c0_62, %c1, %c0_63, %c0_64] : memref<2x4x32x8xbf16, #tpu.memory_space<vmem>>, vector<1x1x32x8xbf16>
    %102 = vector.shape_cast %101 : vector<1x1x32x8xbf16> to vector<32x8xbf16>
    %cst_65 = arith.constant dense<0.000000e+00> : vector<24x8xf32>
    %103 = tpu.matmul %53, %102, %cst_65 {dimension_numbers = #tpu.dot_dimension_numbers<[1], [0], [0], [1], [0, 0, 1, 1], [], []>} : vector<24x32xbf16>, vector<32x8xbf16>, vector<24x8xf32> -> vector<24x8xf32>
    %c0_66 = arith.constant 0 : index
    %c1_67 = arith.constant 1 : index
    %c0_68 = arith.constant 0 : index
    %c0_69 = arith.constant 0 : index
    %104 = vector.load %arg8[%c0_66, %c1_67, %c0_68, %c0_69] : memref<2x4x1x8xf32, #tpu.memory_space<vmem>>, vector<1x1x1x8xf32>
    %105 = vector.shape_cast %104 : vector<1x1x1x8xf32> to vector<1x8xf32>
    %106 = vector.broadcast %105 : vector<1x8xf32> to vector<24x8xf32>
    %107 = arith.addf %103, %106 : vector<24x8xf32>
    %cst_70 = arith.constant 0.353553385 : f32
    %108 = vector.broadcast %cst_70 : f32 to vector<24x8xf32>
    %109 = arith.mulf %107, %108 : vector<24x8xf32>
    %c0_71 = arith.constant 0 : index
    %c1_72 = arith.constant 1 : index
    %c0_73 = arith.constant 0 : index
    %c0_74 = arith.constant 0 : index
    %110 = vector.load %arg9[%c0_71, %c1_72, %c0_73, %c0_74] : memref<2x4x32x8xbf16, #tpu.memory_space<vmem>>, vector<1x1x32x8xbf16>
    %111 = vector.shape_cast %110 : vector<1x1x32x8xbf16> to vector<32x8xbf16>
    %cst_75 = arith.constant dense<0.000000e+00> : vector<24x8xf32>
    %112 = tpu.matmul %53, %111, %cst_75 {dimension_numbers = #tpu.dot_dimension_numbers<[1], [0], [0], [1], [0, 0, 1, 1], [], []>} : vector<24x32xbf16>, vector<32x8xbf16>, vector<24x8xf32> -> vector<24x8xf32>
    %c0_76 = arith.constant 0 : index
    %c1_77 = arith.constant 1 : index
    %c0_78 = arith.constant 0 : index
    %c0_79 = arith.constant 0 : index
    %113 = vector.load %arg10[%c0_76, %c1_77, %c0_78, %c0_79] : memref<2x4x1x8xf32, #tpu.memory_space<vmem>>, vector<1x1x1x8xf32>
    %114 = vector.shape_cast %113 : vector<1x1x1x8xf32> to vector<1x8xf32>
    %115 = vector.broadcast %114 : vector<1x8xf32> to vector<24x8xf32>
    %116 = arith.addf %112, %115 : vector<24x8xf32>
    %c0_80 = arith.constant 0 : index
    %c1_81 = arith.constant 1 : index
    %c0_82 = arith.constant 0 : index
    %c0_83 = arith.constant 0 : index
    %117 = vector.load %arg11[%c0_80, %c1_81, %c0_82, %c0_83] : memref<2x4x32x8xbf16, #tpu.memory_space<vmem>>, vector<1x1x32x8xbf16>
    %118 = vector.shape_cast %117 : vector<1x1x32x8xbf16> to vector<32x8xbf16>
    %cst_84 = arith.constant dense<0.000000e+00> : vector<24x8xf32>
    %119 = tpu.matmul %53, %118, %cst_84 {dimension_numbers = #tpu.dot_dimension_numbers<[1], [0], [0], [1], [0, 0, 1, 1], [], []>} : vector<24x32xbf16>, vector<32x8xbf16>, vector<24x8xf32> -> vector<24x8xf32>
    %c0_85 = arith.constant 0 : index
    %c1_86 = arith.constant 1 : index
    %c0_87 = arith.constant 0 : index
    %c0_88 = arith.constant 0 : index
    %120 = vector.load %arg12[%c0_85, %c1_86, %c0_87, %c0_88] : memref<2x4x1x8xf32, #tpu.memory_space<vmem>>, vector<1x1x1x8xf32>
    %121 = vector.shape_cast %120 : vector<1x1x1x8xf32> to vector<1x8xf32>
    %122 = vector.broadcast %121 : vector<1x8xf32> to vector<24x8xf32>
    %123 = arith.addf %119, %122 : vector<24x8xf32>
    %124 = vector.shape_cast %109 : vector<24x8xf32> to vector<3x8x8xf32>
    %125 = vector.shape_cast %116 : vector<24x8xf32> to vector<3x8x8xf32>
    %126 = vector.shape_cast %123 : vector<24x8xf32> to vector<3x8x8xf32>
    "tpu.trace_start"() <{level = 10 : i32, message = "bld,bmd->blm"}> : () -> ()
    %cst_89 = arith.constant dense<0.000000e+00> : vector<3x8x8xf32>
    %127 = tpu.matmul %124, %125, %cst_89 {dimension_numbers = #tpu.dot_dimension_numbers<[2], [2], [1], [1], [0, 0, 0, 1, 1, 1], [0], [0]>} : vector<3x8x8xf32>, vector<3x8x8xf32>, vector<3x8x8xf32> -> vector<3x8x8xf32>
    "tpu.trace_stop"() : () -> ()
    %128 = vector.broadcast %0 : vector<3x1x8xf32> to vector<3x8x8xf32>
    %129 = arith.addf %127, %128 : vector<3x8x8xf32>
    %cst_90 = arith.constant dense<0xFF800000> : vector<3x8xf32>
    %130 = vector.multi_reduction <maximumf>, %129, %cst_90 [2] : vector<3x8x8xf32> to vector<3x8xf32>
    %131 = vector.shape_cast %130 : vector<3x8xf32> to vector<3x8x1xf32>
    %132 = vector.broadcast %131 : vector<3x8x1xf32> to vector<3x8x8xf32>
    %133 = arith.subf %129, %132 : vector<3x8x8xf32>
    %134 = math.exp %133 : vector<3x8x8xf32>
    %cst_91 = arith.constant dense<0.000000e+00> : vector<3x8xf32>
    %135 = vector.multi_reduction <add>, %134, %cst_91 [2] : vector<3x8x8xf32> to vector<3x8xf32>
    %136 = vector.shape_cast %135 : vector<3x8xf32> to vector<3x8x1xf32>
    %137 = tpu.reciprocal %136 {approx = true} : vector<3x8x1xf32> -> vector<3x8x1xf32>
    %138 = vector.broadcast %137 : vector<3x8x1xf32> to vector<3x8x8xf32>
    %139 = arith.mulf %134, %138 : vector<3x8x8xf32>
    "tpu.trace_start"() <{level = 10 : i32, message = "blm,bmd->bld"}> : () -> ()
    %cst_92 = arith.constant dense<0.000000e+00> : vector<3x8x8xf32>
    %140 = tpu.matmul %139, %126, %cst_92 {dimension_numbers = #tpu.dot_dimension_numbers<[2], [1], [1], [2], [0, 0, 0, 1, 1, 2], [0], [0]>} : vector<3x8x8xf32>, vector<3x8x8xf32>, vector<3x8x8xf32> -> vector<3x8x8xf32>
    "tpu.trace_stop"() : () -> ()
    %141 = vector.shape_cast %140 : vector<3x8x8xf32> to vector<24x8xf32>
    %142 = arith.truncf %141 : vector<24x8xf32> to vector<24x8xbf16>
    %c0_93 = arith.constant 0 : index
    %c1_94 = arith.constant 1 : index
    %c0_95 = arith.constant 0 : index
    %c0_96 = arith.constant 0 : index
    %143 = vector.load %arg13[%c0_93, %c1_94, %c0_95, %c0_96] : memref<2x4x8x32xbf16, #tpu.memory_space<vmem>>, vector<1x1x8x32xbf16>
    %144 = vector.shape_cast %143 : vector<1x1x8x32xbf16> to vector<8x32xbf16>
    %cst_97 = arith.constant dense<0.000000e+00> : vector<24x32xf32>
    %145 = tpu.matmul %142, %144, %cst_97 {dimension_numbers = #tpu.dot_dimension_numbers<[1], [0], [0], [1], [0, 0, 1, 1], [], []>} : vector<24x8xbf16>, vector<8x32xbf16>, vector<24x32xf32> -> vector<24x32xf32>
    %146 = arith.addf %100, %145 : vector<24x32xf32>
    %c0_98 = arith.constant 0 : index
    %c2 = arith.constant 2 : index
    %c0_99 = arith.constant 0 : index
    %c0_100 = arith.constant 0 : index
    %147 = vector.load %arg7[%c0_98, %c2, %c0_99, %c0_100] : memref<2x4x32x8xbf16, #tpu.memory_space<vmem>>, vector<1x1x32x8xbf16>
    %148 = vector.shape_cast %147 : vector<1x1x32x8xbf16> to vector<32x8xbf16>
    %cst_101 = arith.constant dense<0.000000e+00> : vector<24x8xf32>
    %149 = tpu.matmul %53, %148, %cst_101 {dimension_numbers = #tpu.dot_dimension_numbers<[1], [0], [0], [1], [0, 0, 1, 1], [], []>} : vector<24x32xbf16>, vector<32x8xbf16>, vector<24x8xf32> -> vector<24x8xf32>
    %c0_102 = arith.constant 0 : index
    %c2_103 = arith.constant 2 : index
    %c0_104 = arith.constant 0 : index
    %c0_105 = arith.constant 0 : index
    %150 = vector.load %arg8[%c0_102, %c2_103, %c0_104, %c0_105] : memref<2x4x1x8xf32, #tpu.memory_space<vmem>>, vector<1x1x1x8xf32>
    %151 = vector.shape_cast %150 : vector<1x1x1x8xf32> to vector<1x8xf32>
    %152 = vector.broadcast %151 : vector<1x8xf32> to vector<24x8xf32>
    %153 = arith.addf %149, %152 : vector<24x8xf32>
    %cst_106 = arith.constant 0.353553385 : f32
    %154 = vector.broadcast %cst_106 : f32 to vector<24x8xf32>
    %155 = arith.mulf %153, %154 : vector<24x8xf32>
    %c0_107 = arith.constant 0 : index
    %c2_108 = arith.constant 2 : index
    %c0_109 = arith.constant 0 : index
    %c0_110 = arith.constant 0 : index
    %156 = vector.load %arg9[%c0_107, %c2_108, %c0_109, %c0_110] : memref<2x4x32x8xbf16, #tpu.memory_space<vmem>>, vector<1x1x32x8xbf16>
    %157 = vector.shape_cast %156 : vector<1x1x32x8xbf16> to vector<32x8xbf16>
    %cst_111 = arith.constant dense<0.000000e+00> : vector<24x8xf32>
    %158 = tpu.matmul %53, %157, %cst_111 {dimension_numbers = #tpu.dot_dimension_numbers<[1], [0], [0], [1], [0, 0, 1, 1], [], []>} : vector<24x32xbf16>, vector<32x8xbf16>, vector<24x8xf32> -> vector<24x8xf32>
    %c0_112 = arith.constant 0 : index
    %c2_113 = arith.constant 2 : index
    %c0_114 = arith.constant 0 : index
    %c0_115 = arith.constant 0 : index
    %159 = vector.load %arg10[%c0_112, %c2_113, %c0_114, %c0_115] : memref<2x4x1x8xf32, #tpu.memory_space<vmem>>, vector<1x1x1x8xf32>
    %160 = vector.shape_cast %159 : vector<1x1x1x8xf32> to vector<1x8xf32>
    %161 = vector.broadcast %160 : vector<1x8xf32> to vector<24x8xf32>
    %162 = arith.addf %158, %161 : vector<24x8xf32>
    %c0_116 = arith.constant 0 : index
    %c2_117 = arith.constant 2 : index
    %c0_118 = arith.constant 0 : index
    %c0_119 = arith.constant 0 : index
    %163 = vector.load %arg11[%c0_116, %c2_117, %c0_118, %c0_119] : memref<2x4x32x8xbf16, #tpu.memory_space<vmem>>, vector<1x1x32x8xbf16>
    %164 = vector.shape_cast %163 : vector<1x1x32x8xbf16> to vector<32x8xbf16>
    %cst_120 = arith.constant dense<0.000000e+00> : vector<24x8xf32>
    %165 = tpu.matmul %53, %164, %cst_120 {dimension_numbers = #tpu.dot_dimension_numbers<[1], [0], [0], [1], [0, 0, 1, 1], [], []>} : vector<24x32xbf16>, vector<32x8xbf16>, vector<24x8xf32> -> vector<24x8xf32>
    %c0_121 = arith.constant 0 : index
    %c2_122 = arith.constant 2 : index
    %c0_123 = arith.constant 0 : index
    %c0_124 = arith.constant 0 : index
    %166 = vector.load %arg12[%c0_121, %c2_122, %c0_123, %c0_124] : memref<2x4x1x8xf32, #tpu.memory_space<vmem>>, vector<1x1x1x8xf32>
    %167 = vector.shape_cast %166 : vector<1x1x1x8xf32> to vector<1x8xf32>
    %168 = vector.broadcast %167 : vector<1x8xf32> to vector<24x8xf32>
    %169 = arith.addf %165, %168 : vector<24x8xf32>
    %170 = vector.shape_cast %155 : vector<24x8xf32> to vector<3x8x8xf32>
    %171 = vector.shape_cast %162 : vector<24x8xf32> to vector<3x8x8xf32>
    %172 = vector.shape_cast %169 : vector<24x8xf32> to vector<3x8x8xf32>
    "tpu.trace_start"() <{level = 10 : i32, message = "bld,bmd->blm"}> : () -> ()
    %cst_125 = arith.constant dense<0.000000e+00> : vector<3x8x8xf32>
    %173 = tpu.matmul %170, %171, %cst_125 {dimension_numbers = #tpu.dot_dimension_numbers<[2], [2], [1], [1], [0, 0, 0, 1, 1, 1], [0], [0]>} : vector<3x8x8xf32>, vector<3x8x8xf32>, vector<3x8x8xf32> -> vector<3x8x8xf32>
    "tpu.trace_stop"() : () -> ()
    %174 = vector.broadcast %0 : vector<3x1x8xf32> to vector<3x8x8xf32>
    %175 = arith.addf %173, %174 : vector<3x8x8xf32>
    %cst_126 = arith.constant dense<0xFF800000> : vector<3x8xf32>
    %176 = vector.multi_reduction <maximumf>, %175, %cst_126 [2] : vector<3x8x8xf32> to vector<3x8xf32>
    %177 = vector.shape_cast %176 : vector<3x8xf32> to vector<3x8x1xf32>
    %178 = vector.broadcast %177 : vector<3x8x1xf32> to vector<3x8x8xf32>
    %179 = arith.subf %175, %178 : vector<3x8x8xf32>
    %180 = math.exp %179 : vector<3x8x8xf32>
    %cst_127 = arith.constant dense<0.000000e+00> : vector<3x8xf32>
    %181 = vector.multi_reduction <add>, %180, %cst_127 [2] : vector<3x8x8xf32> to vector<3x8xf32>
    %182 = vector.shape_cast %181 : vector<3x8xf32> to vector<3x8x1xf32>
    %183 = tpu.reciprocal %182 {approx = true} : vector<3x8x1xf32> -> vector<3x8x1xf32>
    %184 = vector.broadcast %183 : vector<3x8x1xf32> to vector<3x8x8xf32>
    %185 = arith.mulf %180, %184 : vector<3x8x8xf32>
    "tpu.trace_start"() <{level = 10 : i32, message = "blm,bmd->bld"}> : () -> ()
    %cst_128 = arith.constant dense<0.000000e+00> : vector<3x8x8xf32>
    %186 = tpu.matmul %185, %172, %cst_128 {dimension_numbers = #tpu.dot_dimension_numbers<[2], [1], [1], [2], [0, 0, 0, 1, 1, 2], [0], [0]>} : vector<3x8x8xf32>, vector<3x8x8xf32>, vector<3x8x8xf32> -> vector<3x8x8xf32>
    "tpu.trace_stop"() : () -> ()
    %187 = vector.shape_cast %186 : vector<3x8x8xf32> to vector<24x8xf32>
    %188 = arith.truncf %187 : vector<24x8xf32> to vector<24x8xbf16>
    %c0_129 = arith.constant 0 : index
    %c2_130 = arith.constant 2 : index
    %c0_131 = arith.constant 0 : index
    %c0_132 = arith.constant 0 : index
    %189 = vector.load %arg13[%c0_129, %c2_130, %c0_131, %c0_132] : memref<2x4x8x32xbf16, #tpu.memory_space<vmem>>, vector<1x1x8x32xbf16>
    %190 = vector.shape_cast %189 : vector<1x1x8x32xbf16> to vector<8x32xbf16>
    %cst_133 = arith.constant dense<0.000000e+00> : vector<24x32xf32>
    %191 = tpu.matmul %188, %190, %cst_133 {dimension_numbers = #tpu.dot_dimension_numbers<[1], [0], [0], [1], [0, 0, 1, 1], [], []>} : vector<24x8xbf16>, vector<8x32xbf16>, vector<24x32xf32> -> vector<24x32xf32>
    %192 = arith.addf %146, %191 : vector<24x32xf32>
    %c0_134 = arith.constant 0 : index
    %c3 = arith.constant 3 : index
    %c0_135 = arith.constant 0 : index
    %c0_136 = arith.constant 0 : index
    %193 = vector.load %arg7[%c0_134, %c3, %c0_135, %c0_136] : memref<2x4x32x8xbf16, #tpu.memory_space<vmem>>, vector<1x1x32x8xbf16>
    %194 = vector.shape_cast %193 : vector<1x1x32x8xbf16> to vector<32x8xbf16>
    %cst_137 = arith.constant dense<0.000000e+00> : vector<24x8xf32>
    %195 = tpu.matmul %53, %194, %cst_137 {dimension_numbers = #tpu.dot_dimension_numbers<[1], [0], [0], [1], [0, 0, 1, 1], [], []>} : vector<24x32xbf16>, vector<32x8xbf16>, vector<24x8xf32> -> vector<24x8xf32>
    %c0_138 = arith.constant 0 : index
    %c3_139 = arith.constant 3 : index
    %c0_140 = arith.constant 0 : index
    %c0_141 = arith.constant 0 : index
    %196 = vector.load %arg8[%c0_138, %c3_139, %c0_140, %c0_141] : memref<2x4x1x8xf32, #tpu.memory_space<vmem>>, vector<1x1x1x8xf32>
    %197 = vector.shape_cast %196 : vector<1x1x1x8xf32> to vector<1x8xf32>
    %198 = vector.broadcast %197 : vector<1x8xf32> to vector<24x8xf32>
    %199 = arith.addf %195, %198 : vector<24x8xf32>
    %cst_142 = arith.constant 0.353553385 : f32
    %200 = vector.broadcast %cst_142 : f32 to vector<24x8xf32>
    %201 = arith.mulf %199, %200 : vector<24x8xf32>
    %c0_143 = arith.constant 0 : index
    %c3_144 = arith.constant 3 : index
    %c0_145 = arith.constant 0 : index
    %c0_146 = arith.constant 0 : index
    %202 = vector.load %arg9[%c0_143, %c3_144, %c0_145, %c0_146] : memref<2x4x32x8xbf16, #tpu.memory_space<vmem>>, vector<1x1x32x8xbf16>
    %203 = vector.shape_cast %202 : vector<1x1x32x8xbf16> to vector<32x8xbf16>
    %cst_147 = arith.constant dense<0.000000e+00> : vector<24x8xf32>
    %204 = tpu.matmul %53, %203, %cst_147 {dimension_numbers = #tpu.dot_dimension_numbers<[1], [0], [0], [1], [0, 0, 1, 1], [], []>} : vector<24x32xbf16>, vector<32x8xbf16>, vector<24x8xf32> -> vector<24x8xf32>
    %c0_148 = arith.constant 0 : index
    %c3_149 = arith.constant 3 : index
    %c0_150 = arith.constant 0 : index
    %c0_151 = arith.constant 0 : index
    %205 = vector.load %arg10[%c0_148, %c3_149, %c0_150, %c0_151] : memref<2x4x1x8xf32, #tpu.memory_space<vmem>>, vector<1x1x1x8xf32>
    %206 = vector.shape_cast %205 : vector<1x1x1x8xf32> to vector<1x8xf32>
    %207 = vector.broadcast %206 : vector<1x8xf32> to vector<24x8xf32>
    %208 = arith.addf %204, %207 : vector<24x8xf32>
    %c0_152 = arith.constant 0 : index
    %c3_153 = arith.constant 3 : index
    %c0_154 = arith.constant 0 : index
    %c0_155 = arith.constant 0 : index
    %209 = vector.load %arg11[%c0_152, %c3_153, %c0_154, %c0_155] : memref<2x4x32x8xbf16, #tpu.memory_space<vmem>>, vector<1x1x32x8xbf16>
    %210 = vector.shape_cast %209 : vector<1x1x32x8xbf16> to vector<32x8xbf16>
    %cst_156 = arith.constant dense<0.000000e+00> : vector<24x8xf32>
    %211 = tpu.matmul %53, %210, %cst_156 {dimension_numbers = #tpu.dot_dimension_numbers<[1], [0], [0], [1], [0, 0, 1, 1], [], []>} : vector<24x32xbf16>, vector<32x8xbf16>, vector<24x8xf32> -> vector<24x8xf32>
    %c0_157 = arith.constant 0 : index
    %c3_158 = arith.constant 3 : index
    %c0_159 = arith.constant 0 : index
    %c0_160 = arith.constant 0 : index
    %212 = vector.load %arg12[%c0_157, %c3_158, %c0_159, %c0_160] : memref<2x4x1x8xf32, #tpu.memory_space<vmem>>, vector<1x1x1x8xf32>
    %213 = vector.shape_cast %212 : vector<1x1x1x8xf32> to vector<1x8xf32>
    %214 = vector.broadcast %213 : vector<1x8xf32> to vector<24x8xf32>
    %215 = arith.addf %211, %214 : vector<24x8xf32>
    %216 = vector.shape_cast %201 : vector<24x8xf32> to vector<3x8x8xf32>
    %217 = vector.shape_cast %208 : vector<24x8xf32> to vector<3x8x8xf32>
    %218 = vector.shape_cast %215 : vector<24x8xf32> to vector<3x8x8xf32>
    "tpu.trace_start"() <{level = 10 : i32, message = "bld,bmd->blm"}> : () -> ()
    %cst_161 = arith.constant dense<0.000000e+00> : vector<3x8x8xf32>
    %219 = tpu.matmul %216, %217, %cst_161 {dimension_numbers = #tpu.dot_dimension_numbers<[2], [2], [1], [1], [0, 0, 0, 1, 1, 1], [0], [0]>} : vector<3x8x8xf32>, vector<3x8x8xf32>, vector<3x8x8xf32> -> vector<3x8x8xf32>
    "tpu.trace_stop"() : () -> ()
    %220 = vector.broadcast %0 : vector<3x1x8xf32> to vector<3x8x8xf32>
    %221 = arith.addf %219, %220 : vector<3x8x8xf32>
    %cst_162 = arith.constant dense<0xFF800000> : vector<3x8xf32>
    %222 = vector.multi_reduction <maximumf>, %221, %cst_162 [2] : vector<3x8x8xf32> to vector<3x8xf32>
    %223 = vector.shape_cast %222 : vector<3x8xf32> to vector<3x8x1xf32>
    %224 = vector.broadcast %223 : vector<3x8x1xf32> to vector<3x8x8xf32>
    %225 = arith.subf %221, %224 : vector<3x8x8xf32>
    %226 = math.exp %225 : vector<3x8x8xf32>
    %cst_163 = arith.constant dense<0.000000e+00> : vector<3x8xf32>
    %227 = vector.multi_reduction <add>, %226, %cst_163 [2] : vector<3x8x8xf32> to vector<3x8xf32>
    %228 = vector.shape_cast %227 : vector<3x8xf32> to vector<3x8x1xf32>
    %229 = tpu.reciprocal %228 {approx = true} : vector<3x8x1xf32> -> vector<3x8x1xf32>
    %230 = vector.broadcast %229 : vector<3x8x1xf32> to vector<3x8x8xf32>
    %231 = arith.mulf %226, %230 : vector<3x8x8xf32>
    "tpu.trace_start"() <{level = 10 : i32, message = "blm,bmd->bld"}> : () -> ()
    %cst_164 = arith.constant dense<0.000000e+00> : vector<3x8x8xf32>
    %232 = tpu.matmul %231, %218, %cst_164 {dimension_numbers = #tpu.dot_dimension_numbers<[2], [1], [1], [2], [0, 0, 0, 1, 1, 2], [0], [0]>} : vector<3x8x8xf32>, vector<3x8x8xf32>, vector<3x8x8xf32> -> vector<3x8x8xf32>
    "tpu.trace_stop"() : () -> ()
    %233 = vector.shape_cast %232 : vector<3x8x8xf32> to vector<24x8xf32>
    %234 = arith.truncf %233 : vector<24x8xf32> to vector<24x8xbf16>
    %c0_165 = arith.constant 0 : index
    %c3_166 = arith.constant 3 : index
    %c0_167 = arith.constant 0 : index
    %c0_168 = arith.constant 0 : index
    %235 = vector.load %arg13[%c0_165, %c3_166, %c0_167, %c0_168] : memref<2x4x8x32xbf16, #tpu.memory_space<vmem>>, vector<1x1x8x32xbf16>
    %236 = vector.shape_cast %235 : vector<1x1x8x32xbf16> to vector<8x32xbf16>
    %cst_169 = arith.constant dense<0.000000e+00> : vector<24x32xf32>
    %237 = tpu.matmul %234, %236, %cst_169 {dimension_numbers = #tpu.dot_dimension_numbers<[1], [0], [0], [1], [0, 0, 1, 1], [], []>} : vector<24x8xbf16>, vector<8x32xbf16>, vector<24x32xf32> -> vector<24x32xf32>
    %238 = arith.addf %192, %237 : vector<24x32xf32>
    %239 = arith.addf %26, %238 : vector<24x32xf32>
    %c0_170 = arith.constant 0 : index
    %c0_171 = arith.constant 0 : index
    %c0_172 = arith.constant 0 : index
    %240 = vector.load %arg14[%c0_170, %c0_171, %c0_172] : memref<2x1x32xf32, #tpu.memory_space<vmem>>, vector<1x1x32xf32>
    %241 = vector.shape_cast %240 : vector<1x1x32xf32> to vector<1x32xf32>
    %242 = vector.broadcast %241 : vector<1x32xf32> to vector<24x32xf32>
    %243 = arith.addf %239, %242 : vector<24x32xf32>
    %c0_173 = arith.constant 0 : index
    %c0_174 = arith.constant 0 : index
    %c0_175 = arith.constant 0 : index
    %244 = vector.load %arg15[%c0_173, %c0_174, %c0_175] : memref<2x1x32xf32, #tpu.memory_space<vmem>>, vector<1x1x32xf32>
    %245 = vector.shape_cast %244 : vector<1x1x32xf32> to vector<1x32xf32>
    %c0_176 = arith.constant 0 : index
    %c0_177 = arith.constant 0 : index
    %c0_178 = arith.constant 0 : index
    %246 = vector.load %arg16[%c0_176, %c0_177, %c0_178] : memref<2x1x32xf32, #tpu.memory_space<vmem>>, vector<1x1x32xf32>
    %247 = vector.shape_cast %246 : vector<1x1x32xf32> to vector<1x32xf32>
    %cst_179 = arith.constant dense<0.000000e+00> : vector<24xf32>
    %248 = vector.multi_reduction <add>, %243, %cst_179 [1] : vector<24x32xf32> to vector<24xf32>
    %249 = vector.shape_cast %248 : vector<24xf32> to vector<24x1xf32>
    %cst_180 = arith.constant 3.200000e+01 : f32
    %250 = vector.broadcast %cst_180 : f32 to vector<24x1xf32>
    %251 = arith.divf %249, %250 : vector<24x1xf32>
    %252 = vector.broadcast %251 : vector<24x1xf32> to vector<24x32xf32>
    %253 = arith.subf %243, %252 : vector<24x32xf32>
    %254 = arith.mulf %253, %253 : vector<24x32xf32>
    %cst_181 = arith.constant dense<0.000000e+00> : vector<24xf32>
    %255 = vector.multi_reduction <add>, %254, %cst_181 [1] : vector<24x32xf32> to vector<24xf32>
    %256 = vector.shape_cast %255 : vector<24xf32> to vector<24x1xf32>
    %cst_182 = arith.constant 3.200000e+01 : f32
    %257 = vector.broadcast %cst_182 : f32 to vector<24x1xf32>
    %258 = arith.divf %256, %257 : vector<24x1xf32>
    %259 = vector.broadcast %251 : vector<24x1xf32> to vector<24x32xf32>
    %260 = arith.subf %243, %259 : vector<24x32xf32>
    %cst_183 = arith.constant 9.99999974E-6 : f32
    %261 = vector.broadcast %cst_183 : f32 to vector<24x1xf32>
    %262 = arith.addf %258, %261 : vector<24x1xf32>
    %263 = math.rsqrt %262 : vector<24x1xf32>
    %264 = vector.broadcast %263 : vector<24x1xf32> to vector<24x32xf32>
    %265 = arith.mulf %260, %264 : vector<24x32xf32>
    %266 = vector.broadcast %245 : vector<1x32xf32> to vector<24x32xf32>
    %267 = arith.mulf %265, %266 : vector<24x32xf32>
    %268 = vector.broadcast %247 : vector<1x32xf32> to vector<24x32xf32>
    %269 = arith.addf %267, %268 : vector<24x32xf32>
    %270 = arith.truncf %269 : vector<24x32xf32> to vector<24x32xbf16>
    %c0_184 = arith.constant 0 : index
    %c0_185 = arith.constant 0 : index
    %c0_186 = arith.constant 0 : index
    %271 = vector.load %arg17[%c0_184, %c0_185, %c0_186] : memref<2x32x128xbf16, #tpu.memory_space<vmem>>, vector<1x32x128xbf16>
    %272 = vector.shape_cast %271 : vector<1x32x128xbf16> to vector<32x128xbf16>
    %cst_187 = arith.constant dense<0.000000e+00> : vector<24x128xf32>
    %273 = tpu.matmul %270, %272, %cst_187 {dimension_numbers = #tpu.dot_dimension_numbers<[1], [0], [0], [1], [0, 0, 1, 1], [], []>} : vector<24x32xbf16>, vector<32x128xbf16>, vector<24x128xf32> -> vector<24x128xf32>
    %c0_188 = arith.constant 0 : index
    %c0_189 = arith.constant 0 : index
    %c0_190 = arith.constant 0 : index
    %274 = vector.load %arg18[%c0_188, %c0_189, %c0_190] : memref<2x1x128xf32, #tpu.memory_space<vmem>>, vector<1x1x128xf32>
    %275 = vector.shape_cast %274 : vector<1x1x128xf32> to vector<1x128xf32>
    %276 = vector.broadcast %275 : vector<1x128xf32> to vector<24x128xf32>
    %277 = arith.addf %273, %276 : vector<24x128xf32>
    %278 = arith.mulf %277, %277 : vector<24x128xf32>
    %279 = arith.mulf %277, %278 : vector<24x128xf32>
    %cst_191 = arith.constant 4.471500e-02 : f32
    %280 = vector.broadcast %cst_191 : f32 to vector<24x128xf32>
    %281 = arith.mulf %280, %279 : vector<24x128xf32>
    %282 = arith.addf %277, %281 : vector<24x128xf32>
    %cst_192 = arith.constant 0.797884583 : f32
    %283 = vector.broadcast %cst_192 : f32 to vector<24x128xf32>
    %284 = arith.mulf %283, %282 : vector<24x128xf32>
    %285 = math.tanh %284 : vector<24x128xf32>
    %cst_193 = arith.constant 1.000000e+00 : f32
    %286 = vector.broadcast %cst_193 : f32 to vector<24x128xf32>
    %287 = arith.addf %286, %285 : vector<24x128xf32>
    %cst_194 = arith.constant 5.000000e-01 : f32
    %288 = vector.broadcast %cst_194 : f32 to vector<24x128xf32>
    %289 = arith.mulf %288, %287 : vector<24x128xf32>
    %290 = arith.mulf %277, %289 : vector<24x128xf32>
    %291 = arith.truncf %290 : vector<24x128xf32> to vector<24x128xbf16>
    %c0_195 = arith.constant 0 : index
    %c0_196 = arith.constant 0 : index
    %c0_197 = arith.constant 0 : index
    %292 = vector.load %arg19[%c0_195, %c0_196, %c0_197] : memref<2x128x32xbf16, #tpu.memory_space<vmem>>, vector<1x128x32xbf16>
    %293 = vector.shape_cast %292 : vector<1x128x32xbf16> to vector<128x32xbf16>
    %cst_198 = arith.constant dense<0.000000e+00> : vector<24x32xf32>
    %294 = tpu.matmul %291, %293, %cst_198 {dimension_numbers = #tpu.dot_dimension_numbers<[1], [0], [0], [1], [0, 0, 1, 1], [], []>} : vector<24x128xbf16>, vector<128x32xbf16>, vector<24x32xf32> -> vector<24x32xf32>
    %295 = arith.addf %243, %294 : vector<24x32xf32>
    %c0_199 = arith.constant 0 : index
    %c0_200 = arith.constant 0 : index
    %c0_201 = arith.constant 0 : index
    %296 = vector.load %arg20[%c0_199, %c0_200, %c0_201] : memref<2x1x32xf32, #tpu.memory_space<vmem>>, vector<1x1x32xf32>
    %297 = vector.shape_cast %296 : vector<1x1x32xf32> to vector<1x32xf32>
    %298 = vector.broadcast %297 : vector<1x32xf32> to vector<24x32xf32>
    %299 = arith.addf %295, %298 : vector<24x32xf32>
    %c1_202 = arith.constant 1 : index
    %c0_203 = arith.constant 0 : index
    %c0_204 = arith.constant 0 : index
    %300 = vector.load %arg5[%c1_202, %c0_203, %c0_204] : memref<2x1x32xf32, #tpu.memory_space<vmem>>, vector<1x1x32xf32>
    %301 = vector.shape_cast %300 : vector<1x1x32xf32> to vector<1x32xf32>
    %c1_205 = arith.constant 1 : index
    %c0_206 = arith.constant 0 : index
    %c0_207 = arith.constant 0 : index
    %302 = vector.load %arg6[%c1_205, %c0_206, %c0_207] : memref<2x1x32xf32, #tpu.memory_space<vmem>>, vector<1x1x32xf32>
    %303 = vector.shape_cast %302 : vector<1x1x32xf32> to vector<1x32xf32>
    %cst_208 = arith.constant dense<0.000000e+00> : vector<24xf32>
    %304 = vector.multi_reduction <add>, %299, %cst_208 [1] : vector<24x32xf32> to vector<24xf32>
    %305 = vector.shape_cast %304 : vector<24xf32> to vector<24x1xf32>
    %cst_209 = arith.constant 3.200000e+01 : f32
    %306 = vector.broadcast %cst_209 : f32 to vector<24x1xf32>
    %307 = arith.divf %305, %306 : vector<24x1xf32>
    %308 = vector.broadcast %307 : vector<24x1xf32> to vector<24x32xf32>
    %309 = arith.subf %299, %308 : vector<24x32xf32>
    %310 = arith.mulf %309, %309 : vector<24x32xf32>
    %cst_210 = arith.constant dense<0.000000e+00> : vector<24xf32>
    %311 = vector.multi_reduction <add>, %310, %cst_210 [1] : vector<24x32xf32> to vector<24xf32>
    %312 = vector.shape_cast %311 : vector<24xf32> to vector<24x1xf32>
    %cst_211 = arith.constant 3.200000e+01 : f32
    %313 = vector.broadcast %cst_211 : f32 to vector<24x1xf32>
    %314 = arith.divf %312, %313 : vector<24x1xf32>
    %315 = vector.broadcast %307 : vector<24x1xf32> to vector<24x32xf32>
    %316 = arith.subf %299, %315 : vector<24x32xf32>
    %cst_212 = arith.constant 9.99999974E-6 : f32
    %317 = vector.broadcast %cst_212 : f32 to vector<24x1xf32>
    %318 = arith.addf %314, %317 : vector<24x1xf32>
    %319 = math.rsqrt %318 : vector<24x1xf32>
    %320 = vector.broadcast %319 : vector<24x1xf32> to vector<24x32xf32>
    %321 = arith.mulf %316, %320 : vector<24x32xf32>
    %322 = vector.broadcast %301 : vector<1x32xf32> to vector<24x32xf32>
    %323 = arith.mulf %321, %322 : vector<24x32xf32>
    %324 = vector.broadcast %303 : vector<1x32xf32> to vector<24x32xf32>
    %325 = arith.addf %323, %324 : vector<24x32xf32>
    %326 = arith.truncf %325 : vector<24x32xf32> to vector<24x32xbf16>
    %cst_213 = arith.constant 0.000000e+00 : f32
    %327 = vector.broadcast %cst_213 : f32 to vector<24x32xf32>
    %c1_214 = arith.constant 1 : index
    %c0_215 = arith.constant 0 : index
    %c0_216 = arith.constant 0 : index
    %c0_217 = arith.constant 0 : index
    %328 = vector.load %arg7[%c1_214, %c0_215, %c0_216, %c0_217] : memref<2x4x32x8xbf16, #tpu.memory_space<vmem>>, vector<1x1x32x8xbf16>
    %329 = vector.shape_cast %328 : vector<1x1x32x8xbf16> to vector<32x8xbf16>
    %cst_218 = arith.constant dense<0.000000e+00> : vector<24x8xf32>
    %330 = tpu.matmul %326, %329, %cst_218 {dimension_numbers = #tpu.dot_dimension_numbers<[1], [0], [0], [1], [0, 0, 1, 1], [], []>} : vector<24x32xbf16>, vector<32x8xbf16>, vector<24x8xf32> -> vector<24x8xf32>
    %c1_219 = arith.constant 1 : index
    %c0_220 = arith.constant 0 : index
    %c0_221 = arith.constant 0 : index
    %c0_222 = arith.constant 0 : index
    %331 = vector.load %arg8[%c1_219, %c0_220, %c0_221, %c0_222] : memref<2x4x1x8xf32, #tpu.memory_space<vmem>>, vector<1x1x1x8xf32>
    %332 = vector.shape_cast %331 : vector<1x1x1x8xf32> to vector<1x8xf32>
    %333 = vector.broadcast %332 : vector<1x8xf32> to vector<24x8xf32>
    %334 = arith.addf %330, %333 : vector<24x8xf32>
    %cst_223 = arith.constant 0.353553385 : f32
    %335 = vector.broadcast %cst_223 : f32 to vector<24x8xf32>
    %336 = arith.mulf %334, %335 : vector<24x8xf32>
    %c1_224 = arith.constant 1 : index
    %c0_225 = arith.constant 0 : index
    %c0_226 = arith.constant 0 : index
    %c0_227 = arith.constant 0 : index
    %337 = vector.load %arg9[%c1_224, %c0_225, %c0_226, %c0_227] : memref<2x4x32x8xbf16, #tpu.memory_space<vmem>>, vector<1x1x32x8xbf16>
    %338 = vector.shape_cast %337 : vector<1x1x32x8xbf16> to vector<32x8xbf16>
    %cst_228 = arith.constant dense<0.000000e+00> : vector<24x8xf32>
    %339 = tpu.matmul %326, %338, %cst_228 {dimension_numbers = #tpu.dot_dimension_numbers<[1], [0], [0], [1], [0, 0, 1, 1], [], []>} : vector<24x32xbf16>, vector<32x8xbf16>, vector<24x8xf32> -> vector<24x8xf32>
    %c1_229 = arith.constant 1 : index
    %c0_230 = arith.constant 0 : index
    %c0_231 = arith.constant 0 : index
    %c0_232 = arith.constant 0 : index
    %340 = vector.load %arg10[%c1_229, %c0_230, %c0_231, %c0_232] : memref<2x4x1x8xf32, #tpu.memory_space<vmem>>, vector<1x1x1x8xf32>
    %341 = vector.shape_cast %340 : vector<1x1x1x8xf32> to vector<1x8xf32>
    %342 = vector.broadcast %341 : vector<1x8xf32> to vector<24x8xf32>
    %343 = arith.addf %339, %342 : vector<24x8xf32>
    %c1_233 = arith.constant 1 : index
    %c0_234 = arith.constant 0 : index
    %c0_235 = arith.constant 0 : index
    %c0_236 = arith.constant 0 : index
    %344 = vector.load %arg11[%c1_233, %c0_234, %c0_235, %c0_236] : memref<2x4x32x8xbf16, #tpu.memory_space<vmem>>, vector<1x1x32x8xbf16>
    %345 = vector.shape_cast %344 : vector<1x1x32x8xbf16> to vector<32x8xbf16>
    %cst_237 = arith.constant dense<0.000000e+00> : vector<24x8xf32>
    %346 = tpu.matmul %326, %345, %cst_237 {dimension_numbers = #tpu.dot_dimension_numbers<[1], [0], [0], [1], [0, 0, 1, 1], [], []>} : vector<24x32xbf16>, vector<32x8xbf16>, vector<24x8xf32> -> vector<24x8xf32>
    %c1_238 = arith.constant 1 : index
    %c0_239 = arith.constant 0 : index
    %c0_240 = arith.constant 0 : index
    %c0_241 = arith.constant 0 : index
    %347 = vector.load %arg12[%c1_238, %c0_239, %c0_240, %c0_241] : memref<2x4x1x8xf32, #tpu.memory_space<vmem>>, vector<1x1x1x8xf32>
    %348 = vector.shape_cast %347 : vector<1x1x1x8xf32> to vector<1x8xf32>
    %349 = vector.broadcast %348 : vector<1x8xf32> to vector<24x8xf32>
    %350 = arith.addf %346, %349 : vector<24x8xf32>
    %351 = vector.shape_cast %336 : vector<24x8xf32> to vector<3x8x8xf32>
    %352 = vector.shape_cast %343 : vector<24x8xf32> to vector<3x8x8xf32>
    %353 = vector.shape_cast %350 : vector<24x8xf32> to vector<3x8x8xf32>
    "tpu.trace_start"() <{level = 10 : i32, message = "bld,bmd->blm"}> : () -> ()
    %cst_242 = arith.constant dense<0.000000e+00> : vector<3x8x8xf32>
    %354 = tpu.matmul %351, %352, %cst_242 {dimension_numbers = #tpu.dot_dimension_numbers<[2], [2], [1], [1], [0, 0, 0, 1, 1, 1], [0], [0]>} : vector<3x8x8xf32>, vector<3x8x8xf32>, vector<3x8x8xf32> -> vector<3x8x8xf32>
    "tpu.trace_stop"() : () -> ()
    %355 = vector.broadcast %0 : vector<3x1x8xf32> to vector<3x8x8xf32>
    %356 = arith.addf %354, %355 : vector<3x8x8xf32>
    %cst_243 = arith.constant dense<0xFF800000> : vector<3x8xf32>
    %357 = vector.multi_reduction <maximumf>, %356, %cst_243 [2] : vector<3x8x8xf32> to vector<3x8xf32>
    %358 = vector.shape_cast %357 : vector<3x8xf32> to vector<3x8x1xf32>
    %359 = vector.broadcast %358 : vector<3x8x1xf32> to vector<3x8x8xf32>
    %360 = arith.subf %356, %359 : vector<3x8x8xf32>
    %361 = math.exp %360 : vector<3x8x8xf32>
    %cst_244 = arith.constant dense<0.000000e+00> : vector<3x8xf32>
    %362 = vector.multi_reduction <add>, %361, %cst_244 [2] : vector<3x8x8xf32> to vector<3x8xf32>
    %363 = vector.shape_cast %362 : vector<3x8xf32> to vector<3x8x1xf32>
    %364 = tpu.reciprocal %363 {approx = true} : vector<3x8x1xf32> -> vector<3x8x1xf32>
    %365 = vector.broadcast %364 : vector<3x8x1xf32> to vector<3x8x8xf32>
    %366 = arith.mulf %361, %365 : vector<3x8x8xf32>
    "tpu.trace_start"() <{level = 10 : i32, message = "blm,bmd->bld"}> : () -> ()
    %cst_245 = arith.constant dense<0.000000e+00> : vector<3x8x8xf32>
    %367 = tpu.matmul %366, %353, %cst_245 {dimension_numbers = #tpu.dot_dimension_numbers<[2], [1], [1], [2], [0, 0, 0, 1, 1, 2], [0], [0]>} : vector<3x8x8xf32>, vector<3x8x8xf32>, vector<3x8x8xf32> -> vector<3x8x8xf32>
    "tpu.trace_stop"() : () -> ()
    %368 = vector.shape_cast %367 : vector<3x8x8xf32> to vector<24x8xf32>
    %369 = arith.truncf %368 : vector<24x8xf32> to vector<24x8xbf16>
    %c1_246 = arith.constant 1 : index
    %c0_247 = arith.constant 0 : index
    %c0_248 = arith.constant 0 : index
    %c0_249 = arith.constant 0 : index
    %370 = vector.load %arg13[%c1_246, %c0_247, %c0_248, %c0_249] : memref<2x4x8x32xbf16, #tpu.memory_space<vmem>>, vector<1x1x8x32xbf16>
    %371 = vector.shape_cast %370 : vector<1x1x8x32xbf16> to vector<8x32xbf16>
    %cst_250 = arith.constant dense<0.000000e+00> : vector<24x32xf32>
    %372 = tpu.matmul %369, %371, %cst_250 {dimension_numbers = #tpu.dot_dimension_numbers<[1], [0], [0], [1], [0, 0, 1, 1], [], []>} : vector<24x8xbf16>, vector<8x32xbf16>, vector<24x32xf32> -> vector<24x32xf32>
    %373 = arith.addf %327, %372 : vector<24x32xf32>
    %c1_251 = arith.constant 1 : index
    %c1_252 = arith.constant 1 : index
    %c0_253 = arith.constant 0 : index
    %c0_254 = arith.constant 0 : index
    %374 = vector.load %arg7[%c1_251, %c1_252, %c0_253, %c0_254] : memref<2x4x32x8xbf16, #tpu.memory_space<vmem>>, vector<1x1x32x8xbf16>
    %375 = vector.shape_cast %374 : vector<1x1x32x8xbf16> to vector<32x8xbf16>
    %cst_255 = arith.constant dense<0.000000e+00> : vector<24x8xf32>
    %376 = tpu.matmul %326, %375, %cst_255 {dimension_numbers = #tpu.dot_dimension_numbers<[1], [0], [0], [1], [0, 0, 1, 1], [], []>} : vector<24x32xbf16>, vector<32x8xbf16>, vector<24x8xf32> -> vector<24x8xf32>
    %c1_256 = arith.constant 1 : index
    %c1_257 = arith.constant 1 : index
    %c0_258 = arith.constant 0 : index
    %c0_259 = arith.constant 0 : index
    %377 = vector.load %arg8[%c1_256, %c1_257, %c0_258, %c0_259] : memref<2x4x1x8xf32, #tpu.memory_space<vmem>>, vector<1x1x1x8xf32>
    %378 = vector.shape_cast %377 : vector<1x1x1x8xf32> to vector<1x8xf32>
    %379 = vector.broadcast %378 : vector<1x8xf32> to vector<24x8xf32>
    %380 = arith.addf %376, %379 : vector<24x8xf32>
    %cst_260 = arith.constant 0.353553385 : f32
    %381 = vector.broadcast %cst_260 : f32 to vector<24x8xf32>
    %382 = arith.mulf %380, %381 : vector<24x8xf32>
    %c1_261 = arith.constant 1 : index
    %c1_262 = arith.constant 1 : index
    %c0_263 = arith.constant 0 : index
    %c0_264 = arith.constant 0 : index
    %383 = vector.load %arg9[%c1_261, %c1_262, %c0_263, %c0_264] : memref<2x4x32x8xbf16, #tpu.memory_space<vmem>>, vector<1x1x32x8xbf16>
    %384 = vector.shape_cast %383 : vector<1x1x32x8xbf16> to vector<32x8xbf16>
    %cst_265 = arith.constant dense<0.000000e+00> : vector<24x8xf32>
    %385 = tpu.matmul %326, %384, %cst_265 {dimension_numbers = #tpu.dot_dimension_numbers<[1], [0], [0], [1], [0, 0, 1, 1], [], []>} : vector<24x32xbf16>, vector<32x8xbf16>, vector<24x8xf32> -> vector<24x8xf32>
    %c1_266 = arith.constant 1 : index
    %c1_267 = arith.constant 1 : index
    %c0_268 = arith.constant 0 : index
    %c0_269 = arith.constant 0 : index
    %386 = vector.load %arg10[%c1_266, %c1_267, %c0_268, %c0_269] : memref<2x4x1x8xf32, #tpu.memory_space<vmem>>, vector<1x1x1x8xf32>
    %387 = vector.shape_cast %386 : vector<1x1x1x8xf32> to vector<1x8xf32>
    %388 = vector.broadcast %387 : vector<1x8xf32> to vector<24x8xf32>
    %389 = arith.addf %385, %388 : vector<24x8xf32>
    %c1_270 = arith.constant 1 : index
    %c1_271 = arith.constant 1 : index
    %c0_272 = arith.constant 0 : index
    %c0_273 = arith.constant 0 : index
    %390 = vector.load %arg11[%c1_270, %c1_271, %c0_272, %c0_273] : memref<2x4x32x8xbf16, #tpu.memory_space<vmem>>, vector<1x1x32x8xbf16>
    %391 = vector.shape_cast %390 : vector<1x1x32x8xbf16> to vector<32x8xbf16>
    %cst_274 = arith.constant dense<0.000000e+00> : vector<24x8xf32>
    %392 = tpu.matmul %326, %391, %cst_274 {dimension_numbers = #tpu.dot_dimension_numbers<[1], [0], [0], [1], [0, 0, 1, 1], [], []>} : vector<24x32xbf16>, vector<32x8xbf16>, vector<24x8xf32> -> vector<24x8xf32>
    %c1_275 = arith.constant 1 : index
    %c1_276 = arith.constant 1 : index
    %c0_277 = arith.constant 0 : index
    %c0_278 = arith.constant 0 : index
    %393 = vector.load %arg12[%c1_275, %c1_276, %c0_277, %c0_278] : memref<2x4x1x8xf32, #tpu.memory_space<vmem>>, vector<1x1x1x8xf32>
    %394 = vector.shape_cast %393 : vector<1x1x1x8xf32> to vector<1x8xf32>
    %395 = vector.broadcast %394 : vector<1x8xf32> to vector<24x8xf32>
    %396 = arith.addf %392, %395 : vector<24x8xf32>
    %397 = vector.shape_cast %382 : vector<24x8xf32> to vector<3x8x8xf32>
    %398 = vector.shape_cast %389 : vector<24x8xf32> to vector<3x8x8xf32>
    %399 = vector.shape_cast %396 : vector<24x8xf32> to vector<3x8x8xf32>
    "tpu.trace_start"() <{level = 10 : i32, message = "bld,bmd->blm"}> : () -> ()
    %cst_279 = arith.constant dense<0.000000e+00> : vector<3x8x8xf32>
    %400 = tpu.matmul %397, %398, %cst_279 {dimension_numbers = #tpu.dot_dimension_numbers<[2], [2], [1], [1], [0, 0, 0, 1, 1, 1], [0], [0]>} : vector<3x8x8xf32>, vector<3x8x8xf32>, vector<3x8x8xf32> -> vector<3x8x8xf32>
    "tpu.trace_stop"() : () -> ()
    %401 = vector.broadcast %0 : vector<3x1x8xf32> to vector<3x8x8xf32>
    %402 = arith.addf %400, %401 : vector<3x8x8xf32>
    %cst_280 = arith.constant dense<0xFF800000> : vector<3x8xf32>
    %403 = vector.multi_reduction <maximumf>, %402, %cst_280 [2] : vector<3x8x8xf32> to vector<3x8xf32>
    %404 = vector.shape_cast %403 : vector<3x8xf32> to vector<3x8x1xf32>
    %405 = vector.broadcast %404 : vector<3x8x1xf32> to vector<3x8x8xf32>
    %406 = arith.subf %402, %405 : vector<3x8x8xf32>
    %407 = math.exp %406 : vector<3x8x8xf32>
    %cst_281 = arith.constant dense<0.000000e+00> : vector<3x8xf32>
    %408 = vector.multi_reduction <add>, %407, %cst_281 [2] : vector<3x8x8xf32> to vector<3x8xf32>
    %409 = vector.shape_cast %408 : vector<3x8xf32> to vector<3x8x1xf32>
    %410 = tpu.reciprocal %409 {approx = true} : vector<3x8x1xf32> -> vector<3x8x1xf32>
    %411 = vector.broadcast %410 : vector<3x8x1xf32> to vector<3x8x8xf32>
    %412 = arith.mulf %407, %411 : vector<3x8x8xf32>
    "tpu.trace_start"() <{level = 10 : i32, message = "blm,bmd->bld"}> : () -> ()
    %cst_282 = arith.constant dense<0.000000e+00> : vector<3x8x8xf32>
    %413 = tpu.matmul %412, %399, %cst_282 {dimension_numbers = #tpu.dot_dimension_numbers<[2], [1], [1], [2], [0, 0, 0, 1, 1, 2], [0], [0]>} : vector<3x8x8xf32>, vector<3x8x8xf32>, vector<3x8x8xf32> -> vector<3x8x8xf32>
    "tpu.trace_stop"() : () -> ()
    %414 = vector.shape_cast %413 : vector<3x8x8xf32> to vector<24x8xf32>
    %415 = arith.truncf %414 : vector<24x8xf32> to vector<24x8xbf16>
    %c1_283 = arith.constant 1 : index
    %c1_284 = arith.constant 1 : index
    %c0_285 = arith.constant 0 : index
    %c0_286 = arith.constant 0 : index
    %416 = vector.load %arg13[%c1_283, %c1_284, %c0_285, %c0_286] : memref<2x4x8x32xbf16, #tpu.memory_space<vmem>>, vector<1x1x8x32xbf16>
    %417 = vector.shape_cast %416 : vector<1x1x8x32xbf16> to vector<8x32xbf16>
    %cst_287 = arith.constant dense<0.000000e+00> : vector<24x32xf32>
    %418 = tpu.matmul %415, %417, %cst_287 {dimension_numbers = #tpu.dot_dimension_numbers<[1], [0], [0], [1], [0, 0, 1, 1], [], []>} : vector<24x8xbf16>, vector<8x32xbf16>, vector<24x32xf32> -> vector<24x32xf32>
    %419 = arith.addf %373, %418 : vector<24x32xf32>
    %c1_288 = arith.constant 1 : index
    %c2_289 = arith.constant 2 : index
    %c0_290 = arith.constant 0 : index
    %c0_291 = arith.constant 0 : index
    %420 = vector.load %arg7[%c1_288, %c2_289, %c0_290, %c0_291] : memref<2x4x32x8xbf16, #tpu.memory_space<vmem>>, vector<1x1x32x8xbf16>
    %421 = vector.shape_cast %420 : vector<1x1x32x8xbf16> to vector<32x8xbf16>
    %cst_292 = arith.constant dense<0.000000e+00> : vector<24x8xf32>
    %422 = tpu.matmul %326, %421, %cst_292 {dimension_numbers = #tpu.dot_dimension_numbers<[1], [0], [0], [1], [0, 0, 1, 1], [], []>} : vector<24x32xbf16>, vector<32x8xbf16>, vector<24x8xf32> -> vector<24x8xf32>
    %c1_293 = arith.constant 1 : index
    %c2_294 = arith.constant 2 : index
    %c0_295 = arith.constant 0 : index
    %c0_296 = arith.constant 0 : index
    %423 = vector.load %arg8[%c1_293, %c2_294, %c0_295, %c0_296] : memref<2x4x1x8xf32, #tpu.memory_space<vmem>>, vector<1x1x1x8xf32>
    %424 = vector.shape_cast %423 : vector<1x1x1x8xf32> to vector<1x8xf32>
    %425 = vector.broadcast %424 : vector<1x8xf32> to vector<24x8xf32>
    %426 = arith.addf %422, %425 : vector<24x8xf32>
    %cst_297 = arith.constant 0.353553385 : f32
    %427 = vector.broadcast %cst_297 : f32 to vector<24x8xf32>
    %428 = arith.mulf %426, %427 : vector<24x8xf32>
    %c1_298 = arith.constant 1 : index
    %c2_299 = arith.constant 2 : index
    %c0_300 = arith.constant 0 : index
    %c0_301 = arith.constant 0 : index
    %429 = vector.load %arg9[%c1_298, %c2_299, %c0_300, %c0_301] : memref<2x4x32x8xbf16, #tpu.memory_space<vmem>>, vector<1x1x32x8xbf16>
    %430 = vector.shape_cast %429 : vector<1x1x32x8xbf16> to vector<32x8xbf16>
    %cst_302 = arith.constant dense<0.000000e+00> : vector<24x8xf32>
    %431 = tpu.matmul %326, %430, %cst_302 {dimension_numbers = #tpu.dot_dimension_numbers<[1], [0], [0], [1], [0, 0, 1, 1], [], []>} : vector<24x32xbf16>, vector<32x8xbf16>, vector<24x8xf32> -> vector<24x8xf32>
    %c1_303 = arith.constant 1 : index
    %c2_304 = arith.constant 2 : index
    %c0_305 = arith.constant 0 : index
    %c0_306 = arith.constant 0 : index
    %432 = vector.load %arg10[%c1_303, %c2_304, %c0_305, %c0_306] : memref<2x4x1x8xf32, #tpu.memory_space<vmem>>, vector<1x1x1x8xf32>
    %433 = vector.shape_cast %432 : vector<1x1x1x8xf32> to vector<1x8xf32>
    %434 = vector.broadcast %433 : vector<1x8xf32> to vector<24x8xf32>
    %435 = arith.addf %431, %434 : vector<24x8xf32>
    %c1_307 = arith.constant 1 : index
    %c2_308 = arith.constant 2 : index
    %c0_309 = arith.constant 0 : index
    %c0_310 = arith.constant 0 : index
    %436 = vector.load %arg11[%c1_307, %c2_308, %c0_309, %c0_310] : memref<2x4x32x8xbf16, #tpu.memory_space<vmem>>, vector<1x1x32x8xbf16>
    %437 = vector.shape_cast %436 : vector<1x1x32x8xbf16> to vector<32x8xbf16>
    %cst_311 = arith.constant dense<0.000000e+00> : vector<24x8xf32>
    %438 = tpu.matmul %326, %437, %cst_311 {dimension_numbers = #tpu.dot_dimension_numbers<[1], [0], [0], [1], [0, 0, 1, 1], [], []>} : vector<24x32xbf16>, vector<32x8xbf16>, vector<24x8xf32> -> vector<24x8xf32>
    %c1_312 = arith.constant 1 : index
    %c2_313 = arith.constant 2 : index
    %c0_314 = arith.constant 0 : index
    %c0_315 = arith.constant 0 : index
    %439 = vector.load %arg12[%c1_312, %c2_313, %c0_314, %c0_315] : memref<2x4x1x8xf32, #tpu.memory_space<vmem>>, vector<1x1x1x8xf32>
    %440 = vector.shape_cast %439 : vector<1x1x1x8xf32> to vector<1x8xf32>
    %441 = vector.broadcast %440 : vector<1x8xf32> to vector<24x8xf32>
    %442 = arith.addf %438, %441 : vector<24x8xf32>
    %443 = vector.shape_cast %428 : vector<24x8xf32> to vector<3x8x8xf32>
    %444 = vector.shape_cast %435 : vector<24x8xf32> to vector<3x8x8xf32>
    %445 = vector.shape_cast %442 : vector<24x8xf32> to vector<3x8x8xf32>
    "tpu.trace_start"() <{level = 10 : i32, message = "bld,bmd->blm"}> : () -> ()
    %cst_316 = arith.constant dense<0.000000e+00> : vector<3x8x8xf32>
    %446 = tpu.matmul %443, %444, %cst_316 {dimension_numbers = #tpu.dot_dimension_numbers<[2], [2], [1], [1], [0, 0, 0, 1, 1, 1], [0], [0]>} : vector<3x8x8xf32>, vector<3x8x8xf32>, vector<3x8x8xf32> -> vector<3x8x8xf32>
    "tpu.trace_stop"() : () -> ()
    %447 = vector.broadcast %0 : vector<3x1x8xf32> to vector<3x8x8xf32>
    %448 = arith.addf %446, %447 : vector<3x8x8xf32>
    %cst_317 = arith.constant dense<0xFF800000> : vector<3x8xf32>
    %449 = vector.multi_reduction <maximumf>, %448, %cst_317 [2] : vector<3x8x8xf32> to vector<3x8xf32>
    %450 = vector.shape_cast %449 : vector<3x8xf32> to vector<3x8x1xf32>
    %451 = vector.broadcast %450 : vector<3x8x1xf32> to vector<3x8x8xf32>
    %452 = arith.subf %448, %451 : vector<3x8x8xf32>
    %453 = math.exp %452 : vector<3x8x8xf32>
    %cst_318 = arith.constant dense<0.000000e+00> : vector<3x8xf32>
    %454 = vector.multi_reduction <add>, %453, %cst_318 [2] : vector<3x8x8xf32> to vector<3x8xf32>
    %455 = vector.shape_cast %454 : vector<3x8xf32> to vector<3x8x1xf32>
    %456 = tpu.reciprocal %455 {approx = true} : vector<3x8x1xf32> -> vector<3x8x1xf32>
    %457 = vector.broadcast %456 : vector<3x8x1xf32> to vector<3x8x8xf32>
    %458 = arith.mulf %453, %457 : vector<3x8x8xf32>
    "tpu.trace_start"() <{level = 10 : i32, message = "blm,bmd->bld"}> : () -> ()
    %cst_319 = arith.constant dense<0.000000e+00> : vector<3x8x8xf32>
    %459 = tpu.matmul %458, %445, %cst_319 {dimension_numbers = #tpu.dot_dimension_numbers<[2], [1], [1], [2], [0, 0, 0, 1, 1, 2], [0], [0]>} : vector<3x8x8xf32>, vector<3x8x8xf32>, vector<3x8x8xf32> -> vector<3x8x8xf32>
    "tpu.trace_stop"() : () -> ()
    %460 = vector.shape_cast %459 : vector<3x8x8xf32> to vector<24x8xf32>
    %461 = arith.truncf %460 : vector<24x8xf32> to vector<24x8xbf16>
    %c1_320 = arith.constant 1 : index
    %c2_321 = arith.constant 2 : index
    %c0_322 = arith.constant 0 : index
    %c0_323 = arith.constant 0 : index
    %462 = vector.load %arg13[%c1_320, %c2_321, %c0_322, %c0_323] : memref<2x4x8x32xbf16, #tpu.memory_space<vmem>>, vector<1x1x8x32xbf16>
    %463 = vector.shape_cast %462 : vector<1x1x8x32xbf16> to vector<8x32xbf16>
    %cst_324 = arith.constant dense<0.000000e+00> : vector<24x32xf32>
    %464 = tpu.matmul %461, %463, %cst_324 {dimension_numbers = #tpu.dot_dimension_numbers<[1], [0], [0], [1], [0, 0, 1, 1], [], []>} : vector<24x8xbf16>, vector<8x32xbf16>, vector<24x32xf32> -> vector<24x32xf32>
    %465 = arith.addf %419, %464 : vector<24x32xf32>
    %c1_325 = arith.constant 1 : index
    %c3_326 = arith.constant 3 : index
    %c0_327 = arith.constant 0 : index
    %c0_328 = arith.constant 0 : index
    %466 = vector.load %arg7[%c1_325, %c3_326, %c0_327, %c0_328] : memref<2x4x32x8xbf16, #tpu.memory_space<vmem>>, vector<1x1x32x8xbf16>
    %467 = vector.shape_cast %466 : vector<1x1x32x8xbf16> to vector<32x8xbf16>
    %cst_329 = arith.constant dense<0.000000e+00> : vector<24x8xf32>
    %468 = tpu.matmul %326, %467, %cst_329 {dimension_numbers = #tpu.dot_dimension_numbers<[1], [0], [0], [1], [0, 0, 1, 1], [], []>} : vector<24x32xbf16>, vector<32x8xbf16>, vector<24x8xf32> -> vector<24x8xf32>
    %c1_330 = arith.constant 1 : index
    %c3_331 = arith.constant 3 : index
    %c0_332 = arith.constant 0 : index
    %c0_333 = arith.constant 0 : index
    %469 = vector.load %arg8[%c1_330, %c3_331, %c0_332, %c0_333] : memref<2x4x1x8xf32, #tpu.memory_space<vmem>>, vector<1x1x1x8xf32>
    %470 = vector.shape_cast %469 : vector<1x1x1x8xf32> to vector<1x8xf32>
    %471 = vector.broadcast %470 : vector<1x8xf32> to vector<24x8xf32>
    %472 = arith.addf %468, %471 : vector<24x8xf32>
    %cst_334 = arith.constant 0.353553385 : f32
    %473 = vector.broadcast %cst_334 : f32 to vector<24x8xf32>
    %474 = arith.mulf %472, %473 : vector<24x8xf32>
    %c1_335 = arith.constant 1 : index
    %c3_336 = arith.constant 3 : index
    %c0_337 = arith.constant 0 : index
    %c0_338 = arith.constant 0 : index
    %475 = vector.load %arg9[%c1_335, %c3_336, %c0_337, %c0_338] : memref<2x4x32x8xbf16, #tpu.memory_space<vmem>>, vector<1x1x32x8xbf16>
    %476 = vector.shape_cast %475 : vector<1x1x32x8xbf16> to vector<32x8xbf16>
    %cst_339 = arith.constant dense<0.000000e+00> : vector<24x8xf32>
    %477 = tpu.matmul %326, %476, %cst_339 {dimension_numbers = #tpu.dot_dimension_numbers<[1], [0], [0], [1], [0, 0, 1, 1], [], []>} : vector<24x32xbf16>, vector<32x8xbf16>, vector<24x8xf32> -> vector<24x8xf32>
    %c1_340 = arith.constant 1 : index
    %c3_341 = arith.constant 3 : index
    %c0_342 = arith.constant 0 : index
    %c0_343 = arith.constant 0 : index
    %478 = vector.load %arg10[%c1_340, %c3_341, %c0_342, %c0_343] : memref<2x4x1x8xf32, #tpu.memory_space<vmem>>, vector<1x1x1x8xf32>
    %479 = vector.shape_cast %478 : vector<1x1x1x8xf32> to vector<1x8xf32>
    %480 = vector.broadcast %479 : vector<1x8xf32> to vector<24x8xf32>
    %481 = arith.addf %477, %480 : vector<24x8xf32>
    %c1_344 = arith.constant 1 : index
    %c3_345 = arith.constant 3 : index
    %c0_346 = arith.constant 0 : index
    %c0_347 = arith.constant 0 : index
    %482 = vector.load %arg11[%c1_344, %c3_345, %c0_346, %c0_347] : memref<2x4x32x8xbf16, #tpu.memory_space<vmem>>, vector<1x1x32x8xbf16>
    %483 = vector.shape_cast %482 : vector<1x1x32x8xbf16> to vector<32x8xbf16>
    %cst_348 = arith.constant dense<0.000000e+00> : vector<24x8xf32>
    %484 = tpu.matmul %326, %483, %cst_348 {dimension_numbers = #tpu.dot_dimension_numbers<[1], [0], [0], [1], [0, 0, 1, 1], [], []>} : vector<24x32xbf16>, vector<32x8xbf16>, vector<24x8xf32> -> vector<24x8xf32>
    %c1_349 = arith.constant 1 : index
    %c3_350 = arith.constant 3 : index
    %c0_351 = arith.constant 0 : index
    %c0_352 = arith.constant 0 : index
    %485 = vector.load %arg12[%c1_349, %c3_350, %c0_351, %c0_352] : memref<2x4x1x8xf32, #tpu.memory_space<vmem>>, vector<1x1x1x8xf32>
    %486 = vector.shape_cast %485 : vector<1x1x1x8xf32> to vector<1x8xf32>
    %487 = vector.broadcast %486 : vector<1x8xf32> to vector<24x8xf32>
    %488 = arith.addf %484, %487 : vector<24x8xf32>
    %489 = vector.shape_cast %474 : vector<24x8xf32> to vector<3x8x8xf32>
    %490 = vector.shape_cast %481 : vector<24x8xf32> to vector<3x8x8xf32>
    %491 = vector.shape_cast %488 : vector<24x8xf32> to vector<3x8x8xf32>
    "tpu.trace_start"() <{level = 10 : i32, message = "bld,bmd->blm"}> : () -> ()
    %cst_353 = arith.constant dense<0.000000e+00> : vector<3x8x8xf32>
    %492 = tpu.matmul %489, %490, %cst_353 {dimension_numbers = #tpu.dot_dimension_numbers<[2], [2], [1], [1], [0, 0, 0, 1, 1, 1], [0], [0]>} : vector<3x8x8xf32>, vector<3x8x8xf32>, vector<3x8x8xf32> -> vector<3x8x8xf32>
    "tpu.trace_stop"() : () -> ()
    %493 = vector.broadcast %0 : vector<3x1x8xf32> to vector<3x8x8xf32>
    %494 = arith.addf %492, %493 : vector<3x8x8xf32>
    %cst_354 = arith.constant dense<0xFF800000> : vector<3x8xf32>
    %495 = vector.multi_reduction <maximumf>, %494, %cst_354 [2] : vector<3x8x8xf32> to vector<3x8xf32>
    %496 = vector.shape_cast %495 : vector<3x8xf32> to vector<3x8x1xf32>
    %497 = vector.broadcast %496 : vector<3x8x1xf32> to vector<3x8x8xf32>
    %498 = arith.subf %494, %497 : vector<3x8x8xf32>
    %499 = math.exp %498 : vector<3x8x8xf32>
    %cst_355 = arith.constant dense<0.000000e+00> : vector<3x8xf32>
    %500 = vector.multi_reduction <add>, %499, %cst_355 [2] : vector<3x8x8xf32> to vector<3x8xf32>
    %501 = vector.shape_cast %500 : vector<3x8xf32> to vector<3x8x1xf32>
    %502 = tpu.reciprocal %501 {approx = true} : vector<3x8x1xf32> -> vector<3x8x1xf32>
    %503 = vector.broadcast %502 : vector<3x8x1xf32> to vector<3x8x8xf32>
    %504 = arith.mulf %499, %503 : vector<3x8x8xf32>
    "tpu.trace_start"() <{level = 10 : i32, message = "blm,bmd->bld"}> : () -> ()
    %cst_356 = arith.constant dense<0.000000e+00> : vector<3x8x8xf32>
    %505 = tpu.matmul %504, %491, %cst_356 {dimension_numbers = #tpu.dot_dimension_numbers<[2], [1], [1], [2], [0, 0, 0, 1, 1, 2], [0], [0]>} : vector<3x8x8xf32>, vector<3x8x8xf32>, vector<3x8x8xf32> -> vector<3x8x8xf32>
    "tpu.trace_stop"() : () -> ()
    %506 = vector.shape_cast %505 : vector<3x8x8xf32> to vector<24x8xf32>
    %507 = arith.truncf %506 : vector<24x8xf32> to vector<24x8xbf16>
    %c1_357 = arith.constant 1 : index
    %c3_358 = arith.constant 3 : index
    %c0_359 = arith.constant 0 : index
    %c0_360 = arith.constant 0 : index
    %508 = vector.load %arg13[%c1_357, %c3_358, %c0_359, %c0_360] : memref<2x4x8x32xbf16, #tpu.memory_space<vmem>>, vector<1x1x8x32xbf16>
    %509 = vector.shape_cast %508 : vector<1x1x8x32xbf16> to vector<8x32xbf16>
    %cst_361 = arith.constant dense<0.000000e+00> : vector<24x32xf32>
    %510 = tpu.matmul %507, %509, %cst_361 {dimension_numbers = #tpu.dot_dimension_numbers<[1], [0], [0], [1], [0, 0, 1, 1], [], []>} : vector<24x8xbf16>, vector<8x32xbf16>, vector<24x32xf32> -> vector<24x32xf32>
    %511 = arith.addf %465, %510 : vector<24x32xf32>
    %512 = arith.addf %299, %511 : vector<24x32xf32>
    %c1_362 = arith.constant 1 : index
    %c0_363 = arith.constant 0 : index
    %c0_364 = arith.constant 0 : index
    %513 = vector.load %arg14[%c1_362, %c0_363, %c0_364] : memref<2x1x32xf32, #tpu.memory_space<vmem>>, vector<1x1x32xf32>
    %514 = vector.shape_cast %513 : vector<1x1x32xf32> to vector<1x32xf32>
    %515 = vector.broadcast %514 : vector<1x32xf32> to vector<24x32xf32>
    %516 = arith.addf %512, %515 : vector<24x32xf32>
    %c1_365 = arith.constant 1 : index
    %c0_366 = arith.constant 0 : index
    %c0_367 = arith.constant 0 : index
    %517 = vector.load %arg15[%c1_365, %c0_366, %c0_367] : memref<2x1x32xf32, #tpu.memory_space<vmem>>, vector<1x1x32xf32>
    %518 = vector.shape_cast %517 : vector<1x1x32xf32> to vector<1x32xf32>
    %c1_368 = arith.constant 1 : index
    %c0_369 = arith.constant 0 : index
    %c0_370 = arith.constant 0 : index
    %519 = vector.load %arg16[%c1_368, %c0_369, %c0_370] : memref<2x1x32xf32, #tpu.memory_space<vmem>>, vector<1x1x32xf32>
    %520 = vector.shape_cast %519 : vector<1x1x32xf32> to vector<1x32xf32>
    %cst_371 = arith.constant dense<0.000000e+00> : vector<24xf32>
    %521 = vector.multi_reduction <add>, %516, %cst_371 [1] : vector<24x32xf32> to vector<24xf32>
    %522 = vector.shape_cast %521 : vector<24xf32> to vector<24x1xf32>
    %cst_372 = arith.constant 3.200000e+01 : f32
    %523 = vector.broadcast %cst_372 : f32 to vector<24x1xf32>
    %524 = arith.divf %522, %523 : vector<24x1xf32>
    %525 = vector.broadcast %524 : vector<24x1xf32> to vector<24x32xf32>
    %526 = arith.subf %516, %525 : vector<24x32xf32>
    %527 = arith.mulf %526, %526 : vector<24x32xf32>
    %cst_373 = arith.constant dense<0.000000e+00> : vector<24xf32>
    %528 = vector.multi_reduction <add>, %527, %cst_373 [1] : vector<24x32xf32> to vector<24xf32>
    %529 = vector.shape_cast %528 : vector<24xf32> to vector<24x1xf32>
    %cst_374 = arith.constant 3.200000e+01 : f32
    %530 = vector.broadcast %cst_374 : f32 to vector<24x1xf32>
    %531 = arith.divf %529, %530 : vector<24x1xf32>
    %532 = vector.broadcast %524 : vector<24x1xf32> to vector<24x32xf32>
    %533 = arith.subf %516, %532 : vector<24x32xf32>
    %cst_375 = arith.constant 9.99999974E-6 : f32
    %534 = vector.broadcast %cst_375 : f32 to vector<24x1xf32>
    %535 = arith.addf %531, %534 : vector<24x1xf32>
    %536 = math.rsqrt %535 : vector<24x1xf32>
    %537 = vector.broadcast %536 : vector<24x1xf32> to vector<24x32xf32>
    %538 = arith.mulf %533, %537 : vector<24x32xf32>
    %539 = vector.broadcast %518 : vector<1x32xf32> to vector<24x32xf32>
    %540 = arith.mulf %538, %539 : vector<24x32xf32>
    %541 = vector.broadcast %520 : vector<1x32xf32> to vector<24x32xf32>
    %542 = arith.addf %540, %541 : vector<24x32xf32>
    %543 = arith.truncf %542 : vector<24x32xf32> to vector<24x32xbf16>
    %c1_376 = arith.constant 1 : index
    %c0_377 = arith.constant 0 : index
    %c0_378 = arith.constant 0 : index
    %544 = vector.load %arg17[%c1_376, %c0_377, %c0_378] : memref<2x32x128xbf16, #tpu.memory_space<vmem>>, vector<1x32x128xbf16>
    %545 = vector.shape_cast %544 : vector<1x32x128xbf16> to vector<32x128xbf16>
    %cst_379 = arith.constant dense<0.000000e+00> : vector<24x128xf32>
    %546 = tpu.matmul %543, %545, %cst_379 {dimension_numbers = #tpu.dot_dimension_numbers<[1], [0], [0], [1], [0, 0, 1, 1], [], []>} : vector<24x32xbf16>, vector<32x128xbf16>, vector<24x128xf32> -> vector<24x128xf32>
    %c1_380 = arith.constant 1 : index
    %c0_381 = arith.constant 0 : index
    %c0_382 = arith.constant 0 : index
    %547 = vector.load %arg18[%c1_380, %c0_381, %c0_382] : memref<2x1x128xf32, #tpu.memory_space<vmem>>, vector<1x1x128xf32>
    %548 = vector.shape_cast %547 : vector<1x1x128xf32> to vector<1x128xf32>
    %549 = vector.broadcast %548 : vector<1x128xf32> to vector<24x128xf32>
    %550 = arith.addf %546, %549 : vector<24x128xf32>
    %551 = arith.mulf %550, %550 : vector<24x128xf32>
    %552 = arith.mulf %550, %551 : vector<24x128xf32>
    %cst_383 = arith.constant 4.471500e-02 : f32
    %553 = vector.broadcast %cst_383 : f32 to vector<24x128xf32>
    %554 = arith.mulf %553, %552 : vector<24x128xf32>
    %555 = arith.addf %550, %554 : vector<24x128xf32>
    %cst_384 = arith.constant 0.797884583 : f32
    %556 = vector.broadcast %cst_384 : f32 to vector<24x128xf32>
    %557 = arith.mulf %556, %555 : vector<24x128xf32>
    %558 = math.tanh %557 : vector<24x128xf32>
    %cst_385 = arith.constant 1.000000e+00 : f32
    %559 = vector.broadcast %cst_385 : f32 to vector<24x128xf32>
    %560 = arith.addf %559, %558 : vector<24x128xf32>
    %cst_386 = arith.constant 5.000000e-01 : f32
    %561 = vector.broadcast %cst_386 : f32 to vector<24x128xf32>
    %562 = arith.mulf %561, %560 : vector<24x128xf32>
    %563 = arith.mulf %550, %562 : vector<24x128xf32>
    %564 = arith.truncf %563 : vector<24x128xf32> to vector<24x128xbf16>
    %c1_387 = arith.constant 1 : index
    %c0_388 = arith.constant 0 : index
    %c0_389 = arith.constant 0 : index
    %565 = vector.load %arg19[%c1_387, %c0_388, %c0_389] : memref<2x128x32xbf16, #tpu.memory_space<vmem>>, vector<1x128x32xbf16>
    %566 = vector.shape_cast %565 : vector<1x128x32xbf16> to vector<128x32xbf16>
    %cst_390 = arith.constant dense<0.000000e+00> : vector<24x32xf32>
    %567 = tpu.matmul %564, %566, %cst_390 {dimension_numbers = #tpu.dot_dimension_numbers<[1], [0], [0], [1], [0, 0, 1, 1], [], []>} : vector<24x128xbf16>, vector<128x32xbf16>, vector<24x32xf32> -> vector<24x32xf32>
    %568 = arith.addf %516, %567 : vector<24x32xf32>
    %c1_391 = arith.constant 1 : index
    %c0_392 = arith.constant 0 : index
    %c0_393 = arith.constant 0 : index
    %569 = vector.load %arg20[%c1_391, %c0_392, %c0_393] : memref<2x1x32xf32, #tpu.memory_space<vmem>>, vector<1x1x32xf32>
    %570 = vector.shape_cast %569 : vector<1x1x32xf32> to vector<1x32xf32>
    %571 = vector.broadcast %570 : vector<1x32xf32> to vector<24x32xf32>
    %572 = arith.addf %568, %571 : vector<24x32xf32>
    %c0_394 = arith.constant 0 : index
    %c0_395 = arith.constant 0 : index
    %573 = vector.load %arg21[%c0_394, %c0_395] : memref<1x32xf32, #tpu.memory_space<vmem>>, vector<1x32xf32>
    %c0_396 = arith.constant 0 : index
    %c0_397 = arith.constant 0 : index
    %574 = vector.load %arg22[%c0_396, %c0_397] : memref<1x32xf32, #tpu.memory_space<vmem>>, vector<1x32xf32>
    %cst_398 = arith.constant dense<0.000000e+00> : vector<24xf32>
    %575 = vector.multi_reduction <add>, %572, %cst_398 [1] : vector<24x32xf32> to vector<24xf32>
    %576 = vector.shape_cast %575 : vector<24xf32> to vector<24x1xf32>
    %cst_399 = arith.constant 3.200000e+01 : f32
    %577 = vector.broadcast %cst_399 : f32 to vector<24x1xf32>
    %578 = arith.divf %576, %577 : vector<24x1xf32>
    %579 = vector.broadcast %578 : vector<24x1xf32> to vector<24x32xf32>
    %580 = arith.subf %572, %579 : vector<24x32xf32>
    %581 = arith.mulf %580, %580 : vector<24x32xf32>
    %cst_400 = arith.constant dense<0.000000e+00> : vector<24xf32>
    %582 = vector.multi_reduction <add>, %581, %cst_400 [1] : vector<24x32xf32> to vector<24xf32>
    %583 = vector.shape_cast %582 : vector<24xf32> to vector<24x1xf32>
    %cst_401 = arith.constant 3.200000e+01 : f32
    %584 = vector.broadcast %cst_401 : f32 to vector<24x1xf32>
    %585 = arith.divf %583, %584 : vector<24x1xf32>
    %586 = vector.broadcast %578 : vector<24x1xf32> to vector<24x32xf32>
    %587 = arith.subf %572, %586 : vector<24x32xf32>
    %cst_402 = arith.constant 9.99999974E-6 : f32
    %588 = vector.broadcast %cst_402 : f32 to vector<24x1xf32>
    %589 = arith.addf %585, %588 : vector<24x1xf32>
    %590 = math.rsqrt %589 : vector<24x1xf32>
    %591 = vector.broadcast %590 : vector<24x1xf32> to vector<24x32xf32>
    %592 = arith.mulf %587, %591 : vector<24x32xf32>
    %593 = vector.broadcast %573 : vector<1x32xf32> to vector<24x32xf32>
    %594 = arith.mulf %592, %593 : vector<24x32xf32>
    %595 = vector.broadcast %574 : vector<1x32xf32> to vector<24x32xf32>
    %596 = arith.addf %594, %595 : vector<24x32xf32>
    %597 = arith.truncf %596 : vector<24x32xf32> to vector<24x32xbf16>
    %c0_403 = arith.constant 0 : index
    %c0_404 = arith.constant 0 : index
    %598 = vector.load %arg23[%c0_403, %c0_404] : memref<32x32xbf16, #tpu.memory_space<vmem>>, vector<32x32xbf16>
    %cst_405 = arith.constant dense<0.000000e+00> : vector<24x32xf32>
    %599 = tpu.matmul %597, %598, %cst_405 {dimension_numbers = #tpu.dot_dimension_numbers<[1], [0], [0], [1], [0, 0, 1, 1], [], []>} : vector<24x32xbf16>, vector<32x32xbf16>, vector<24x32xf32> -> vector<24x32xf32>
    %c0_406 = arith.constant 0 : index
    %c0_407 = arith.constant 0 : index
    %600 = vector.load %arg24[%c0_406, %c0_407] : memref<1x32xf32, #tpu.memory_space<vmem>>, vector<1x32xf32>
    %601 = vector.broadcast %600 : vector<1x32xf32> to vector<24x32xf32>
    %602 = arith.addf %599, %601 : vector<24x32xf32>
    %603 = arith.mulf %602, %602 : vector<24x32xf32>
    %604 = arith.mulf %602, %603 : vector<24x32xf32>
    %cst_408 = arith.constant 4.471500e-02 : f32
    %605 = vector.broadcast %cst_408 : f32 to vector<24x32xf32>
    %606 = arith.mulf %605, %604 : vector<24x32xf32>
    %607 = arith.addf %602, %606 : vector<24x32xf32>
    %cst_409 = arith.constant 0.797884583 : f32
    %608 = vector.broadcast %cst_409 : f32 to vector<24x32xf32>
    %609 = arith.mulf %608, %607 : vector<24x32xf32>
    %610 = math.tanh %609 : vector<24x32xf32>
    %cst_410 = arith.constant 1.000000e+00 : f32
    %611 = vector.broadcast %cst_410 : f32 to vector<24x32xf32>
    %612 = arith.addf %611, %610 : vector<24x32xf32>
    %cst_411 = arith.constant 5.000000e-01 : f32
    %613 = vector.broadcast %cst_411 : f32 to vector<24x32xf32>
    %614 = arith.mulf %613, %612 : vector<24x32xf32>
    %615 = arith.mulf %602, %614 : vector<24x32xf32>
    %c0_412 = arith.constant 0 : index
    %c0_413 = arith.constant 0 : index
    %616 = vector.load %arg25[%c0_412, %c0_413] : memref<1x32xf32, #tpu.memory_space<vmem>>, vector<1x32xf32>
    %c0_414 = arith.constant 0 : index
    %c0_415 = arith.constant 0 : index
    %617 = vector.load %arg26[%c0_414, %c0_415] : memref<1x32xf32, #tpu.memory_space<vmem>>, vector<1x32xf32>
    %cst_416 = arith.constant dense<0.000000e+00> : vector<24xf32>
    %618 = vector.multi_reduction <add>, %615, %cst_416 [1] : vector<24x32xf32> to vector<24xf32>
    %619 = vector.shape_cast %618 : vector<24xf32> to vector<24x1xf32>
    %cst_417 = arith.constant 3.200000e+01 : f32
    %620 = vector.broadcast %cst_417 : f32 to vector<24x1xf32>
    %621 = arith.divf %619, %620 : vector<24x1xf32>
    %622 = vector.broadcast %621 : vector<24x1xf32> to vector<24x32xf32>
    %623 = arith.subf %615, %622 : vector<24x32xf32>
    %624 = arith.mulf %623, %623 : vector<24x32xf32>
    %cst_418 = arith.constant dense<0.000000e+00> : vector<24xf32>
    %625 = vector.multi_reduction <add>, %624, %cst_418 [1] : vector<24x32xf32> to vector<24xf32>
    %626 = vector.shape_cast %625 : vector<24xf32> to vector<24x1xf32>
    %cst_419 = arith.constant 3.200000e+01 : f32
    %627 = vector.broadcast %cst_419 : f32 to vector<24x1xf32>
    %628 = arith.divf %626, %627 : vector<24x1xf32>
    %629 = vector.broadcast %621 : vector<24x1xf32> to vector<24x32xf32>
    %630 = arith.subf %615, %629 : vector<24x32xf32>
    %cst_420 = arith.constant 9.99999974E-6 : f32
    %631 = vector.broadcast %cst_420 : f32 to vector<24x1xf32>
    %632 = arith.addf %628, %631 : vector<24x1xf32>
    %633 = math.rsqrt %632 : vector<24x1xf32>
    %634 = vector.broadcast %633 : vector<24x1xf32> to vector<24x32xf32>
    %635 = arith.mulf %630, %634 : vector<24x32xf32>
    %636 = vector.broadcast %616 : vector<1x32xf32> to vector<24x32xf32>
    %637 = arith.mulf %635, %636 : vector<24x32xf32>
    %638 = vector.broadcast %617 : vector<1x32xf32> to vector<24x32xf32>
    %639 = arith.addf %637, %638 : vector<24x32xf32>
    %640 = arith.truncf %639 : vector<24x32xf32> to vector<24x32xbf16>
    %c0_421 = arith.constant 0 : index
    %c0_422 = arith.constant 0 : index
    %641 = vector.load %arg27[%c0_421, %c0_422] : memref<32x128xbf16, #tpu.memory_space<vmem>>, vector<32x128xbf16>
    %cst_423 = arith.constant dense<0.000000e+00> : vector<24x128xf32>
    %642 = tpu.matmul %640, %641, %cst_423 {dimension_numbers = #tpu.dot_dimension_numbers<[1], [0], [0], [1], [0, 0, 1, 1], [], []>} : vector<24x32xbf16>, vector<32x128xbf16>, vector<24x128xf32> -> vector<24x128xf32>
    %c0_424 = arith.constant 0 : index
    %c0_425 = arith.constant 0 : index
    %643 = vector.load %arg28[%c0_424, %c0_425] : memref<1x128xf32, #tpu.memory_space<vmem>>, vector<1x128xf32>
    %644 = vector.broadcast %643 : vector<1x128xf32> to vector<24x128xf32>
    %645 = arith.addf %642, %644 : vector<24x128xf32>
    %646 = vector.shape_cast %645 : vector<24x128xf32> to vector<3x8x128xf32>
    %c0_426 = arith.constant 0 : index
    %c0_427 = arith.constant 0 : index
    %c0_428 = arith.constant 0 : index
    %647 = vector.load %arg29[%c0_426, %c0_427, %c0_428] : memref<3x8x128xf32, #tpu.memory_space<vmem>>, vector<3x8x128xf32>
    tpu.vector_store %arg29[%c0_426, %c0_427, %c0_428], %646 {strides = array<i32>} : memref<3x8x128xf32, #tpu.memory_space<vmem>>, vector<3x8x128xf32>,
    return
  }
  func.func @transform_0(%arg0: i32) -> (i32, i32, i32) {
    %c0_i32 = arith.constant 0 : i32
    %c0_i32_0 = arith.constant 0 : i32
    %c0_i32_1 = arith.constant 0 : i32
    return %arg0, %c0_i32, %c0_i32_0 : i32, i32, i32
  }
  func.func @transform_1(%arg0: i32) -> (i32, i32, i32) {
    %c0_i32 = arith.constant 0 : i32
    %c0_i32_0 = arith.constant 0 : i32
    %c0_i32_1 = arith.constant 0 : i32
    return %arg0, %c0_i32, %c0_i32_0 : i32, i32, i32
  }
  func.func @transform_2(%arg0: i32) -> (i32, i32) {
    %c0_i32 = arith.constant 0 : i32
    %c0_i32_0 = arith.constant 0 : i32
    %c0_i32_1 = arith.constant 0 : i32
    return %c0_i32, %c0_i32_0 : i32, i32
  }
  func.func @transform_3(%arg0: i32) -> (i32, i32) {
    %c0_i32 = arith.constant 0 : i32
    %c0_i32_0 = arith.constant 0 : i32
    %c0_i32_1 = arith.constant 0 : i32
    return %c0_i32, %c0_i32_0 : i32, i32
  }
  func.func @transform_4(%arg0: i32) -> (i32, i32, i32) {
    %c0_i32 = arith.constant 0 : i32
    %c0_i32_0 = arith.constant 0 : i32
    %c0_i32_1 = arith.constant 0 : i32
    %c0_i32_2 = arith.constant 0 : i32
    return %c0_i32, %c0_i32_0, %c0_i32_1 : i32, i32, i32
  }
  func.func @transform_5(%arg0: i32) -> (i32, i32, i32) {
    %c0_i32 = arith.constant 0 : i32
    %c0_i32_0 = arith.constant 0 : i32
    %c0_i32_1 = arith.constant 0 : i32
    %c0_i32_2 = arith.constant 0 : i32
    return %c0_i32, %c0_i32_0, %c0_i32_1 : i32, i32, i32
  }
  func.func @transform_6(%arg0: i32) -> (i32, i32, i32, i32) {
    %c0_i32 = arith.constant 0 : i32
    %c0_i32_0 = arith.constant 0 : i32
    %c0_i32_1 = arith.constant 0 : i32
    %c0_i32_2 = arith.constant 0 : i32
    %c0_i32_3 = arith.constant 0 : i32
    return %c0_i32, %c0_i32_0, %c0_i32_1, %c0_i32_2 : i32, i32, i32, i32
  }
  func.func @transform_7(%arg0: i32) -> (i32, i32, i32, i32) {
    %c0_i32 = arith.constant 0 : i32
    %c0_i32_0 = arith.constant 0 : i32
    %c0_i32_1 = arith.constant 0 : i32
    %c0_i32_2 = arith.constant 0 : i32
    %c0_i32_3 = arith.constant 0 : i32
    return %c0_i32, %c0_i32_0, %c0_i32_1, %c0_i32_2 : i32, i32, i32, i32
  }
  func.func @transform_8(%arg0: i32) -> (i32, i32, i32, i32) {
    %c0_i32 = arith.constant 0 : i32
    %c0_i32_0 = arith.constant 0 : i32
    %c0_i32_1 = arith.constant 0 : i32
    %c0_i32_2 = arith.constant 0 : i32
    %c0_i32_3 = arith.constant 0 : i32
    return %c0_i32, %c0_i32_0, %c0_i32_1, %c0_i32_2 : i32, i32, i32, i32
  }
  func.func @transform_9(%arg0: i32) -> (i32, i32, i32, i32) {
    %c0_i32 = arith.constant 0 : i32
    %c0_i32_0 = arith.constant 0 : i32
    %c0_i32_1 = arith.constant 0 : i32
    %c0_i32_2 = arith.constant 0 : i32
    %c0_i32_3 = arith.constant 0 : i32
    return %c0_i32, %c0_i32_0, %c0_i32_1, %c0_i32_2 : i32, i32, i32, i32
  }
  func.func @transform_10(%arg0: i32) -> (i32, i32, i32, i32) {
    %c0_i32 = arith.constant 0 : i32
    %c0_i32_0 = arith.constant 0 : i32
    %c0_i32_1 = arith.constant 0 : i32
    %c0_i32_2 = arith.constant 0 : i32
    %c0_i32_3 = arith.constant 0 : i32
    return %c0_i32, %c0_i32_0, %c0_i32_1, %c0_i32_2 : i32, i32, i32, i32
  }
  func.func @transform_11(%arg0: i32) -> (i32, i32, i32, i32) {
    %c0_i32 = arith.constant 0 : i32
    %c0_i32_0 = arith.constant 0 : i32
    %c0_i32_1 = arith.constant 0 : i32
    %c0_i32_2 = arith.constant 0 : i32
    %c0_i32_3 = arith.constant 0 : i32
    return %c0_i32, %c0_i32_0, %c0_i32_1, %c0_i32_2 : i32, i32, i32, i32
  }
  func.func @transform_12(%arg0: i32) -> (i32, i32, i32, i32) {
    %c0_i32 = arith.constant 0 : i32
    %c0_i32_0 = arith.constant 0 : i32
    %c0_i32_1 = arith.constant 0 : i32
    %c0_i32_2 = arith.constant 0 : i32
    %c0_i32_3 = arith.constant 0 : i32
    return %c0_i32, %c0_i32_0, %c0_i32_1, %c0_i32_2 : i32, i32, i32, i32
  }
  func.func @transform_13(%arg0: i32) -> (i32, i32, i32) {
    %c0_i32 = arith.constant 0 : i32
    %c0_i32_0 = arith.constant 0 : i32
    %c0_i32_1 = arith.constant 0 : i32
    %c0_i32_2 = arith.constant 0 : i32
    return %c0_i32, %c0_i32_0, %c0_i32_1 : i32, i32, i32
  }
  func.func @transform_14(%arg0: i32) -> (i32, i32, i32) {
    %c0_i32 = arith.constant 0 : i32
    %c0_i32_0 = arith.constant 0 : i32
    %c0_i32_1 = arith.constant 0 : i32
    %c0_i32_2 = arith.constant 0 : i32
    return %c0_i32, %c0_i32_0, %c0_i32_1 : i32, i32, i32
  }
  func.func @transform_15(%arg0: i32) -> (i32, i32, i32) {
    %c0_i32 = arith.constant 0 : i32
    %c0_i32_0 = arith.constant 0 : i32
    %c0_i32_1 = arith.constant 0 : i32
    %c0_i32_2 = arith.constant 0 : i32
    return %c0_i32, %c0_i32_0, %c0_i32_1 : i32, i32, i32
  }
  func.func @transform_16(%arg0: i32) -> (i32, i32, i32) {
    %c0_i32 = arith.constant 0 : i32
    %c0_i32_0 = arith.constant 0 : i32
    %c0_i32_1 = arith.constant 0 : i32
    %c0_i32_2 = arith.constant 0 : i32
    return %c0_i32, %c0_i32_0, %c0_i32_1 : i32, i32, i32
  }
  func.func @transform_17(%arg0: i32) -> (i32, i32, i32) {
    %c0_i32 = arith.constant 0 : i32
    %c0_i32_0 = arith.constant 0 : i32
    %c0_i32_1 = arith.constant 0 : i32
    %c0_i32_2 = arith.constant 0 : i32
    return %c0_i32, %c0_i32_0, %c0_i32_1 : i32, i32, i32
  }
  func.func @transform_18(%arg0: i32) -> (i32, i32, i32) {
    %c0_i32 = arith.constant 0 : i32
    %c0_i32_0 = arith.constant 0 : i32
    %c0_i32_1 = arith.constant 0 : i32
    %c0_i32_2 = arith.constant 0 : i32
    return %c0_i32, %c0_i32_0, %c0_i32_1 : i32, i32, i32
  }
  func.func @transform_19(%arg0: i32) -> (i32, i32, i32) {
    %c0_i32 = arith.constant 0 : i32
    %c0_i32_0 = arith.constant 0 : i32
    %c0_i32_1 = arith.constant 0 : i32
    %c0_i32_2 = arith.constant 0 : i32
    return %c0_i32, %c0_i32_0, %c0_i32_1 : i32, i32, i32
  }
  func.func @transform_20(%arg0: i32) -> (i32, i32) {
    %c0_i32 = arith.constant 0 : i32
    %c0_i32_0 = arith.constant 0 : i32
    %c0_i32_1 = arith.constant 0 : i32
    return %c0_i32, %c0_i32_0 : i32, i32
  }
  func.func @transform_21(%arg0: i32) -> (i32, i32) {
    %c0_i32 = arith.constant 0 : i32
    %c0_i32_0 = arith.constant 0 : i32
    %c0_i32_1 = arith.constant 0 : i32
    return %c0_i32, %c0_i32_0 : i32, i32
  }
  func.func @transform_22(%arg0: i32) -> (i32, i32) {
    %c0_i32 = arith.constant 0 : i32
    %c0_i32_0 = arith.constant 0 : i32
    %c0_i32_1 = arith.constant 0 : i32
    return %c0_i32, %c0_i32_0 : i32, i32
  }
  func.func @transform_23(%arg0: i32) -> (i32, i32) {
    %c0_i32 = arith.constant 0 : i32
    %c0_i32_0 = arith.constant 0 : i32
    %c0_i32_1 = arith.constant 0 : i32
    return %c0_i32, %c0_i32_0 : i32, i32
  }
  func.func @transform_24(%arg0: i32) -> (i32, i32) {
    %c0_i32 = arith.constant 0 : i32
    %c0_i32_0 = arith.constant 0 : i32
    %c0_i32_1 = arith.constant 0 : i32
    return %c0_i32, %c0_i32_0 : i32, i32
  }
  func.func @transform_25(%arg0: i32) -> (i32, i32) {
    %c0_i32 = arith.constant 0 : i32
    %c0_i32_0 = arith.constant 0 : i32
    %c0_i32_1 = arith.constant 0 : i32
    return %c0_i32, %c0_i32_0 : i32, i32
  }
  func.func @transform_26(%arg0: i32) -> (i32, i32) {
    %c0_i32 = arith.constant 0 : i32
    %c0_i32_0 = arith.constant 0 : i32
    %c0_i32_1 = arith.constant 0 : i32
    return %c0_i32, %c0_i32_0 : i32, i32
  }
  func.func @transform_27(%arg0: i32) -> (i32, i32) {
    %c0_i32 = arith.constant 0 : i32
    %c0_i32_0 = arith.constant 0 : i32
    %c0_i32_1 = arith.constant 0 : i32
    return %c0_i32, %c0_i32_0 : i32, i32
  }
  func.func @transform_28(%arg0: i32) -> (i32, i32, i32) {
    %c0_i32 = arith.constant 0 : i32
    %c0_i32_0 = arith.constant 0 : i32
    %c0_i32_1 = arith.constant 0 : i32
    return %arg0, %c0_i32, %c0_i32_0 : i32, i32, i32
  }
}

</mosaic_0001>

<llo_original>
// kernel: simplm_forward.1
$region0: #{simplm_forward.1}
  #allocation0 [shape = 'u32[]', space=smem, size = 0x4, offset = 0x4, fixed_abs, tag = 'smem constant byte address 0x4 - core index']
  #allocation1 [shape = 'u32[72,128]{1,0:T(1,128)}', space=vmem, size = 0x9000, scoped, tag = 'internal scratch']
  %s0 = inlined_call_operand.vmem [shape: f32[6,8,32], index: 0, kind: input, shape index: {}]
  %s1 = inlined_call_operand.vmem [shape: f32[6,1,8], index: 1, kind: input, shape index: {}]
  %s2 = inlined_call_operand.vmem [shape: f32[1,32], index: 2, kind: input, shape index: {}]
  %s3 = inlined_call_operand.vmem [shape: f32[1,32], index: 3, kind: input, shape index: {}]
  %s4 = inlined_call_operand.vmem [shape: f32[2,1,32], index: 4, kind: input, shape index: {}]
  %s5 = inlined_call_operand.vmem [shape: f32[2,1,32], index: 5, kind: input, shape index: {}]
  %s6 = inlined_call_operand.vmem [shape: bf16[2,4,32,8], index: 6, kind: input, shape index: {}]
  %s7 = inlined_call_operand.vmem [shape: f32[2,4,1,8], index: 7, kind: input, shape index: {}]
  %s8 = inlined_call_operand.vmem [shape: bf16[2,4,32,8], index: 8, kind: input, shape index: {}]
  %s9 = inlined_call_operand.vmem [shape: f32[2,4,1,8], index: 9, kind: input, shape index: {}]
  %s10 = inlined_call_operand.vmem [shape: bf16[2,4,32,8], index: 10, kind: input, shape index: {}]
  %s11 = inlined_call_operand.vmem [shape: f32[2,4,1,8], index: 11, kind: input, shape index: {}]
  %s12 = inlined_call_operand.vmem [shape: bf16[2,4,8,32], index: 12, kind: input, shape index: {}]
  %s13 = inlined_call_operand.vmem [shape: f32[2,1,32], index: 13, kind: input, shape index: {}]
  %s14 = inlined_call_operand.vmem [shape: f32[2,1,32], index: 14, kind: input, shape index: {}]
  %s15 = inlined_call_operand.vmem [shape: f32[2,1,32], index: 15, kind: input, shape index: {}]
  %s16 = inlined_call_operand.vmem [shape: bf16[2,32,128], index: 16, kind: input, shape index: {}]
  %s17 = inlined_call_operand.vmem [shape: f32[2,1,128], index: 17, kind: input, shape index: {}]
  %s18 = inlined_call_operand.vmem [shape: bf16[2,128,32], index: 18, kind: input, shape index: {}]
  %s19 = inlined_call_operand.vmem [shape: f32[2,1,32], index: 19, kind: input, shape index: {}]
  %s20 = inlined_call_operand.vmem [shape: f32[1,32], index: 20, kind: input, shape index: {}]
  %s21 = inlined_call_operand.vmem [shape: f32[1,32], index: 21, kind: input, shape index: {}]
  %s22 = inlined_call_operand.vmem [shape: bf16[32,32], index: 22, kind: input, shape index: {}]
  %s23 = inlined_call_operand.vmem [shape: f32[1,32], index: 23, kind: input, shape index: {}]
  %s24 = inlined_call_operand.vmem [shape: f32[1,32], index: 24, kind: input, shape index: {}]
  %s25 = inlined_call_operand.vmem [shape: f32[1,32], index: 25, kind: input, shape index: {}]
  %s26 = inlined_call_operand.vmem [shape: bf16[32,128], index: 26, kind: input, shape index: {}]
  %s27 = inlined_call_operand.vmem [shape: f32[1,128], index: 27, kind: input, shape index: {}]
  %s28 = inlined_call_operand.vmem [shape: f32[6,8,128], index: 28, kind: output, shape index: {}]
  %s29 = sld [smem:[#allocation0]]
  $region145: #{simplm_forward.1} parent=0
    _
  %s31 = ssub.s32 1, %s29
  %s32 = scalar_select 0, %s31, %s29
  loop: start=0, step=1, limit=4
  $region2: #{simplm_forward.1} parent=0 // loop_pre_header
    _
  $region3: #{simplm_forward.1} parent=0 // loop_header
    %s34 = sphi 0, %s38
    %p35 = scmp.ge.s32.totalorder %s34, 4
    %s44 = sphi 0, %s46
    %s47 = sphi 0, %s44
    %s48 = sphi 0, %s47
    %s64 = sphi 0, %s48
    %s70 = sphi 0, %s72
    %s73 = sphi 0, %s70
    %s74 = sphi 0, %s73
    %s90 = sphi 0, %s74
    %s94 = sphi 0, %s94
    %s96 = sphi 0, %s94
    %s97 = sphi 0, %s96
    %s111 = sphi 0, %s97
    %s115 = sphi 0, %s115
    %s117 = sphi 0, %s115
    %s118 = sphi 0, %s117
    %s132 = sphi 0, %s118
    %s136 = sphi 0, %s136
    %s138 = sphi 0, %s136
    %s139 = sphi 0, %s138
    %s153 = sphi 0, %s139
    %s157 = sphi 0, %s157
    %s159 = sphi 0, %s157
    %s160 = sphi 0, %s159
    %s174 = sphi 0, %s160
    %s178 = sphi 0, %s178
    %s180 = sphi 0, %s178
    %s181 = sphi 0, %s180
    %s195 = sphi 0, %s181
    %s199 = sphi 0, %s199
    %s201 = sphi 0, %s199
    %s202 = sphi 0, %s201
    %s216 = sphi 0, %s202
    %s220 = sphi 0, %s220
    %s222 = sphi 0, %s220
    %s223 = sphi 0, %s222
    %s237 = sphi 0, %s223
    %s241 = sphi 0, %s241
    %s243 = sphi 0, %s241
    %s244 = sphi 0, %s243
    %s258 = sphi 0, %s244
    %s262 = sphi 0, %s262
    %s264 = sphi 0, %s262
    %s265 = sphi 0, %s264
    %s279 = sphi 0, %s265
    %s283 = sphi 0, %s283
    %s285 = sphi 0, %s283
    %s286 = sphi 0, %s285
    %s300 = sphi 0, %s286
    %s304 = sphi 0, %s304
    %s306 = sphi 0, %s304
    %s307 = sphi 0, %s306
    %s321 = sphi 0, %s307
    %s325 = sphi 0, %s325
    %s327 = sphi 0, %s325
    %s328 = sphi 0, %s327
    %s342 = sphi 0, %s328
    %s346 = sphi 0, %s346
    %s348 = sphi 0, %s346
    %s349 = sphi 0, %s348
    %s363 = sphi 0, %s349
    %s367 = sphi 0, %s367
    %s369 = sphi 0, %s367
    %s370 = sphi 0, %s369
    %s384 = sphi 0, %s370
    %s388 = sphi 0, %s388
    %s390 = sphi 0, %s388
    %s391 = sphi 0, %s390
    %s405 = sphi 0, %s391
    %s409 = sphi 0, %s409
    %s411 = sphi 0, %s409
    %s412 = sphi 0, %s411
    %s426 = sphi 0, %s412
    %s430 = sphi 0, %s430
    %s432 = sphi 0, %s430
    %s433 = sphi 0, %s432
    %s447 = sphi 0, %s433
    %s451 = sphi 0, %s451
    %s453 = sphi 0, %s451
    %s454 = sphi 0, %s453
    %s468 = sphi 0, %s454
    %s472 = sphi 0, %s472
    %s474 = sphi 0, %s472
    %s475 = sphi 0, %s474
    %s489 = sphi 0, %s475
    %s493 = sphi 0, %s493
    %s495 = sphi 0, %s493
    %s496 = sphi 0, %s495
    %s510 = sphi 0, %s496
    %s514 = sphi 0, %s514
    %s516 = sphi 0, %s514
    %s517 = sphi 0, %s516
    %s531 = sphi 0, %s517
    %s535 = sphi 0, %s535
    %s537 = sphi 0, %s535
    %s538 = sphi 0, %s537
    %s552 = sphi 0, %s538
    %s556 = sphi 0, %s556
    %s558 = sphi 0, %s556
    %s559 = sphi 0, %s558
    %s573 = sphi 0, %s559
    %s577 = sphi 0, %s577
    %s579 = sphi 0, %s577
    %s580 = sphi 0, %s579
    %s594 = sphi 0, %s580
    %s598 = sphi 0, %s598
    %s600 = sphi 0, %s598
    %s601 = sphi 0, %s600
    %s615 = sphi 0, %s601
    %s619 = sphi 0, %s619
    %s621 = sphi 0, %s619
    %s622 = sphi 0, %s621
    %s636 = sphi 0, %s622
    %s642 = sphi 0, %s644
    %s645 = sphi 0, %s642
    %s646 = sphi 0, %s645
    %s662 = sphi 0, %s646
  $region4: #{simplm_forward.1} parent=0 // loop_header_branch
    %37 = sbr.rel (%p35) target = $region8
  $region5: #{simplm_forward.1} parent=0 // loop_body
    %s39 = ssub.s32 %s34, 1
    %s40 = ssub.s32 %s34, 2
    %s41 = sadd.s32 %s34, 1
    %s42 = ssub.s32 %s34, %s41
    %p43 = scmp.eq.s32.totalorder %s42, 0
    %s45 = sadd.s32 %s44, 1
    %s46 = scalar_select %p43, %s44, %s45
    %p49 = pneg %p43
    %p50 = scmp.eq.s32.totalorder %s34, 1
    %p51 = por %p49, %p50
    %p52 = scmp.ne.s32.totalorder %s44, %s47
    %p53 = scmp.eq.s32.totalorder %s34, 0
    %p54 = por %p52, %p53
    %p55 = scmp.ne.s32.totalorder %s44, %s47
    %p56 = scmp.eq.s32.totalorder %s39, 1
    %p57 = por %p55, %p56
    %p58 = scmp.ne.s32.totalorder %s47, %s48
    %p59 = scmp.eq.s32.totalorder %s39, 0
    %p60 = por %p58, %p59
    %p61 = scmp.ne.s32.totalorder %s47, %s48
    %p62 = scmp.eq.s32.totalorder %s40, 1
    %p63 = por %p61, %p62
    %p65 = scmp.ne.s32.totalorder %s48, %s64
    %p66 = scmp.eq.s32.totalorder %s40, 0
    %p67 = por %p65, %p66
    %s68 = ssub.s32 %s34, %s41
    %p69 = scmp.eq.s32.totalorder %s68, 0
    %s71 = sadd.s32 %s70, 1
    %s72 = scalar_select %p69, %s70, %s71
    %p75 = pneg %p69
    %p76 = scmp.eq.s32.totalorder %s34, 1
    %p77 = por %p75, %p76
    %p78 = scmp.ne.s32.totalorder %s70, %s73
    %p79 = scmp.eq.s32.totalorder %s34, 0
    %p80 = por %p78, %p79
    %p81 = scmp.ne.s32.totalorder %s70, %s73
    %p82 = scmp.eq.s32.totalorder %s39, 1
    %p83 = por %p81, %p82
    %p84 = scmp.ne.s32.totalorder %s73, %s74
    %p85 = scmp.eq.s32.totalorder %s39, 0
    %p86 = por %p84, %p85
    %p87 = scmp.ne.s32.totalorder %s73, %s74
    %p88 = scmp.eq.s32.totalorder %s40, 1
    %p89 = por %p87, %p88
    %p91 = scmp.ne.s32.totalorder %s74, %s90
    %p92 = scmp.eq.s32.totalorder %s40, 0
    %p93 = por %p91, %p92
    %s95 = sadd.s32 %s94, 1
    %p98 = scmp.eq.s32.totalorder %s34, 1
    %p99 = scmp.ne.s32.totalorder %s94, %s96
    %p100 = scmp.eq.s32.totalorder %s34, 0
    %p101 = por %p99, %p100
    %p102 = scmp.ne.s32.totalorder %s94, %s96
    %p103 = scmp.eq.s32.totalorder %s39, 1
    %p104 = por %p102, %p103
    %p105 = scmp.ne.s32.totalorder %s96, %s97
    %p106 = scmp.eq.s32.totalorder %s39, 0
    %p107 = por %p105, %p106
    %p108 = scmp.ne.s32.totalorder %s96, %s97
    %p109 = scmp.eq.s32.totalorder %s40, 1
    %p110 = por %p108, %p109
    %p112 = scmp.ne.s32.totalorder %s97, %s111
    %p113 = scmp.eq.s32.totalorder %s40, 0
    %p114 = por %p112, %p113
    %s116 = sadd.s32 %s115, 1
    %p119 = scmp.eq.s32.totalorder %s34, 1
    %p120 = scmp.ne.s32.totalorder %s115, %s117
    %p121 = scmp.eq.s32.totalorder %s34, 0
    %p122 = por %p120, %p121
    %p123 = scmp.ne.s32.totalorder %s115, %s117
    %p124 = scmp.eq.s32.totalorder %s39, 1
    %p125 = por %p123, %p124
    %p126 = scmp.ne.s32.totalorder %s117, %s118
    %p127 = scmp.eq.s32.totalorder %s39, 0
    %p128 = por %p126, %p127
    %p129 = scmp.ne.s32.totalorder %s117, %s118
    %p130 = scmp.eq.s32.totalorder %s40, 1
    %p131 = por %p129, %p130
    %p133 = scmp.ne.s32.totalorder %s118, %s132
    %p134 = scmp.eq.s32.totalorder %s40, 0
    %p135 = por %p133, %p134
    %s137 = sadd.s32 %s136, 1
    %p140 = scmp.eq.s32.totalorder %s34, 1
    %p141 = scmp.ne.s32.totalorder %s136, %s138
    %p142 = scmp.eq.s32.totalorder %s34, 0
    %p143 = por %p141, %p142
    %p144 = scmp.ne.s32.totalorder %s136, %s138
    %p145 = scmp.eq.s32.totalorder %s39, 1
    %p146 = por %p144, %p145
    %p147 = scmp.ne.s32.totalorder %s138, %s139
    %p148 = scmp.eq.s32.totalorder %s39, 0
    %p149 = por %p147, %p148
    %p150 = scmp.ne.s32.totalorder %s138, %s139
    %p151 = scmp.eq.s32.totalorder %s40, 1
    %p152 = por %p150, %p151
    %p154 = scmp.ne.s32.totalorder %s139, %s153
    %p155 = scmp.eq.s32.totalorder %s40, 0
    %p156 = por %p154, %p155
    %s158 = sadd.s32 %s157, 1
    %p161 = scmp.eq.s32.totalorder %s34, 1
    %p162 = scmp.ne.s32.totalorder %s157, %s159
    %p163 = scmp.eq.s32.totalorder %s34, 0
    %p164 = por %p162, %p163
    %p165 = scmp.ne.s32.totalorder %s157, %s159
    %p166 = scmp.eq.s32.totalorder %s39, 1
    %p167 = por %p165, %p166
    %p168 = scmp.ne.s32.totalorder %s159, %s160
    %p169 = scmp.eq.s32.totalorder %s39, 0
    %p170 = por %p168, %p169
    %p171 = scmp.ne.s32.totalorder %s159, %s160
    %p172 = scmp.eq.s32.totalorder %s40, 1
    %p173 = por %p171, %p172
    %p175 = scmp.ne.s32.totalorder %s160, %s174
    %p176 = scmp.eq.s32.totalorder %s40, 0
    %p177 = por %p175, %p176
    %s179 = sadd.s32 %s178, 1
    %p182 = scmp.eq.s32.totalorder %s34, 1
    %p183 = scmp.ne.s32.totalorder %s178, %s180
    %p184 = scmp.eq.s32.totalorder %s34, 0
    %p185 = por %p183, %p184
    %p186 = scmp.ne.s32.totalorder %s178, %s180
    %p187 = scmp.eq.s32.totalorder %s39, 1
    %p188 = por %p186, %p187
    %p189 = scmp.ne.s32.totalorder %s180, %s181
    %p190 = scmp.eq.s32.totalorder %s39, 0
    %p191 = por %p189, %p190
    %p192 = scmp.ne.s32.totalorder %s180, %s181
    %p193 = scmp.eq.s32.totalorder %s40, 1
    %p194 = por %p192, %p193
    %p196 = scmp.ne.s32.totalorder %s181, %s195
    %p197 = scmp.eq.s32.totalorder %s40, 0
    %p198 = por %p196, %p197
    %s200 = sadd.s32 %s199, 1
    %p203 = scmp.eq.s32.totalorder %s34, 1
    %p204 = scmp.ne.s32.totalorder %s199, %s201
    %p205 = scmp.eq.s32.totalorder %s34, 0
    %p206 = por %p204, %p205
    %p207 = scmp.ne.s32.totalorder %s199, %s201
    %p208 = scmp.eq.s32.totalorder %s39, 1
    %p209 = por %p207, %p208
    %p210 = scmp.ne.s32.totalorder %s201, %s202
    %p211 = scmp.eq.s32.totalorder %s39, 0
    %p212 = por %p210, %p211
    %p213 = scmp.ne.s32.totalorder %s201, %s202
    %p214 = scmp.eq.s32.totalorder %s40, 1
    %p215 = por %p213, %p214
    %p217 = scmp.ne.s32.totalorder %s202, %s216
    %p218 = scmp.eq.s32.totalorder %s40, 0
    %p219 = por %p217, %p218
    %s221 = sadd.s32 %s220, 1
    %p224 = scmp.eq.s32.totalorder %s34, 1
    %p225 = scmp.ne.s32.totalorder %s220, %s222
    %p226 = scmp.eq.s32.totalorder %s34, 0
    %p227 = por %p225, %p226
    %p228 = scmp.ne.s32.totalorder %s220, %s222
    %p229 = scmp.eq.s32.totalorder %s39, 1
    %p230 = por %p228, %p229
    %p231 = scmp.ne.s32.totalorder %s222, %s223
    %p232 = scmp.eq.s32.totalorder %s39, 0
    %p233 = por %p231, %p232
    %p234 = scmp.ne.s32.totalorder %s222, %s223
    %p235 = scmp.eq.s32.totalorder %s40, 1
    %p236 = por %p234, %p235
    %p238 = scmp.ne.s32.totalorder %s223, %s237
    %p239 = scmp.eq.s32.totalorder %s40, 0
    %p240 = por %p238, %p239
    %s242 = sadd.s32 %s241, 1
    %p245 = scmp.eq.s32.totalorder %s34, 1
    %p246 = scmp.ne.s32.totalorder %s241, %s243
    %p247 = scmp.eq.s32.totalorder %s34, 0
    %p248 = por %p246, %p247
    %p249 = scmp.ne.s32.totalorder %s241, %s243
    %p250 = scmp.eq.s32.totalorder %s39, 1
    %p251 = por %p249, %p250
    %p252 = scmp.ne.s32.totalorder %s243, %s244
    %p253 = scmp.eq.s32.totalorder %s39, 0
    %p254 = por %p252, %p253
    %p255 = scmp.ne.s32.totalorder %s243, %s244
    %p256 = scmp.eq.s32.totalorder %s40, 1
    %p257 = por %p255, %p256
    %p259 = scmp.ne.s32.totalorder %s244, %s258
    %p260 = scmp.eq.s32.totalorder %s40, 0
    %p261 = por %p259, %p260
    %s263 = sadd.s32 %s262, 1
    %p266 = scmp.eq.s32.totalorder %s34, 1
    %p267 = scmp.ne.s32.totalorder %s262, %s264
    %p268 = scmp.eq.s32.totalorder %s34, 0
    %p269 = por %p267, %p268
    %p270 = scmp.ne.s32.totalorder %s262, %s264
    %p271 = scmp.eq.s32.totalorder %s39, 1
    %p272 = por %p270, %p271
    %p273 = scmp.ne.s32.totalorder %s264, %s265
    %p274 = scmp.eq.s32.totalorder %s39, 0
    %p275 = por %p273, %p274
    %p276 = scmp.ne.s32.totalorder %s264, %s265
    %p277 = scmp.eq.s32.totalorder %s40, 1
    %p278 = por %p276, %p277
    %p280 = scmp.ne.s32.totalorder %s265, %s279
    %p281 = scmp.eq.s32.totalorder %s40, 0
    %p282 = por %p280, %p281
    %s284 = sadd.s32 %s283, 1
    %p287 = scmp.eq.s32.totalorder %s34, 1
    %p288 = scmp.ne.s32.totalorder %s283, %s285
    %p289 = scmp.eq.s32.totalorder %s34, 0
    %p290 = por %p288, %p289
    %p291 = scmp.ne.s32.totalorder %s283, %s285
    %p292 = scmp.eq.s32.totalorder %s39, 1
    %p293 = por %p291, %p292
    %p294 = scmp.ne.s32.totalorder %s285, %s286
    %p295 = scmp.eq.s32.totalorder %s39, 0
    %p296 = por %p294, %p295
    %p297 = scmp.ne.s32.totalorder %s285, %s286
    %p298 = scmp.eq.s32.totalorder %s40, 1
    %p299 = por %p297, %p298
    %p301 = scmp.ne.s32.totalorder %s286, %s300
    %p302 = scmp.eq.s32.totalorder %s40, 0
    %p303 = por %p301, %p302
    %s305 = sadd.s32 %s304, 1
    %p308 = scmp.eq.s32.totalorder %s34, 1
    %p309 = scmp.ne.s32.totalorder %s304, %s306
    %p310 = scmp.eq.s32.totalorder %s34, 0
    %p311 = por %p309, %p310
    %p312 = scmp.ne.s32.totalorder %s304, %s306
    %p313 = scmp.eq.s32.totalorder %s39, 1
    %p314 = por %p312, %p313
    %p315 = scmp.ne.s32.totalorder %s306, %s307
    %p316 = scmp.eq.s32.totalorder %s39, 0
    %p317 = por %p315, %p316
    %p318 = scmp.ne.s32.totalorder %s306, %s307
    %p319 = scmp.eq.s32.totalorder %s40, 1
    %p320 = por %p318, %p319
    %p322 = scmp.ne.s32.totalorder %s307, %s321
    %p323 = scmp.eq.s32.totalorder %s40, 0
    %p324 = por %p322, %p323
    %s326 = sadd.s32 %s325, 1
    %p329 = scmp.eq.s32.totalorder %s34, 1
    %p330 = scmp.ne.s32.totalorder %s325, %s327
    %p331 = scmp.eq.s32.totalorder %s34, 0
    %p332 = por %p330, %p331
    %p333 = scmp.ne.s32.totalorder %s325, %s327
    %p334 = scmp.eq.s32.totalorder %s39, 1
    %p335 = por %p333, %p334
    %p336 = scmp.ne.s32.totalorder %s327, %s328
    %p337 = scmp.eq.s32.totalorder %s39, 0
    %p338 = por %p336, %p337
    %p339 = scmp.ne.s32.totalorder %s327, %s328
    %p340 = scmp.eq.s32.totalorder %s40, 1
    %p341 = por %p339, %p340
    %p343 = scmp.ne.s32.totalorder %s328, %s342
    %p344 = scmp.eq.s32.totalorder %s40, 0
    %p345 = por %p343, %p344
    %s347 = sadd.s32 %s346, 1
    %p350 = scmp.eq.s32.totalorder %s34, 1
    %p351 = scmp.ne.s32.totalorder %s346, %s348
    %p352 = scmp.eq.s32.totalorder %s34, 0
    %p353 = por %p351, %p352
    %p354 = scmp.ne.s32.totalorder %s346, %s348
    %p355 = scmp.eq.s32.totalorder %s39, 1
    %p356 = por %p354, %p355
    %p357 = scmp.ne.s32.totalorder %s348, %s349
    %p358 = scmp.eq.s32.totalorder %s39, 0
    %p359 = por %p357, %p358
    %p360 = scmp.ne.s32.totalorder %s348, %s349
    %p361 = scmp.eq.s32.totalorder %s40, 1
    %p362 = por %p360, %p361
    %p364 = scmp.ne.s32.totalorder %s349, %s363
    %p365 = scmp.eq.s32.totalorder %s40, 0
    %p366 = por %p364, %p365
    %s368 = sadd.s32 %s367, 1
    %p371 = scmp.eq.s32.totalorder %s34, 1
    %p372 = scmp.ne.s32.totalorder %s367, %s369
    %p373 = scmp.eq.s32.totalorder %s34, 0
    %p374 = por %p372, %p373
    %p375 = scmp.ne.s32.totalorder %s367, %s369
    %p376 = scmp.eq.s32.totalorder %s39, 1
    %p377 = por %p375, %p376
    %p378 = scmp.ne.s32.totalorder %s369, %s370
    %p379 = scmp.eq.s32.totalorder %s39, 0
    %p380 = por %p378, %p379
    %p381 = scmp.ne.s32.totalorder %s369, %s370
    %p382 = scmp.eq.s32.totalorder %s40, 1
    %p383 = por %p381, %p382
    %p385 = scmp.ne.s32.totalorder %s370, %s384
    %p386 = scmp.eq.s32.totalorder %s40, 0
    %p387 = por %p385, %p386
    %s389 = sadd.s32 %s388, 1
    %p392 = scmp.eq.s32.totalorder %s34, 1
    %p393 = scmp.ne.s32.totalorder %s388, %s390
    %p394 = scmp.eq.s32.totalorder %s34, 0
    %p395 = por %p393, %p394
    %p396 = scmp.ne.s32.totalorder %s388, %s390
    %p397 = scmp.eq.s32.totalorder %s39, 1
    %p398 = por %p396, %p397
    %p399 = scmp.ne.s32.totalorder %s390, %s391
    %p400 = scmp.eq.s32.totalorder %s39, 0
    %p401 = por %p399, %p400
    %p402 = scmp.ne.s32.totalorder %s390, %s391
    %p403 = scmp.eq.s32.totalorder %s40, 1
    %p404 = por %p402, %p403
    %p406 = scmp.ne.s32.totalorder %s391, %s405
    %p407 = scmp.eq.s32.totalorder %s40, 0
    %p408 = por %p406, %p407
    %s410 = sadd.s32 %s409, 1
    %p413 = scmp.eq.s32.totalorder %s34, 1
    %p414 = scmp.ne.s32.totalorder %s409, %s411
    %p415 = scmp.eq.s32.totalorder %s34, 0
    %p416 = por %p414, %p415
    %p417 = scmp.ne.s32.totalorder %s409, %s411
    %p418 = scmp.eq.s32.totalorder %s39, 1
    %p419 = por %p417, %p418
    %p420 = scmp.ne.s32.totalorder %s411, %s412
    %p421 = scmp.eq.s32.totalorder %s39, 0
    %p422 = por %p420, %p421
    %p423 = scmp.ne.s32.totalorder %s411, %s412
    %p424 = scmp.eq.s32.totalorder %s40, 1
    %p425 = por %p423, %p424
    %p427 = scmp.ne.s32.totalorder %s412, %s426
    %p428 = scmp.eq.s32.totalorder %s40, 0
    %p429 = por %p427, %p428
    %s431 = sadd.s32 %s430, 1
    %p434 = scmp.eq.s32.totalorder %s34, 1
    %p435 = scmp.ne.s32.totalorder %s430, %s432
    %p436 = scmp.eq.s32.totalorder %s34, 0
    %p437 = por %p435, %p436
    %p438 = scmp.ne.s32.totalorder %s430, %s432
    %p439 = scmp.eq.s32.totalorder %s39, 1
    %p440 = por %p438, %p439
    %p441 = scmp.ne.s32.totalorder %s432, %s433
    %p442 = scmp.eq.s32.totalorder %s39, 0
    %p443 = por %p441, %p442
    %p444 = scmp.ne.s32.totalorder %s432, %s433
    %p445 = scmp.eq.s32.totalorder %s40, 1
    %p446 = por %p444, %p445
    %p448 = scmp.ne.s32.totalorder %s433, %s447
    %p449 = scmp.eq.s32.totalorder %s40, 0
    %p450 = por %p448, %p449
    %s452 = sadd.s32 %s451, 1
    %p455 = scmp.eq.s32.totalorder %s34, 1
    %p456 = scmp.ne.s32.totalorder %s451, %s453
    %p457 = scmp.eq.s32.totalorder %s34, 0
    %p458 = por %p456, %p457
    %p459 = scmp.ne.s32.totalorder %s451, %s453
    %p460 = scmp.eq.s32.totalorder %s39, 1
    %p461 = por %p459, %p460
    %p462 = scmp.ne.s32.totalorder %s453, %s454
    %p463 = scmp.eq.s32.totalorder %s39, 0
    %p464 = por %p462, %p463
    %p465 = scmp.ne.s32.totalorder %s453, %s454
    %p466 = scmp.eq.s32.totalorder %s40, 1
    %p467 = por %p465, %p466
    %p469 = scmp.ne.s32.totalorder %s454, %s468
    %p470 = scmp.eq.s32.totalorder %s40, 0
    %p471 = por %p469, %p470
    %s473 = sadd.s32 %s472, 1
    %p476 = scmp.eq.s32.totalorder %s34, 1
    %p477 = scmp.ne.s32.totalorder %s472, %s474
    %p478 = scmp.eq.s32.totalorder %s34, 0
    %p479 = por %p477, %p478
    %p480 = scmp.ne.s32.totalorder %s472, %s474
    %p481 = scmp.eq.s32.totalorder %s39, 1
    %p482 = por %p480, %p481
    %p483 = scmp.ne.s32.totalorder %s474, %s475
    %p484 = scmp.eq.s32.totalorder %s39, 0
    %p485 = por %p483, %p484
    %p486 = scmp.ne.s32.totalorder %s474, %s475
    %p487 = scmp.eq.s32.totalorder %s40, 1
    %p488 = por %p486, %p487
    %p490 = scmp.ne.s32.totalorder %s475, %s489
    %p491 = scmp.eq.s32.totalorder %s40, 0
    %p492 = por %p490, %p491
    %s494 = sadd.s32 %s493, 1
    %p497 = scmp.eq.s32.totalorder %s34, 1
    %p498 = scmp.ne.s32.totalorder %s493, %s495
    %p499 = scmp.eq.s32.totalorder %s34, 0
    %p500 = por %p498, %p499
    %p501 = scmp.ne.s32.totalorder %s493, %s495
    %p502 = scmp.eq.s32.totalorder %s39, 1
    %p503 = por %p501, %p502
    %p504 = scmp.ne.s32.totalorder %s495, %s496
    %p505 = scmp.eq.s32.totalorder %s39, 0
    %p506 = por %p504, %p505
    %p507 = scmp.ne.s32.totalorder %s495, %s496
    %p508 = scmp.eq.s32.totalorder %s40, 1
    %p509 = por %p507, %p508
    %p511 = scmp.ne.s32.totalorder %s496, %s510
    %p512 = scmp.eq.s32.totalorder %s40, 0
    %p513 = por %p511, %p512
    %s515 = sadd.s32 %s514, 1
    %p518 = scmp.eq.s32.totalorder %s34, 1
    %p519 = scmp.ne.s32.totalorder %s514, %s516
    %p520 = scmp.eq.s32.totalorder %s34, 0
    %p521 = por %p519, %p520
    %p522 = scmp.ne.s32.totalorder %s514, %s516
    %p523 = scmp.eq.s32.totalorder %s39, 1
    %p524 = por %p522, %p523
    %p525 = scmp.ne.s32.totalorder %s516, %s517
    %p526 = scmp.eq.s32.totalorder %s39, 0
    %p527 = por %p525, %p526
    %p528 = scmp.ne.s32.totalorder %s516, %s517
    %p529 = scmp.eq.s32.totalorder %s40, 1
    %p530 = por %p528, %p529
    %p532 = scmp.ne.s32.totalorder %s517, %s531
    %p533 = scmp.eq.s32.totalorder %s40, 0
    %p534 = por %p532, %p533
    %s536 = sadd.s32 %s535, 1
    %p539 = scmp.eq.s32.totalorder %s34, 1
    %p540 = scmp.ne.s32.totalorder %s535, %s537
    %p541 = scmp.eq.s32.totalorder %s34, 0
    %p542 = por %p540, %p541
    %p543 = scmp.ne.s32.totalorder %s535, %s537
    %p544 = scmp.eq.s32.totalorder %s39, 1
    %p545 = por %p543, %p544
    %p546 = scmp.ne.s32.totalorder %s537, %s538
    %p547 = scmp.eq.s32.totalorder %s39, 0
    %p548 = por %p546, %p547
    %p549 = scmp.ne.s32.totalorder %s537, %s538
    %p550 = scmp.eq.s32.totalorder %s40, 1
    %p551 = por %p549, %p550
    %p553 = scmp.ne.s32.totalorder %s538, %s552
    %p554 = scmp.eq.s32.totalorder %s40, 0
    %p555 = por %p553, %p554
    %s557 = sadd.s32 %s556, 1
    %p560 = scmp.eq.s32.totalorder %s34, 1
    %p561 = scmp.ne.s32.totalorder %s556, %s558
    %p562 = scmp.eq.s32.totalorder %s34, 0
    %p563 = por %p561, %p562
    %p564 = scmp.ne.s32.totalorder %s556, %s558
    %p565 = scmp.eq.s32.totalorder %s39, 1
    %p566 = por %p564, %p565
    %p567 = scmp.ne.s32.totalorder %s558, %s559
    %p568 = scmp.eq.s32.totalorder %s39, 0
    %p569 = por %p567, %p568
    %p570 = scmp.ne.s32.totalorder %s558, %s559
    %p571 = scmp.eq.s32.totalorder %s40, 1
    %p572 = por %p570, %p571
    %p574 = scmp.ne.s32.totalorder %s559, %s573
    %p575 = scmp.eq.s32.totalorder %s40, 0
    %p576 = por %p574, %p575
    %s578 = sadd.s32 %s577, 1
    %p581 = scmp.eq.s32.totalorder %s34, 1
    %p582 = scmp.ne.s32.totalorder %s577, %s579
    %p583 = scmp.eq.s32.totalorder %s34, 0
    %p584 = por %p582, %p583
    %p585 = scmp.ne.s32.totalorder %s577, %s579
    %p586 = scmp.eq.s32.totalorder %s39, 1
    %p587 = por %p585, %p586
    %p588 = scmp.ne.s32.totalorder %s579, %s580
    %p589 = scmp.eq.s32.totalorder %s39, 0
    %p590 = por %p588, %p589
    %p591 = scmp.ne.s32.totalorder %s579, %s580
    %p592 = scmp.eq.s32.totalorder %s40, 1
    %p593 = por %p591, %p592
    %p595 = scmp.ne.s32.totalorder %s580, %s594
    %p596 = scmp.eq.s32.totalorder %s40, 0
    %p597 = por %p595, %p596
    %s599 = sadd.s32 %s598, 1
    %p602 = scmp.eq.s32.totalorder %s34, 1
    %p603 = scmp.ne.s32.totalorder %s598, %s600
    %p604 = scmp.eq.s32.totalorder %s34, 0
    %p605 = por %p603, %p604
    %p606 = scmp.ne.s32.totalorder %s598, %s600
    %p607 = scmp.eq.s32.totalorder %s39, 1
    %p608 = por %p606, %p607
    %p609 = scmp.ne.s32.totalorder %s600, %s601
    %p610 = scmp.eq.s32.totalorder %s39, 0
    %p611 = por %p609, %p610
    %p612 = scmp.ne.s32.totalorder %s600, %s601
    %p613 = scmp.eq.s32.totalorder %s40, 1
    %p614 = por %p612, %p613
    %p616 = scmp.ne.s32.totalorder %s601, %s615
    %p617 = scmp.eq.s32.totalorder %s40, 0
    %p618 = por %p616, %p617
    %s620 = sadd.s32 %s619, 1
    %p623 = scmp.eq.s32.totalorder %s34, 1
    %p624 = scmp.ne.s32.totalorder %s619, %s621
    %p625 = scmp.eq.s32.totalorder %s34, 0
    %p626 = por %p624, %p625
    %p627 = scmp.ne.s32.totalorder %s619, %s621
    %p628 = scmp.eq.s32.totalorder %s39, 1
    %p629 = por %p627, %p628
    %p630 = scmp.ne.s32.totalorder %s621, %s622
    %p631 = scmp.eq.s32.totalorder %s39, 0
    %p632 = por %p630, %p631
    %p633 = scmp.ne.s32.totalorder %s621, %s622
    %p634 = scmp.eq.s32.totalorder %s40, 1
    %p635 = por %p633, %p634
    %p637 = scmp.ne.s32.totalorder %s622, %s636
    %p638 = scmp.eq.s32.totalorder %s40, 0
    %p639 = por %p637, %p638
    %s640 = ssub.s32 %s34, %s41
    %p641 = scmp.eq.s32.totalorder %s640, 0
    %s643 = sadd.s32 %s642, 1
    %s644 = scalar_select %p641, %s642, %s643
    %p647 = pneg %p641
    %p648 = scmp.eq.s32.totalorder %s34, 1
    %p649 = por %p647, %p648
    %p650 = scmp.ne.s32.totalorder %s642, %s645
    %p651 = scmp.eq.s32.totalorder %s34, 0
    %p652 = por %p650, %p651
    %p653 = scmp.ne.s32.totalorder %s642, %s645
    %p654 = scmp.eq.s32.totalorder %s39, 1
    %p655 = por %p653, %p654
    %p656 = scmp.ne.s32.totalorder %s645, %s646
    %p657 = scmp.eq.s32.totalorder %s39, 0
    %p658 = por %p656, %p657
    %p659 = scmp.ne.s32.totalorder %s645, %s646
    %p660 = scmp.eq.s32.totalorder %s40, 1
    %p661 = por %p659, %p660
    %p663 = scmp.ne.s32.totalorder %s646, %s662
    %p664 = scmp.eq.s32.totalorder %s40, 0
    %p665 = por %p663, %p664
    %p666 = scmp.le.s32.totalorder 1, %s34
    %p667 = scmp.lt.s32.totalorder %s34, 3
    %p668 = pnand %p666, %p667
    %p669 = pneg %p668
    // Predicated region
    $region9: #{simplm_forward.1} parent=5 // pred_check
      _
    $region10: #{simplm_forward.1} parent=5 // pred_check_branch
      %671 = sbr.rel (%p668) target = $region12
    $region11: #{simplm_forward.1} parent=5 // pred_region
      %s672 = ssub.s32 %s34, 1
      // Predicated region
      $region13: #{simplm_forward.1} parent=11 // pred_check
        %p673 = pneg %p107
      $region14: #{simplm_forward.1} parent=11 // pred_check_branch
        %675 = sbr.rel (%p673) target = $region16
      $region15: #{simplm_forward.1} parent=11 // pred_region
        _
      $region16: #{simplm_forward.1} parent=11 // pred_fallthru
        _
      // Predicated region
      $region17: #{simplm_forward.1} parent=11 // pred_check
        %p676 = pneg %p128
      $region18: #{simplm_forward.1} parent=11 // pred_check_branch
        %678 = sbr.rel (%p676) target = $region20
      $region19: #{simplm_forward.1} parent=11 // pred_region
        _
      $region20: #{simplm_forward.1} parent=11 // pred_fallthru
        _
      // Predicated region
      $region21: #{simplm_forward.1} parent=11 // pred_check
        %p679 = pneg %p149
      $region22: #{simplm_forward.1} parent=11 // pred_check_branch
        %681 = sbr.rel (%p679) target = $region24
      $region23: #{simplm_forward.1} parent=11 // pred_region
        _
      $region24: #{simplm_forward.1} parent=11 // pred_fallthru
        _
      // Predicated region
      $region25: #{simplm_forward.1} parent=11 // pred_check
        %p682 = pneg %p170
      $region26: #{simplm_forward.1} parent=11 // pred_check_branch
        %684 = sbr.rel (%p682) target = $region28
      $region27: #{simplm_forward.1} parent=11 // pred_region
        _
      $region28: #{simplm_forward.1} parent=11 // pred_fallthru
        _
      // Predicated region
      $region29: #{simplm_forward.1} parent=11 // pred_check
        %p685 = pneg %p191
      $region30: #{simplm_forward.1} parent=11 // pred_check_branch
        %687 = sbr.rel (%p685) target = $region32
      $region31: #{simplm_forward.1} parent=11 // pred_region
        _
      $region32: #{simplm_forward.1} parent=11 // pred_fallthru
        _
      // Predicated region
      $region33: #{simplm_forward.1} parent=11 // pred_check
        %p688 = pneg %p212
      $region34: #{simplm_forward.1} parent=11 // pred_check_branch
        %690 = sbr.rel (%p688) target = $region36
      $region35: #{simplm_forward.1} parent=11 // pred_region
        _
      $region36: #{simplm_forward.1} parent=11 // pred_fallthru
        _
      // Predicated region
      $region37: #{simplm_forward.1} parent=11 // pred_check
        %p691 = pneg %p233
      $region38: #{simplm_forward.1} parent=11 // pred_check_branch
        %693 = sbr.rel (%p691) target = $region40
      $region39: #{simplm_forward.1} parent=11 // pred_region
        _
      $region40: #{simplm_forward.1} parent=11 // pred_fallthru
        _
      // Predicated region
      $region41: #{simplm_forward.1} parent=11 // pred_check
        %p694 = pneg %p254
      $region42: #{simplm_forward.1} parent=11 // pred_check_branch
        %696 = sbr.rel (%p694) target = $region44
      $region43: #{simplm_forward.1} parent=11 // pred_region
        _
      $region44: #{simplm_forward.1} parent=11 // pred_fallthru
        _
      // Predicated region
      $region45: #{simplm_forward.1} parent=11 // pred_check
        %p697 = pneg %p275
      $region46: #{simplm_forward.1} parent=11 // pred_check_branch
        %699 = sbr.rel (%p697) target = $region48
      $region47: #{simplm_forward.1} parent=11 // pred_region
        _
      $region48: #{simplm_forward.1} parent=11 // pred_fallthru
        _
      // Predicated region
      $region49: #{simplm_forward.1} parent=11 // pred_check
        %p700 = pneg %p296
      $region50: #{simplm_forward.1} parent=11 // pred_check_branch
        %702 = sbr.rel (%p700) target = $region52
      $region51: #{simplm_forward.1} parent=11 // pred_region
        _
      $region52: #{simplm_forward.1} parent=11 // pred_fallthru
        _
      // Predicated region
      $region53: #{simplm_forward.1} parent=11 // pred_check
        %p703 = pneg %p317
      $region54: #{simplm_forward.1} parent=11 // pred_check_branch
        %705 = sbr.rel (%p703) target = $region56
      $region55: #{simplm_forward.1} parent=11 // pred_region
        _
      $region56: #{simplm_forward.1} parent=11 // pred_fallthru
        _
      // Predicated region
      $region57: #{simplm_forward.1} parent=11 // pred_check
        %p706 = pneg %p338
      $region58: #{simplm_forward.1} parent=11 // pred_check_branch
        %708 = sbr.rel (%p706) target = $region60
      $region59: #{simplm_forward.1} parent=11 // pred_region
        _
      $region60: #{simplm_forward.1} parent=11 // pred_fallthru
        _
      // Predicated region
      $region61: #{simplm_forward.1} parent=11 // pred_check
        %p709 = pneg %p359
      $region62: #{simplm_forward.1} parent=11 // pred_check_branch
        %711 = sbr.rel (%p709) target = $region64
      $region63: #{simplm_forward.1} parent=11 // pred_region
        _
      $region64: #{simplm_forward.1} parent=11 // pred_fallthru
        _
      // Predicated region
      $region65: #{simplm_forward.1} parent=11 // pred_check
        %p712 = pneg %p380
      $region66: #{simplm_forward.1} parent=11 // pred_check_branch
        %714 = sbr.rel (%p712) target = $region68
      $region67: #{simplm_forward.1} parent=11 // pred_region
        _
      $region68: #{simplm_forward.1} parent=11 // pred_fallthru
        _
      // Predicated region
      $region69: #{simplm_forward.1} parent=11 // pred_check
        %p715 = pneg %p401
      $region70: #{simplm_forward.1} parent=11 // pred_check_branch
        %717 = sbr.rel (%p715) target = $region72
      $region71: #{simplm_forward.1} parent=11 // pred_region
        _
      $region72: #{simplm_forward.1} parent=11 // pred_fallthru
        _
      // Predicated region
      $region73: #{simplm_forward.1} parent=11 // pred_check
        %p718 = pneg %p422
      $region74: #{simplm_forward.1} parent=11 // pred_check_branch
        %720 = sbr.rel (%p718) target = $region76
      $region75: #{simplm_forward.1} parent=11 // pred_region
        _
      $region76: #{simplm_forward.1} parent=11 // pred_fallthru
        _
      // Predicated region
      $region77: #{simplm_forward.1} parent=11 // pred_check
        %p721 = pneg %p443
      $region78: #{simplm_forward.1} parent=11 // pred_check_branch
        %723 = sbr.rel (%p721) target = $region80
      $region79: #{simplm_forward.1} parent=11 // pred_region
        _
      $region80: #{simplm_forward.1} parent=11 // pred_fallthru
        _
      // Predicated region
      $region81: #{simplm_forward.1} parent=11 // pred_check
        %p724 = pneg %p464
      $region82: #{simplm_forward.1} parent=11 // pred_check_branch
        %726 = sbr.rel (%p724) target = $region84
      $region83: #{simplm_forward.1} parent=11 // pred_region
        _
      $region84: #{simplm_forward.1} parent=11 // pred_fallthru
        _
      // Predicated region
      $region85: #{simplm_forward.1} parent=11 // pred_check
        %p727 = pneg %p485
      $region86: #{simplm_forward.1} parent=11 // pred_check_branch
        %729 = sbr.rel (%p727) target = $region88
      $region87: #{simplm_forward.1} parent=11 // pred_region
        _
      $region88: #{simplm_forward.1} parent=11 // pred_fallthru
        _
      // Predicated region
      $region89: #{simplm_forward.1} parent=11 // pred_check
        %p730 = pneg %p506
      $region90: #{simplm_forward.1} parent=11 // pred_check_branch
        %732 = sbr.rel (%p730) target = $region92
      $region91: #{simplm_forward.1} parent=11 // pred_region
        _
      $region92: #{simplm_forward.1} parent=11 // pred_fallthru
        _
      // Predicated region
      $region93: #{simplm_forward.1} parent=11 // pred_check
        %p733 = pneg %p527
      $region94: #{simplm_forward.1} parent=11 // pred_check_branch
        %735 = sbr.rel (%p733) target = $region96
      $region95: #{simplm_forward.1} parent=11 // pred_region
        _
      $region96: #{simplm_forward.1} parent=11 // pred_fallthru
        _
      // Predicated region
      $region97: #{simplm_forward.1} parent=11 // pred_check
        %p736 = pneg %p548
      $region98: #{simplm_forward.1} parent=11 // pred_check_branch
        %738 = sbr.rel (%p736) target = $region100
      $region99: #{simplm_forward.1} parent=11 // pred_region
        _
      $region100: #{simplm_forward.1} parent=11 // pred_fallthru
        _
      // Predicated region
      $region101: #{simplm_forward.1} parent=11 // pred_check
        %p739 = pneg %p569
      $region102: #{simplm_forward.1} parent=11 // pred_check_branch
        %741 = sbr.rel (%p739) target = $region104
      $region103: #{simplm_forward.1} parent=11 // pred_region
        _
      $region104: #{simplm_forward.1} parent=11 // pred_fallthru
        _
      // Predicated region
      $region105: #{simplm_forward.1} parent=11 // pred_check
        %p742 = pneg %p590
      $region106: #{simplm_forward.1} parent=11 // pred_check_branch
        %744 = sbr.rel (%p742) target = $region108
      $region107: #{simplm_forward.1} parent=11 // pred_region
        _
      $region108: #{simplm_forward.1} parent=11 // pred_fallthru
        _
      // Predicated region
      $region109: #{simplm_forward.1} parent=11 // pred_check
        %p745 = pneg %p611
      $region110: #{simplm_forward.1} parent=11 // pred_check_branch
        %747 = sbr.rel (%p745) target = $region112
      $region111: #{simplm_forward.1} parent=11 // pred_region
        _
      $region112: #{simplm_forward.1} parent=11 // pred_fallthru
        _
      // Predicated region
      $region113: #{simplm_forward.1} parent=11 // pred_check
        %p748 = pneg %p632
      $region114: #{simplm_forward.1} parent=11 // pred_check_branch
        %750 = sbr.rel (%p748) target = $region116
      $region115: #{simplm_forward.1} parent=11 // pred_region
        _
      $region116: #{simplm_forward.1} parent=11 // pred_fallthru
        _
    $region12: #{simplm_forward.1} parent=5 // pred_fallthru
      _
    %p751 = scmp.lt.s32.totalorder %s34, 2
    // Predicated region
    $region117: #{simplm_forward.1} parent=5 // pred_check
      %p752 = pneg %p751
    $region118: #{simplm_forward.1} parent=5 // pred_check_branch
      %754 = sbr.rel (%p752) target = $region120
    $region119: #{simplm_forward.1} parent=5 // pred_region
      // Predicated region
      $region121: #{simplm_forward.1} parent=119 // pred_check
        %p755 = pneg %p54
      $region122: #{simplm_forward.1} parent=119 // pred_check_branch
        %757 = sbr.rel (%p755) target = $region124
      $region123: #{simplm_forward.1} parent=119 // pred_region
        %s758 = smul.u32 3, %s34
        %p759 = scmp.lt.s32.totalorder %s758, 5
        %s760 = scalar_select %p759, %s758, 5
        %s761 = smul.addr %s760, 8
        %s762 = scalar_lea.vmem %s0, %s761
        %s763 = smul.u32 3, %s34
      $region124: #{simplm_forward.1} parent=119 // pred_fallthru
        _
      // Predicated region
      $region125: #{simplm_forward.1} parent=119 // pred_check
        %p764 = pneg %p80
      $region126: #{simplm_forward.1} parent=119 // pred_check_branch
        %766 = sbr.rel (%p764) target = $region128
      $region127: #{simplm_forward.1} parent=119 // pred_region
        %s767 = smul.u32 3, %s34
        %p768 = scmp.lt.s32.totalorder %s767, 5
        %s769 = scalar_select %p768, %s767, 5
        %s770 = scalar_lea.vmem %s1, %s769
        %s771 = smul.u32 3, %s34
      $region128: #{simplm_forward.1} parent=119 // pred_fallthru
        _
    $region120: #{simplm_forward.1} parent=5 // pred_fallthru
      _
    %p772 = scmp.le.s32.totalorder 1, %s34
    %p773 = scmp.lt.s32.totalorder %s34, 3
    %p774 = pnand %p772, %p773
    %p775 = pneg %p774
    // Predicated region
    $region129: #{simplm_forward.1} parent=5 // pred_check
      _
    $region130: #{simplm_forward.1} parent=5 // pred_check_branch
      %777 = sbr.rel (%p774) target = $region132
    $region131: #{simplm_forward.1} parent=5 // pred_region
      %s778 = ssub.s32 %s34, 1
      %s779 = smul.u32 3, %s39
      %p780 = scmp.lt.s32.totalorder %s779, 5
      %s781 = scalar_select %p780, %s779, 5
      %s782 = smul.addr %s781, 8
      %s783 = scalar_lea.vmem %s0, %s782
      %p784 = pneg %p60
      %p785 = pneg %p57
      %s786 = smul.u32 3, %s39
      %p787 = scmp.lt.s32.totalorder %s786, 5
      %s788 = scalar_select %p787, %s786, 5
      %s789 = scalar_lea.vmem %s1, %s788
      %p790 = pneg %p86
      %p791 = pneg %p83
      %p792 = pneg %p107
      %p793 = pneg %p104
      %p794 = pneg %p128
      %p795 = pneg %p125
      %p796 = pneg %p149
      %p797 = pneg %p146
      %p798 = pneg %p170
      %p799 = pneg %p167
      %p800 = pneg %p191
      %p801 = pneg %p188
      %p802 = pneg %p212
      %p803 = pneg %p209
      %p804 = pneg %p233
      %p805 = pneg %p230
      %p806 = pneg %p254
      %p807 = pneg %p251
      %p808 = pneg %p275
      %p809 = pneg %p272
      %p810 = pneg %p296
      %p811 = pneg %p293
      %p812 = pneg %p317
      %p813 = pneg %p314
      %p814 = pneg %p338
      %p815 = pneg %p335
      %p816 = pneg %p359
      %p817 = pneg %p356
      %p818 = pneg %p380
      %p819 = pneg %p377
      %p820 = pneg %p401
      %p821 = pneg %p398
      %p822 = pneg %p422
      %p823 = pneg %p419
      %p824 = pneg %p443
      %p825 = pneg %p440
      %p826 = pneg %p464
      %p827 = pneg %p461
      %p828 = pneg %p485
      %p829 = pneg %p482
      %p830 = pneg %p506
      %p831 = pneg %p503
      %p832 = pneg %p527
      %p833 = pneg %p524
      %p834 = pneg %p548
      %p835 = pneg %p545
      %p836 = pneg %p569
      %p837 = pneg %p566
      %p838 = pneg %p590
      %p839 = pneg %p587
      %p840 = pneg %p611
      %p841 = pneg %p608
      %p842 = pneg %p632
      %p843 = pneg %p629
      %p844 = pneg %p658
      %p845 = pneg %p655
      %s846 = smul.u32 3, %s39
      %p847 = scmp.lt.s32.totalorder %s846, 5
      %s848 = scalar_select %p847, %s846, 5
      %s849 = smul.addr %s848, 8
      %s850 = scalar_lea.vmem %s28, %s849
      %s851 = smul.u32 3, %s39
      %p852 = scmp.lt.s32.totalorder %s851, 5
      %s853 = scalar_select %p852, %s851, 5
      %s854 = smul.addr %s853, 8
      %s855 = scalar_lea.vmem %s0, %s854
      %s856 = smul.u32 3, %s39
      %s857 = smul.u32 3, %s39
      %p858 = scmp.lt.s32.totalorder %s857, 5
      %s859 = scalar_select %p858, %s857, 5
      %s860 = scalar_lea.vmem %s1, %s859
      %s861 = smul.u32 3, %s39
      %s862 = smul.u32 3, %s39
      %p863 = scmp.lt.s32.totalorder %s862, 5
      %s864 = scalar_select %p863, %s862, 5
      %s865 = smul.addr %s864, 8
      %s866 = scalar_lea.vmem %s28, %s865
      %s867 = smul.u32 3, %s39
      %v869 = vld [vmem:[%s860] sm:$0x1]
      %v870 = vld [vmem:[%s860 + $0x1] sm:$0x1]
      %v871 = vld [vmem:[%s860 + $0x2] sm:$0x1]
      %v872 = vld [vmem:[%s855] sm:$0xff]
      %v873 = vld [vmem:[%s855 + $0x8] sm:$0xff]
      %v874 = vld [vmem:[%s855 + $0x10] sm:$0xff]
      %v875 = vld [vmem:[%s2] sm:$0x1]
      %v876 = vld [vmem:[%s3] sm:$0x1]
      %vm877 = vcmask 261120
      %v878 = vsel %vm877, %v872, 0.0
      %879 = vadd.xlane.f32.xlu0 %v878
      %v880 = vpop.xlane.xlu0 %879
      %v881 = vsel %vm877, %v873, 0.0
      %882 = vadd.xlane.f32.xlu0 %v881
      %v883 = vpop.xlane.xlu0 %882
      %v884 = vsel %vm877, %v874, 0.0
      %885 = vadd.xlane.f32.xlu0 %v884
      %v886 = vpop.xlane.xlu0 %885
      %v887 = vrcp.pop 32.0
      %v888 = vmul.f32 32.0, %v887
      %v889 = vsub.f32 1.0, %v888
      %v890 = vmul.f32 %v887, %v889
      %v891 = vadd.f32 %v887, %v890
      %vm892 = vweird.f32 %v887
      %v893 = vsel %vm892, %v887, %v891
      %v894 = vmul.f32 %v880, %v893
      %v895 = vmul.f32 %v883, %v893
      %v896 = vmul.f32 %v886, %v893
      %v897 = vsub.f32 %v872, %v894
      %v898 = vsub.f32 %v873, %v895
      %v899 = vsub.f32 %v874, %v896
      %v900 = vmul.f32 %v897, %v897
      %v901 = vmul.f32 %v898, %v898
      %v902 = vmul.f32 %v899, %v899
      %v903 = vsel %vm877, %v900, 0.0
      %904 = vadd.xlane.f32.xlu0 %v903
      %v905 = vpop.xlane.xlu0 %904
      %v906 = vsel %vm877, %v901, 0.0
      %907 = vadd.xlane.f32.xlu0 %v906
      %v908 = vpop.xlane.xlu0 %907
      %v909 = vsel %vm877, %v902, 0.0
      %910 = vadd.xlane.f32.xlu0 %v909
      %v911 = vpop.xlane.xlu0 %910
      %v912 = vmul.f32 %v905, %v893
      %v913 = vmul.f32 %v908, %v893
      %v914 = vmul.f32 %v911, %v893
      %v915 = vadd.f32 %v912, 1e-05
      %v916 = vadd.f32 %v913, 1e-05
      %v917 = vadd.f32 %v914, 1e-05
      %v918 = vrsqrt.pop %v915
      %v919 = vmul.f32 %v918, %v915
      %v920 = vmul.f32 %v919, %v918
      %v921 = vmul.f32 0.5, %v920
      %v922 = vsub.f32 1.5, %v921
      %v923 = vmul.f32 %v918, %v922
      %vm924 = vweird.f32 %v915
      %vm925 = vweird.f32 %v918
      %vm926 = vmor %vm924, %vm925
      %v927 = vsel %vm926, %v918, %v923
      %v928 = vrsqrt.pop %v916
      %v929 = vmul.f32 %v928, %v916
      %v930 = vmul.f32 %v929, %v928
      %v931 = vmul.f32 0.5, %v930
      %v932 = vsub.f32 1.5, %v931
      %v933 = vmul.f32 %v928, %v932
      %vm934 = vweird.f32 %v916
      %vm935 = vweird.f32 %v928
      %vm936 = vmor %vm934, %vm935
      %v937 = vsel %vm936, %v928, %v933
      %v938 = vrsqrt.pop %v917
      %v939 = vmul.f32 %v938, %v917
      %v940 = vmul.f32 %v939, %v938
      %v941 = vmul.f32 0.5, %v940
      %v942 = vsub.f32 1.5, %v941
      %v943 = vmul.f32 %v938, %v942
      %vm944 = vweird.f32 %v917
      %vm945 = vweird.f32 %v938
      %vm946 = vmor %vm944, %vm945
      %v947 = vsel %vm946, %v938, %v943
      %v948 = vmul.f32 %v897, %v927
      %v949 = vmul.f32 %v898, %v937
      %v950 = vmul.f32 %v899, %v947
      %v952 = vperm.slane %v875, 0
      %v954 = vmul.f32 %v948, %v952
      %v955 = vmul.f32 %v949, %v952
      %v956 = vmul.f32 %v950, %v952
      %v958 = vperm.slane %v876, 0
      %v960 = vadd.f32 %v954, %v958
      %v961 = vadd.f32 %v955, %v958
      %v962 = vadd.f32 %v956, %v958
      %v963 = vld [vmem:[%s4] sm:$0x1]
      %v964 = vld [vmem:[%s5] sm:$0x1]
      %v965 = vsel %vm877, %v960, 0.0
      %966 = vadd.xlane.f32.xlu0 %v965
      %v967 = vpop.xlane.xlu0 %966
      %v968 = vsel %vm877, %v961, 0.0
      %969 = vadd.xlane.f32.xlu0 %v968
      %v970 = vpop.xlane.xlu0 %969
      %v971 = vsel %vm877, %v962, 0.0
      %972 = vadd.xlane.f32.xlu0 %v971
      %v973 = vpop.xlane.xlu0 %972
      %v974 = vmul.f32 %v967, %v893
      %v975 = vmul.f32 %v970, %v893
      %v976 = vmul.f32 %v973, %v893
      %v977 = vsub.f32 %v960, %v974
      %v978 = vsub.f32 %v961, %v975
      %v979 = vsub.f32 %v962, %v976
      %v980 = vmul.f32 %v977, %v977
      %v981 = vmul.f32 %v978, %v978
      %v982 = vmul.f32 %v979, %v979
      %v983 = vsel %vm877, %v980, 0.0
      %984 = vadd.xlane.f32.xlu0 %v983
      %v985 = vpop.xlane.xlu0 %984
      %v986 = vsel %vm877, %v981, 0.0
      %987 = vadd.xlane.f32.xlu0 %v986
      %v988 = vpop.xlane.xlu0 %987
      %v989 = vsel %vm877, %v982, 0.0
      %990 = vadd.xlane.f32.xlu0 %v989
      %v991 = vpop.xlane.xlu0 %990
      %v992 = vmul.f32 %v985, %v893
      %v993 = vmul.f32 %v988, %v893
      %v994 = vmul.f32 %v991, %v893
      %v995 = vadd.f32 %v992, 1e-05
      %v996 = vadd.f32 %v993, 1e-05
      %v997 = vadd.f32 %v994, 1e-05
      %v998 = vrsqrt.pop %v995
      %v999 = vmul.f32 %v998, %v995
      %v1000 = vmul.f32 %v999, %v998
      %v1001 = vmul.f32 0.5, %v1000
      %v1002 = vsub.f32 1.5, %v1001
      %v1003 = vmul.f32 %v998, %v1002
      %vm1004 = vweird.f32 %v995
      %vm1005 = vweird.f32 %v998
      %vm1006 = vmor %vm1004, %vm1005
      %v1007 = vsel %vm1006, %v998, %v1003
      %v1008 = vrsqrt.pop %v996
      %v1009 = vmul.f32 %v1008, %v996
      %v1010 = vmul.f32 %v1009, %v1008
      %v1011 = vmul.f32 0.5, %v1010
      %v1012 = vsub.f32 1.5, %v1011
      %v1013 = vmul.f32 %v1008, %v1012
      %vm1014 = vweird.f32 %v996
      %vm1015 = vweird.f32 %v1008
      %vm1016 = vmor %vm1014, %vm1015
      %v1017 = vsel %vm1016, %v1008, %v1013
      %v1018 = vrsqrt.pop %v997
      %v1019 = vmul.f32 %v1018, %v997
      %v1020 = vmul.f32 %v1019, %v1018
      %v1021 = vmul.f32 0.5, %v1020
      %v1022 = vsub.f32 1.5, %v1021
      %v1023 = vmul.f32 %v1018, %v1022
      %vm1024 = vweird.f32 %v997
      %vm1025 = vweird.f32 %v1018
      %vm1026 = vmor %vm1024, %vm1025
      %v1027 = vsel %vm1026, %v1018, %v1023
      %v1028 = vmul.f32 %v977, %v1007
      %v1029 = vmul.f32 %v978, %v1017
      %v1030 = vmul.f32 %v979, %v1027
      %v1032 = vperm.slane %v963, 0
      %v1034 = vmul.f32 %v1028, %v1032
      %v1035 = vmul.f32 %v1029, %v1032
      %v1036 = vmul.f32 %v1030, %v1032
      %v1038 = vperm.slane %v964, 0
      %v1040 = vadd.f32 %v1034, %v1038
      %v1041 = vadd.f32 %v1035, %v1038
      %v1042 = vadd.f32 %v1036, %v1038
      %v1043 = vpack.c.bf16 %v1041, %v1040
      %v1044 = vpack.c.bf16 %v1042, %v1042
      %v1045 = vld [vmem:[%s6] sm:$0xf]
      %v1046 = vld [vmem:[%s6 + $0x4] sm:$0xf]
      %v1047 = vld [vmem:[%s6 + $0x8] sm:$0xf]
      %v1048 = vld [vmem:[%s6 + $0xc] sm:$0xf]
      %v1049 = vld [vmem:[%s7] sm:$0x1]
      %v1051 = vperm.slane %v1049, 0
      %v1057 = vunpack.c.l.b16 %v1045
      %v1058 = vunpack.c.l.b16 %v1046
      %v1059 = vunpack.c.l.b16 %v1047
      %v1060 = vunpack.c.l.b16 %v1048
      %v1061 = vpack.c.b16 %v1058, %v1057
      %v1062 = vpack.c.b16 %v1060, %v1059
      %v1066 = vsel %vm877, %v1043, 0
      %v1069 = vsel %vm877, %v1044, 0
      %1071 = vmatpush.bf16.msra.mxu0 0
      %1072 = vmatpush.bf16.msra.mxu0 0
      %1073 = vmatpush.bf16.msra.mxu0 0
      %1074 = vmatpush.bf16.msra.mxu0 0
      %1075 = vmatpush.bf16.msra.mxu0 0
      %1076 = vmatpush.bf16.msra.mxu0 0
      %1077 = vmatpush.bf16.msra.mxu0 %v1062
      %1078 = vmatpush.bf16.msra.mxu0 %v1061
      %1079 = vmatmul.bf16.gmra.mxu0 %v1066
      %v1080 = vpop.f32.mrf.mxu0
      %v1081 = vadd.f32 %v1051, %v1080
      %v1082 = vpop.f32.mrf.mxu0
      %v1083 = vadd.f32 %v1051, %v1082
      %1084 = vmatmul.bf16.gmra.mxu0 %v1069
      %v1085 = vpop.f32.mrf.mxu0
      %v1086 = vadd.f32 %v1051, %v1085
      %v1087 = vpop.f32.mrf.mxu0
      %1088 = vdwg.mxu0
      %v1089 = vmul.f32 %v1081, 0.35355338
      %v1090 = vmul.f32 %v1083, 0.35355338
      %v1091 = vmul.f32 %v1086, 0.35355338
      %v1092 = vld [vmem:[%s8] sm:$0xf]
      %v1093 = vld [vmem:[%s8 + $0x4] sm:$0xf]
      %v1094 = vld [vmem:[%s8 + $0x8] sm:$0xf]
      %v1095 = vld [vmem:[%s8 + $0xc] sm:$0xf]
      %v1096 = vld [vmem:[%s9] sm:$0x1]
      %v1098 = vperm.slane %v1096, 0
      %v1104 = vunpack.c.l.b16 %v1092
      %v1105 = vunpack.c.l.b16 %v1093
      %v1106 = vunpack.c.l.b16 %v1094
      %v1107 = vunpack.c.l.b16 %v1095
      %v1108 = vpack.c.b16 %v1105, %v1104
      %v1109 = vpack.c.b16 %v1107, %v1106
      %1112 = vmatpush.bf16.msra.mxu0 0
      %1113 = vmatpush.bf16.msra.mxu0 0
      %1114 = vmatpush.bf16.msra.mxu0 0
      %1115 = vmatpush.bf16.msra.mxu0 0
      %1116 = vmatpush.bf16.msra.mxu0 0
      %1117 = vmatpush.bf16.msra.mxu0 0
      %1118 = vmatpush.bf16.msra.mxu0 %v1109
      %1119 = vmatpush.bf16.msra.mxu0 %v1108
      %1120 = vmatmul.bf16.gmra.mxu0 %v1066
      %v1121 = vpop.f32.mrf.mxu0
      %v1122 = vadd.f32 %v1098, %v1121
      %v1123 = vpop.f32.mrf.mxu0
      %v1124 = vadd.f32 %v1098, %v1123
      %1125 = vmatmul.bf16.gmra.mxu0 %v1069
      %v1126 = vpop.f32.mrf.mxu0
      %v1127 = vadd.f32 %v1098, %v1126
      %v1128 = vpop.f32.mrf.mxu0
      %1129 = vdwg.mxu0
      %v1130 = vld [vmem:[%s10] sm:$0xf]
      %v1131 = vld [vmem:[%s10 + $0x4] sm:$0xf]
      %v1132 = vld [vmem:[%s10 + $0x8] sm:$0xf]
      %v1133 = vld [vmem:[%s10 + $0xc] sm:$0xf]
      %v1134 = vld [vmem:[%s11] sm:$0x1]
      %v1136 = vperm.slane %v1134, 0
      %v1142 = vunpack.c.l.b16 %v1130
      %v1143 = vunpack.c.l.b16 %v1131
      %v1144 = vunpack.c.l.b16 %v1132
      %v1145 = vunpack.c.l.b16 %v1133
      %v1146 = vpack.c.b16 %v1143, %v1142
      %v1147 = vpack.c.b16 %v1145, %v1144
      %1150 = vmatpush.bf16.msra.mxu0 0
      %1151 = vmatpush.bf16.msra.mxu0 0
      %1152 = vmatpush.bf16.msra.mxu0 0
      %1153 = vmatpush.bf16.msra.mxu0 0
      %1154 = vmatpush.bf16.msra.mxu0 0
      %1155 = vmatpush.bf16.msra.mxu0 0
      %1156 = vmatpush.bf16.msra.mxu0 %v1147
      %1157 = vmatpush.bf16.msra.mxu0 %v1146
      %1158 = vmatmul.bf16.gmra.mxu0 %v1066
      %v1159 = vpop.f32.mrf.mxu0
      %v1160 = vadd.f32 %v1136, %v1159
      %v1161 = vpop.f32.mrf.mxu0
      %v1162 = vadd.f32 %v1136, %v1161
      %1163 = vmatmul.bf16.gmra.mxu0 %v1069
      %v1164 = vpop.f32.mrf.mxu0
      %v1165 = vadd.f32 %v1136, %v1164
      %v1166 = vpop.f32.mrf.mxu0
      %1167 = vdwg.mxu0
      %v1171 = vperm.slane %v869, 0
      %v1172 = vperm.slane %v870, 0
      %v1173 = vperm.slane %v871, 0
      %vm1177 = vcmask 64512
      %v1179 = vsel %vm1177, %v1089, 0
      %v1182 = vsel %vm1177, %v1122, 0
      %1184 = vmatpush.xpose.msra.mxu0 0.0
      %1185 = vmatpush.xpose.msra.mxu0 0.0
      %1186 = vmatpush.xpose.msra.mxu0 0.0
      %1187 = vmatpush.xpose.msra.mxu0 0.0
      %1188 = vmatpush.xpose.msra.mxu0 0.0
      %1189 = vmatpush.xpose.msra.mxu0 0.0
      %1190 = vmatpush.xpose.msra.mxu0 0.0
      %1191 = vmatpush.xpose.msra.mxu0 0.0
      %1192 = vmatpush.xpose.msra.mxu0 0.0
      %1193 = vmatpush.xpose.msra.mxu0 0.0
      %1194 = vmatpush.xpose.msra.mxu0 0.0
      %1195 = vmatpush.xpose.msra.mxu0 0.0
      %1196 = vmatpush.xpose.msra.mxu0 0.0
      %1197 = vmatpush.xpose.msra.mxu0 0.0
      %1198 = vmatpush.xpose.msra.mxu0 0.0
      %1199 = vmatpush.xpose.msra.mxu0 %v1182
      %1200 = vmatmul.f32.gmra.mxu0 %v1179
      %v1201 = vpop.f32.mrf.mxu0
      %v1202 = vadd.f32 %v1171, %v1201
      %1203 = vdwg.mxu0
      %v1205 = vsel %vm1177, %v1090, 0
      %v1208 = vsel %vm1177, %v1124, 0
      %1210 = vmatpush.xpose.msra.mxu0 0.0
      %1211 = vmatpush.xpose.msra.mxu0 0.0
      %1212 = vmatpush.xpose.msra.mxu0 0.0
      %1213 = vmatpush.xpose.msra.mxu0 0.0
      %1214 = vmatpush.xpose.msra.mxu0 0.0
      %1215 = vmatpush.xpose.msra.mxu0 0.0
      %1216 = vmatpush.xpose.msra.mxu0 0.0
      %1217 = vmatpush.xpose.msra.mxu0 0.0
      %1218 = vmatpush.xpose.msra.mxu0 0.0
      %1219 = vmatpush.xpose.msra.mxu0 0.0
      %1220 = vmatpush.xpose.msra.mxu0 0.0
      %1221 = vmatpush.xpose.msra.mxu0 0.0
      %1222 = vmatpush.xpose.msra.mxu0 0.0
      %1223 = vmatpush.xpose.msra.mxu0 0.0
      %1224 = vmatpush.xpose.msra.mxu0 0.0
      %1225 = vmatpush.xpose.msra.mxu0 %v1208
      %1226 = vmatmul.f32.gmra.mxu0 %v1205
      %v1227 = vpop.f32.mrf.mxu0
      %v1228 = vadd.f32 %v1172, %v1227
      %1229 = vdwg.mxu0
      %v1231 = vsel %vm1177, %v1091, 0
      %v1234 = vsel %vm1177, %v1127, 0
      %1236 = vmatpush.xpose.msra.mxu0 0.0
      %1237 = vmatpush.xpose.msra.mxu0 0.0
      %1238 = vmatpush.xpose.msra.mxu0 0.0
      %1239 = vmatpush.xpose.msra.mxu0 0.0
      %1240 = vmatpush.xpose.msra.mxu0 0.0
      %1241 = vmatpush.xpose.msra.mxu0 0.0
      %1242 = vmatpush.xpose.msra.mxu0 0.0
      %1243 = vmatpush.xpose.msra.mxu0 0.0
      %1244 = vmatpush.xpose.msra.mxu0 0.0
      %1245 = vmatpush.xpose.msra.mxu0 0.0
      %1246 = vmatpush.xpose.msra.mxu0 0.0
      %1247 = vmatpush.xpose.msra.mxu0 0.0
      %1248 = vmatpush.xpose.msra.mxu0 0.0
      %1249 = vmatpush.xpose.msra.mxu0 0.0
      %1250 = vmatpush.xpose.msra.mxu0 0.0
      %1251 = vmatpush.xpose.msra.mxu0 %v1234
      %1252 = vmatmul.f32.gmra.mxu0 %v1231
      %v1253 = vpop.f32.mrf.mxu0
      %v1254 = vadd.f32 %v1173, %v1253
      %1255 = vdwg.mxu0
      %v1256 = vsel %vm1177, %v1202, -inf
      %1257 = vmax.xlane.f32.xlu0 %v1256
      %v1258 = vpop.xlane.xlu0 %1257
      %v1259 = vsel %vm1177, %v1228, -inf
      %1260 = vmax.xlane.f32.xlu0 %v1259
      %v1261 = vpop.xlane.xlu0 %1260
      %v1262 = vsel %vm1177, %v1254, -inf
      %1263 = vmax.xlane.f32.xlu0 %v1262
      %v1264 = vpop.xlane.xlu0 %1263
      %v1265 = vsub.f32 %v1202, %v1258
      %v1266 = vsub.f32 %v1228, %v1261
      %v1267 = vsub.f32 %v1254, %v1264
      %v1268 = vmul.f32 %v1265, 1.442695
      %v1269 = vpow.pop %v1268
      %v1270 = vmul.f32 %v1266, 1.442695
      %v1271 = vpow.pop %v1270
      %v1272 = vmul.f32 %v1267, 1.442695
      %v1273 = vpow.pop %v1272
      %v1274 = vsel %vm1177, %v1269, 0.0
      %1275 = vadd.xlane.f32.xlu0 %v1274
      %v1276 = vpop.xlane.xlu0 %1275
      %v1277 = vsel %vm1177, %v1271, 0.0
      %1278 = vadd.xlane.f32.xlu0 %v1277
      %v1279 = vpop.xlane.xlu0 %1278
      %v1280 = vsel %vm1177, %v1273, 0.0
      %1281 = vadd.xlane.f32.xlu0 %v1280
      %v1282 = vpop.xlane.xlu0 %1281
      %v1283 = vrcp.pop %v1276
      %v1284 = vrcp.pop %v1279
      %v1285 = vrcp.pop %v1282
      %v1286 = vmul.f32 %v1269, %v1283
      %v1287 = vmul.f32 %v1271, %v1284
      %v1288 = vmul.f32 %v1273, %v1285
      %v1290 = vsel %vm1177, %v1286, 0
      %1292 = vmatpush.msra.mxu0 0.0
      %1293 = vmatpush.msra.mxu0 0.0
      %1294 = vmatpush.msra.mxu0 0.0
      %1295 = vmatpush.msra.mxu0 0.0
      %1296 = vmatpush.msra.mxu0 0.0
      %1297 = vmatpush.msra.mxu0 0.0
      %1298 = vmatpush.msra.mxu0 0.0
      %1299 = vmatpush.msra.mxu0 0.0
      %1300 = vmatpush.msra.mxu0 0.0
      %1301 = vmatpush.msra.mxu0 0.0
      %1302 = vmatpush.msra.mxu0 0.0
      %1303 = vmatpush.msra.mxu0 0.0
      %1304 = vmatpush.msra.mxu0 0.0
      %1305 = vmatpush.msra.mxu0 0.0
      %1306 = vmatpush.msra.mxu0 0.0
      %1307 = vmatpush.msra.mxu0 %v1160
      %1308 = vmatmul.f32.gmra.mxu0 %v1290
      %v1309 = vpop.f32.mrf.mxu0
      %v1310 = vadd.f32 0.0, %v1309
      %1311 = vdwg.mxu0
      %v1313 = vsel %vm1177, %v1287, 0
      %1315 = vmatpush.msra.mxu0 0.0
      %1316 = vmatpush.msra.mxu0 0.0
      %1317 = vmatpush.msra.mxu0 0.0
      %1318 = vmatpush.msra.mxu0 0.0
      %1319 = vmatpush.msra.mxu0 0.0
      %1320 = vmatpush.msra.mxu0 0.0
      %1321 = vmatpush.msra.mxu0 0.0
      %1322 = vmatpush.msra.mxu0 0.0
      %1323 = vmatpush.msra.mxu0 0.0
      %1324 = vmatpush.msra.mxu0 0.0
      %1325 = vmatpush.msra.mxu0 0.0
      %1326 = vmatpush.msra.mxu0 0.0
      %1327 = vmatpush.msra.mxu0 0.0
      %1328 = vmatpush.msra.mxu0 0.0
      %1329 = vmatpush.msra.mxu0 0.0
      %1330 = vmatpush.msra.mxu0 %v1162
      %1331 = vmatmul.f32.gmra.mxu0 %v1313
      %v1332 = vpop.f32.mrf.mxu0
      %v1333 = vadd.f32 0.0, %v1332
      %1334 = vdwg.mxu0
      %v1336 = vsel %vm1177, %v1288, 0
      %1338 = vmatpush.msra.mxu0 0.0
      %1339 = vmatpush.msra.mxu0 0.0
      %1340 = vmatpush.msra.mxu0 0.0
      %1341 = vmatpush.msra.mxu0 0.0
      %1342 = vmatpush.msra.mxu0 0.0
      %1343 = vmatpush.msra.mxu0 0.0
      %1344 = vmatpush.msra.mxu0 0.0
      %1345 = vmatpush.msra.mxu0 0.0
      %1346 = vmatpush.msra.mxu0 0.0
      %1347 = vmatpush.msra.mxu0 0.0
      %1348 = vmatpush.msra.mxu0 0.0
      %1349 = vmatpush.msra.mxu0 0.0
      %1350 = vmatpush.msra.mxu0 0.0
      %1351 = vmatpush.msra.mxu0 0.0
      %1352 = vmatpush.msra.mxu0 0.0
      %1353 = vmatpush.msra.mxu0 %v1165
      %1354 = vmatmul.f32.gmra.mxu0 %v1336
      %v1355 = vpop.f32.mrf.mxu0
      %v1356 = vadd.f32 0.0, %v1355
      %1357 = vdwg.mxu0
      %v1358 = vpack.c.bf16 %v1333, %v1310
      %v1359 = vpack.c.bf16 %v1356, %v1356
      %v1360 = vld [vmem:[%s12] sm:$0xf]
      %s1361 = scalar_lea.vmem %s6, 16
      %v1362 = vld [vmem:[%s1361] sm:$0xf]
      %v1363 = vld [vmem:[%s1361 + $0x4] sm:$0xf]
      %v1364 = vld [vmem:[%s1361 + $0x8] sm:$0xf]
      %v1365 = vld [vmem:[%s1361 + $0xc] sm:$0xf]
      %s1366 = scalar_lea.vmem %s7, 1
      %v1367 = vld [vmem:[%s1366] sm:$0x1]
      %v1369 = vperm.slane %v1367, 0
      %v1375 = vunpack.c.l.b16 %v1362
      %v1376 = vunpack.c.l.b16 %v1363
      %v1377 = vunpack.c.l.b16 %v1364
      %v1378 = vunpack.c.l.b16 %v1365
      %v1379 = vpack.c.b16 %v1376, %v1375
      %v1380 = vpack.c.b16 %v1378, %v1377
      %1383 = vmatpush.bf16.msra.mxu0 0
      %1384 = vmatpush.bf16.msra.mxu0 0
      %1385 = vmatpush.bf16.msra.mxu0 0
      %1386 = vmatpush.bf16.msra.mxu0 0
      %1387 = vmatpush.bf16.msra.mxu0 0
      %1388 = vmatpush.bf16.msra.mxu0 0
      %1389 = vmatpush.bf16.msra.mxu0 %v1380
      %1390 = vmatpush.bf16.msra.mxu0 %v1379
      %1391 = vmatmul.bf16.gmra.mxu0 %v1066
      %v1392 = vpop.f32.mrf.mxu0
      %v1393 = vadd.f32 %v1369, %v1392
      %v1394 = vpop.f32.mrf.mxu0
      %v1395 = vadd.f32 %v1369, %v1394
      %1396 = vmatmul.bf16.gmra.mxu0 %v1069
      %v1397 = vpop.f32.mrf.mxu0
      %v1398 = vadd.f32 %v1369, %v1397
      %v1399 = vpop.f32.mrf.mxu0
      %1400 = vdwg.mxu0
      %v1401 = vmul.f32 %v1393, 0.35355338
      %v1402 = vmul.f32 %v1395, 0.35355338
      %v1403 = vmul.f32 %v1398, 0.35355338
      %s1404 = scalar_lea.vmem %s8, 16
      %v1405 = vld [vmem:[%s1404] sm:$0xf]
      %v1406 = vld [vmem:[%s1404 + $0x4] sm:$0xf]
      %v1407 = vld [vmem:[%s1404 + $0x8] sm:$0xf]
      %v1408 = vld [vmem:[%s1404 + $0xc] sm:$0xf]
      %s1409 = scalar_lea.vmem %s9, 1
      %v1410 = vld [vmem:[%s1409] sm:$0x1]
      %v1412 = vperm.slane %v1410, 0
      %v1418 = vunpack.c.l.b16 %v1405
      %v1419 = vunpack.c.l.b16 %v1406
      %v1420 = vunpack.c.l.b16 %v1407
      %v1421 = vunpack.c.l.b16 %v1408
      %v1422 = vpack.c.b16 %v1419, %v1418
      %v1423 = vpack.c.b16 %v1421, %v1420
      %1426 = vmatpush.bf16.msra.mxu0 0
      %1427 = vmatpush.bf16.msra.mxu0 0
      %1428 = vmatpush.bf16.msra.mxu0 0
      %1429 = vmatpush.bf16.msra.mxu0 0
      %1430 = vmatpush.bf16.msra.mxu0 0
      %1431 = vmatpush.bf16.msra.mxu0 0
      %1432 = vmatpush.bf16.msra.mxu0 %v1423
      %1433 = vmatpush.bf16.msra.mxu0 %v1422
      %1434 = vmatmul.bf16.gmra.mxu0 %v1066
      %v1435 = vpop.f32.mrf.mxu0
      %v1436 = vadd.f32 %v1412, %v1435
      %v1437 = vpop.f32.mrf.mxu0
      %v1438 = vadd.f32 %v1412, %v1437
      %1439 = vmatmul.bf16.gmra.mxu0 %v1069
      %v1440 = vpop.f32.mrf.mxu0
      %v1441 = vadd.f32 %v1412, %v1440
      %v1442 = vpop.f32.mrf.mxu0
      %1443 = vdwg.mxu0
      %s1444 = scalar_lea.vmem %s10, 16
      %v1445 = vld [vmem:[%s1444] sm:$0xf]
      %v1446 = vld [vmem:[%s1444 + $0x4] sm:$0xf]
      %v1447 = vld [vmem:[%s1444 + $0x8] sm:$0xf]
      %v1448 = vld [vmem:[%s1444 + $0xc] sm:$0xf]
      %s1449 = scalar_lea.vmem %s11, 1
      %v1450 = vld [vmem:[%s1449] sm:$0x1]
      %v1452 = vperm.slane %v1450, 0
      %v1458 = vunpack.c.l.b16 %v1445
      %v1459 = vunpack.c.l.b16 %v1446
      %v1460 = vunpack.c.l.b16 %v1447
      %v1461 = vunpack.c.l.b16 %v1448
      %v1462 = vpack.c.b16 %v1459, %v1458
      %v1463 = vpack.c.b16 %v1461, %v1460
      %1466 = vmatpush.bf16.msra.mxu0 0
      %1467 = vmatpush.bf16.msra.mxu0 0
      %1468 = vmatpush.bf16.msra.mxu0 0
      %1469 = vmatpush.bf16.msra.mxu0 0
      %1470 = vmatpush.bf16.msra.mxu0 0
      %1471 = vmatpush.bf16.msra.mxu0 0
      %1472 = vmatpush.bf16.msra.mxu0 %v1463
      %1473 = vmatpush.bf16.msra.mxu0 %v1462
      %1474 = vmatmul.bf16.gmra.mxu0 %v1066
      %v1475 = vpop.f32.mrf.mxu0
      %v1476 = vadd.f32 %v1452, %v1475
      %v1477 = vpop.f32.mrf.mxu0
      %v1478 = vadd.f32 %v1452, %v1477
      %1479 = vmatmul.bf16.gmra.mxu0 %v1069
      %v1480 = vpop.f32.mrf.mxu0
      %v1481 = vadd.f32 %v1452, %v1480
      %v1482 = vpop.f32.mrf.mxu0
      %1483 = vdwg.mxu0
      %v1485 = vsel %vm1177, %v1401, 0
      %v1488 = vsel %vm1177, %v1436, 0
      %1490 = vmatpush.xpose.msra.mxu0 0.0
      %1491 = vmatpush.xpose.msra.mxu0 0.0
      %1492 = vmatpush.xpose.msra.mxu0 0.0
      %1493 = vmatpush.xpose.msra.mxu0 0.0
      %1494 = vmatpush.xpose.msra.mxu0 0.0
      %1495 = vmatpush.xpose.msra.mxu0 0.0
      %1496 = vmatpush.xpose.msra.mxu0 0.0
      %1497 = vmatpush.xpose.msra.mxu0 0.0
      %1498 = vmatpush.xpose.msra.mxu0 0.0
      %1499 = vmatpush.xpose.msra.mxu0 0.0
      %1500 = vmatpush.xpose.msra.mxu0 0.0
      %1501 = vmatpush.xpose.msra.mxu0 0.0
      %1502 = vmatpush.xpose.msra.mxu0 0.0
      %1503 = vmatpush.xpose.msra.mxu0 0.0
      %1504 = vmatpush.xpose.msra.mxu0 0.0
      %1505 = vmatpush.xpose.msra.mxu0 %v1488
      %1506 = vmatmul.f32.gmra.mxu0 %v1485
      %v1507 = vpop.f32.mrf.mxu0
      %v1508 = vadd.f32 %v1171, %v1507
      %1509 = vdwg.mxu0
      %v1511 = vsel %vm1177, %v1402, 0
      %v1514 = vsel %vm1177, %v1438, 0
      %1516 = vmatpush.xpose.msra.mxu0 0.0
      %1517 = vmatpush.xpose.msra.mxu0 0.0
      %1518 = vmatpush.xpose.msra.mxu0 0.0
      %1519 = vmatpush.xpose.msra.mxu0 0.0
      %1520 = vmatpush.xpose.msra.mxu0 0.0
      %1521 = vmatpush.xpose.msra.mxu0 0.0
      %1522 = vmatpush.xpose.msra.mxu0 0.0
      %1523 = vmatpush.xpose.msra.mxu0 0.0
      %1524 = vmatpush.xpose.msra.mxu0 0.0
      %1525 = vmatpush.xpose.msra.mxu0 0.0
      %1526 = vmatpush.xpose.msra.mxu0 0.0
      %1527 = vmatpush.xpose.msra.mxu0 0.0
      %1528 = vmatpush.xpose.msra.mxu0 0.0
      %1529 = vmatpush.xpose.msra.mxu0 0.0
      %1530 = vmatpush.xpose.msra.mxu0 0.0
      %1531 = vmatpush.xpose.msra.mxu0 %v1514
      %1532 = vmatmul.f32.gmra.mxu0 %v1511
      %v1533 = vpop.f32.mrf.mxu0
      %v1534 = vadd.f32 %v1172, %v1533
      %1535 = vdwg.mxu0
      %v1537 = vsel %vm1177, %v1403, 0
      %v1540 = vsel %vm1177, %v1441, 0
      %1542 = vmatpush.xpose.msra.mxu0 0.0
      %1543 = vmatpush.xpose.msra.mxu0 0.0
      %1544 = vmatpush.xpose.msra.mxu0 0.0
      %1545 = vmatpush.xpose.msra.mxu0 0.0
      %1546 = vmatpush.xpose.msra.mxu0 0.0
      %1547 = vmatpush.xpose.msra.mxu0 0.0
      %1548 = vmatpush.xpose.msra.mxu0 0.0
      %1549 = vmatpush.xpose.msra.mxu0 0.0
      %1550 = vmatpush.xpose.msra.mxu0 0.0
      %1551 = vmatpush.xpose.msra.mxu0 0.0
      %1552 = vmatpush.xpose.msra.mxu0 0.0
      %1553 = vmatpush.xpose.msra.mxu0 0.0
      %1554 = vmatpush.xpose.msra.mxu0 0.0
      %1555 = vmatpush.xpose.msra.mxu0 0.0
      %1556 = vmatpush.xpose.msra.mxu0 0.0
      %1557 = vmatpush.xpose.msra.mxu0 %v1540
      %1558 = vmatmul.f32.gmra.mxu0 %v1537
      %v1559 = vpop.f32.mrf.mxu0
      %v1560 = vadd.f32 %v1173, %v1559
      %1561 = vdwg.mxu0
      %v1562 = vsel %vm1177, %v1508, -inf
      %1563 = vmax.xlane.f32.xlu0 %v1562
      %v1564 = vpop.xlane.xlu0 %1563
      %v1565 = vsel %vm1177, %v1534, -inf
      %1566 = vmax.xlane.f32.xlu0 %v1565
      %v1567 = vpop.xlane.xlu0 %1566
      %v1568 = vsel %vm1177, %v1560, -inf
      %1569 = vmax.xlane.f32.xlu0 %v1568
      %v1570 = vpop.xlane.xlu0 %1569
      %v1571 = vsub.f32 %v1508, %v1564
      %v1572 = vsub.f32 %v1534, %v1567
      %v1573 = vsub.f32 %v1560, %v1570
      %v1574 = vmul.f32 %v1571, 1.442695
      %v1575 = vpow.pop %v1574
      %v1576 = vmul.f32 %v1572, 1.442695
      %v1577 = vpow.pop %v1576
      %v1578 = vmul.f32 %v1573, 1.442695
      %v1579 = vpow.pop %v1578
      %v1580 = vsel %vm1177, %v1575, 0.0
      %1581 = vadd.xlane.f32.xlu0 %v1580
      %v1582 = vpop.xlane.xlu0 %1581
      %v1583 = vsel %vm1177, %v1577, 0.0
      %1584 = vadd.xlane.f32.xlu0 %v1583
      %v1585 = vpop.xlane.xlu0 %1584
      %v1586 = vsel %vm1177, %v1579, 0.0
      %1587 = vadd.xlane.f32.xlu0 %v1586
      %v1588 = vpop.xlane.xlu0 %1587
      %v1589 = vrcp.pop %v1582
      %v1590 = vrcp.pop %v1585
      %v1591 = vrcp.pop %v1588
      %v1592 = vmul.f32 %v1575, %v1589
      %v1593 = vmul.f32 %v1577, %v1590
      %v1594 = vmul.f32 %v1579, %v1591
      %v1596 = vsel %vm1177, %v1592, 0
      %1598 = vmatpush.msra.mxu0 0.0
      %1599 = vmatpush.msra.mxu0 0.0
      %1600 = vmatpush.msra.mxu0 0.0
      %1601 = vmatpush.msra.mxu0 0.0
      %1602 = vmatpush.msra.mxu0 0.0
      %1603 = vmatpush.msra.mxu0 0.0
      %1604 = vmatpush.msra.mxu0 0.0
      %1605 = vmatpush.msra.mxu0 0.0
      %1606 = vmatpush.msra.mxu0 0.0
      %1607 = vmatpush.msra.mxu0 0.0
      %1608 = vmatpush.msra.mxu0 0.0
      %1609 = vmatpush.msra.mxu0 0.0
      %1610 = vmatpush.msra.mxu0 0.0
      %1611 = vmatpush.msra.mxu0 0.0
      %1612 = vmatpush.msra.mxu0 0.0
      %1613 = vmatpush.msra.mxu0 %v1476
      %1614 = vmatmul.f32.gmra.mxu0 %v1596
      %v1615 = vpop.f32.mrf.mxu0
      %v1616 = vadd.f32 0.0, %v1615
      %1617 = vdwg.mxu0
      %v1619 = vsel %vm1177, %v1593, 0
      %1621 = vmatpush.msra.mxu0 0.0
      %1622 = vmatpush.msra.mxu0 0.0
      %1623 = vmatpush.msra.mxu0 0.0
      %1624 = vmatpush.msra.mxu0 0.0
      %1625 = vmatpush.msra.mxu0 0.0
      %1626 = vmatpush.msra.mxu0 0.0
      %1627 = vmatpush.msra.mxu0 0.0
      %1628 = vmatpush.msra.mxu0 0.0
      %1629 = vmatpush.msra.mxu0 0.0
      %1630 = vmatpush.msra.mxu0 0.0
      %1631 = vmatpush.msra.mxu0 0.0
      %1632 = vmatpush.msra.mxu0 0.0
      %1633 = vmatpush.msra.mxu0 0.0
      %1634 = vmatpush.msra.mxu0 0.0
      %1635 = vmatpush.msra.mxu0 0.0
      %1636 = vmatpush.msra.mxu0 %v1478
      %1637 = vmatmul.f32.gmra.mxu0 %v1619
      %v1638 = vpop.f32.mrf.mxu0
      %v1639 = vadd.f32 0.0, %v1638
      %1640 = vdwg.mxu0
      %v1642 = vsel %vm1177, %v1594, 0
      %1644 = vmatpush.msra.mxu0 0.0
      %1645 = vmatpush.msra.mxu0 0.0
      %1646 = vmatpush.msra.mxu0 0.0
      %1647 = vmatpush.msra.mxu0 0.0
      %1648 = vmatpush.msra.mxu0 0.0
      %1649 = vmatpush.msra.mxu0 0.0
      %1650 = vmatpush.msra.mxu0 0.0
      %1651 = vmatpush.msra.mxu0 0.0
      %1652 = vmatpush.msra.mxu0 0.0
      %1653 = vmatpush.msra.mxu0 0.0
      %1654 = vmatpush.msra.mxu0 0.0
      %1655 = vmatpush.msra.mxu0 0.0
      %1656 = vmatpush.msra.mxu0 0.0
      %1657 = vmatpush.msra.mxu0 0.0
      %1658 = vmatpush.msra.mxu0 0.0
      %1659 = vmatpush.msra.mxu0 %v1481
      %1660 = vmatmul.f32.gmra.mxu0 %v1642
      %v1661 = vpop.f32.mrf.mxu0
      %v1662 = vadd.f32 0.0, %v1661
      %1663 = vdwg.mxu0
      %v1664 = vpack.c.bf16 %v1639, %v1616
      %v1665 = vpack.c.bf16 %v1662, %v1662
      %s1666 = scalar_lea.vmem %s12, 4
      %v1667 = vld [vmem:[%s1666] sm:$0xf]
      %v1669 = vsel %vm1177, %v1664, 0
      %v1672 = vsel %vm1177, %v1665, 0
      %vm1674 = vcmask 1043456
      %v1676 = vsel %vm1674, %v1667, 0
      %1678 = vmatpush.bf16.msra.mxu0 0
      %1679 = vmatpush.bf16.msra.mxu0 0
      %1680 = vmatpush.bf16.msra.mxu0 0
      %1681 = vmatpush.bf16.msra.mxu0 0
      %1682 = vmatpush.bf16.msra.mxu0 0
      %1683 = vmatpush.bf16.msra.mxu0 0
      %1684 = vmatpush.bf16.msra.mxu0 0
      %1685 = vmatpush.bf16.msra.mxu0 %v1676
      %1686 = vmatmul.bf16.gmra.mxu0 %v1669
      %v1687 = vpop.f32.mrf.mxu0
      %v1688 = vadd.f32 0.0, %v1687
      %v1689 = vpop.f32.mrf.mxu0
      %v1690 = vadd.f32 0.0, %v1689
      %1691 = vmatmul.bf16.gmra.mxu0 %v1672
      %v1692 = vpop.f32.mrf.mxu0
      %v1693 = vadd.f32 0.0, %v1692
      %v1694 = vpop.f32.mrf.mxu0
      %1695 = vdwg.mxu0
      %v1697 = vsel %vm1177, %v1358, 0
      %v1700 = vsel %vm1177, %v1359, 0
      %v1703 = vsel %vm1674, %v1360, 0
      %1705 = vmatpush.bf16.msra.mxu0 0
      %1706 = vmatpush.bf16.msra.mxu0 0
      %1707 = vmatpush.bf16.msra.mxu0 0
      %1708 = vmatpush.bf16.msra.mxu0 0
      %1709 = vmatpush.bf16.msra.mxu0 0
      %1710 = vmatpush.bf16.msra.mxu0 0
      %1711 = vmatpush.bf16.msra.mxu0 0
      %1712 = vmatpush.bf16.msra.mxu0 %v1703
      %1713 = vmatmul.bf16.gmra.mxu0 %v1697
      %v1714 = vpop.f32.mrf.mxu0
      %v1715 = vadd.f32 %v1688, %v1714
      %v1716 = vpop.f32.mrf.mxu0
      %v1717 = vadd.f32 %v1690, %v1716
      %1718 = vmatmul.bf16.gmra.mxu0 %v1700
      %v1719 = vpop.f32.mrf.mxu0
      %v1720 = vadd.f32 %v1693, %v1719
      %v1721 = vpop.f32.mrf.mxu0
      %1722 = vdwg.mxu0
      %s1723 = scalar_lea.vmem %s6, 32
      %v1724 = vld [vmem:[%s1723] sm:$0xf]
      %v1725 = vld [vmem:[%s1723 + $0x4] sm:$0xf]
      %v1726 = vld [vmem:[%s1723 + $0x8] sm:$0xf]
      %v1727 = vld [vmem:[%s1723 + $0xc] sm:$0xf]
      %s1728 = scalar_lea.vmem %s7, 2
      %v1729 = vld [vmem:[%s1728] sm:$0x1]
      %v1731 = vperm.slane %v1729, 0
      %v1737 = vunpack.c.l.b16 %v1724
      %v1738 = vunpack.c.l.b16 %v1725
      %v1739 = vunpack.c.l.b16 %v1726
      %v1740 = vunpack.c.l.b16 %v1727
      %v1741 = vpack.c.b16 %v1738, %v1737
      %v1742 = vpack.c.b16 %v1740, %v1739
      %1745 = vmatpush.bf16.msra.mxu0 0
      %1746 = vmatpush.bf16.msra.mxu0 0
      %1747 = vmatpush.bf16.msra.mxu0 0
      %1748 = vmatpush.bf16.msra.mxu0 0
      %1749 = vmatpush.bf16.msra.mxu0 0
      %1750 = vmatpush.bf16.msra.mxu0 0
      %1751 = vmatpush.bf16.msra.mxu0 %v1742
      %1752 = vmatpush.bf16.msra.mxu0 %v1741
      %1753 = vmatmul.bf16.gmra.mxu0 %v1066
      %v1754 = vpop.f32.mrf.mxu0
      %v1755 = vadd.f32 %v1731, %v1754
      %v1756 = vpop.f32.mrf.mxu0
      %v1757 = vadd.f32 %v1731, %v1756
      %1758 = vmatmul.bf16.gmra.mxu0 %v1069
      %v1759 = vpop.f32.mrf.mxu0
      %v1760 = vadd.f32 %v1731, %v1759
      %v1761 = vpop.f32.mrf.mxu0
      %1762 = vdwg.mxu0
      %v1763 = vmul.f32 %v1755, 0.35355338
      %v1764 = vmul.f32 %v1757, 0.35355338
      %v1765 = vmul.f32 %v1760, 0.35355338
      %s1766 = scalar_lea.vmem %s8, 32
      %v1767 = vld [vmem:[%s1766] sm:$0xf]
      %v1768 = vld [vmem:[%s1766 + $0x4] sm:$0xf]
      %v1769 = vld [vmem:[%s1766 + $0x8] sm:$0xf]
      %v1770 = vld [vmem:[%s1766 + $0xc] sm:$0xf]
      %s1771 = scalar_lea.vmem %s9, 2
      %v1772 = vld [vmem:[%s1771] sm:$0x1]
      %v1774 = vperm.slane %v1772, 0
      %v1780 = vunpack.c.l.b16 %v1767
      %v1781 = vunpack.c.l.b16 %v1768
      %v1782 = vunpack.c.l.b16 %v1769
      %v1783 = vunpack.c.l.b16 %v1770
      %v1784 = vpack.c.b16 %v1781, %v1780
      %v1785 = vpack.c.b16 %v1783, %v1782
      %1788 = vmatpush.bf16.msra.mxu0 0
      %1789 = vmatpush.bf16.msra.mxu0 0
      %1790 = vmatpush.bf16.msra.mxu0 0
      %1791 = vmatpush.bf16.msra.mxu0 0
      %1792 = vmatpush.bf16.msra.mxu0 0
      %1793 = vmatpush.bf16.msra.mxu0 0
      %1794 = vmatpush.bf16.msra.mxu0 %v1785
      %1795 = vmatpush.bf16.msra.mxu0 %v1784
      %1796 = vmatmul.bf16.gmra.mxu0 %v1066
      %v1797 = vpop.f32.mrf.mxu0
      %v1798 = vadd.f32 %v1774, %v1797
      %v1799 = vpop.f32.mrf.mxu0
      %v1800 = vadd.f32 %v1774, %v1799
      %1801 = vmatmul.bf16.gmra.mxu0 %v1069
      %v1802 = vpop.f32.mrf.mxu0
      %v1803 = vadd.f32 %v1774, %v1802
      %v1804 = vpop.f32.mrf.mxu0
      %1805 = vdwg.mxu0
      %s1806 = scalar_lea.vmem %s10, 32
      %v1807 = vld [vmem:[%s1806] sm:$0xf]
      %v1808 = vld [vmem:[%s1806 + $0x4] sm:$0xf]
      %v1809 = vld [vmem:[%s1806 + $0x8] sm:$0xf]
      %v1810 = vld [vmem:[%s1806 + $0xc] sm:$0xf]
      %s1811 = scalar_lea.vmem %s11, 2
      %v1812 = vld [vmem:[%s1811] sm:$0x1]
      %v1814 = vperm.slane %v1812, 0
      %v1820 = vunpack.c.l.b16 %v1807
      %v1821 = vunpack.c.l.b16 %v1808
      %v1822 = vunpack.c.l.b16 %v1809
      %v1823 = vunpack.c.l.b16 %v1810
      %v1824 = vpack.c.b16 %v1821, %v1820
      %v1825 = vpack.c.b16 %v1823, %v1822
      %1828 = vmatpush.bf16.msra.mxu0 0
      %1829 = vmatpush.bf16.msra.mxu0 0
      %1830 = vmatpush.bf16.msra.mxu0 0
      %1831 = vmatpush.bf16.msra.mxu0 0
      %1832 = vmatpush.bf16.msra.mxu0 0
      %1833 = vmatpush.bf16.msra.mxu0 0
      %1834 = vmatpush.bf16.msra.mxu0 %v1825
      %1835 = vmatpush.bf16.msra.mxu0 %v1824
      %1836 = vmatmul.bf16.gmra.mxu0 %v1066
      %v1837 = vpop.f32.mrf.mxu0
      %v1838 = vadd.f32 %v1814, %v1837
      %v1839 = vpop.f32.mrf.mxu0
      %v1840 = vadd.f32 %v1814, %v1839
      %1841 = vmatmul.bf16.gmra.mxu0 %v1069
      %v1842 = vpop.f32.mrf.mxu0
      %v1843 = vadd.f32 %v1814, %v1842
      %v1844 = vpop.f32.mrf.mxu0
      %1845 = vdwg.mxu0
      %v1847 = vsel %vm1177, %v1763, 0
      %v1850 = vsel %vm1177, %v1798, 0
      %1852 = vmatpush.xpose.msra.mxu0 0.0
      %1853 = vmatpush.xpose.msra.mxu0 0.0
      %1854 = vmatpush.xpose.msra.mxu0 0.0
      %1855 = vmatpush.xpose.msra.mxu0 0.0
      %1856 = vmatpush.xpose.msra.mxu0 0.0
      %1857 = vmatpush.xpose.msra.mxu0 0.0
      %1858 = vmatpush.xpose.msra.mxu0 0.0
      %1859 = vmatpush.xpose.msra.mxu0 0.0
      %1860 = vmatpush.xpose.msra.mxu0 0.0
      %1861 = vmatpush.xpose.msra.mxu0 0.0
      %1862 = vmatpush.xpose.msra.mxu0 0.0
      %1863 = vmatpush.xpose.msra.mxu0 0.0
      %1864 = vmatpush.xpose.msra.mxu0 0.0
      %1865 = vmatpush.xpose.msra.mxu0 0.0
      %1866 = vmatpush.xpose.msra.mxu0 0.0
      %1867 = vmatpush.xpose.msra.mxu0 %v1850
      %1868 = vmatmul.f32.gmra.mxu0 %v1847
      %v1869 = vpop.f32.mrf.mxu0
      %v1870 = vadd.f32 %v1171, %v1869
      %1871 = vdwg.mxu0
      %v1873 = vsel %vm1177, %v1764, 0
      %v1876 = vsel %vm1177, %v1800, 0
      %1878 = vmatpush.xpose.msra.mxu0 0.0
      %1879 = vmatpush.xpose.msra.mxu0 0.0
      %1880 = vmatpush.xpose.msra.mxu0 0.0
      %1881 = vmatpush.xpose.msra.mxu0 0.0
      %1882 = vmatpush.xpose.msra.mxu0 0.0
      %1883 = vmatpush.xpose.msra.mxu0 0.0
      %1884 = vmatpush.xpose.msra.mxu0 0.0
      %1885 = vmatpush.xpose.msra.mxu0 0.0
      %1886 = vmatpush.xpose.msra.mxu0 0.0
      %1887 = vmatpush.xpose.msra.mxu0 0.0
      %1888 = vmatpush.xpose.msra.mxu0 0.0
      %1889 = vmatpush.xpose.msra.mxu0 0.0
      %1890 = vmatpush.xpose.msra.mxu0 0.0
      %1891 = vmatpush.xpose.msra.mxu0 0.0
      %1892 = vmatpush.xpose.msra.mxu0 0.0
      %1893 = vmatpush.xpose.msra.mxu0 %v1876
      %1894 = vmatmul.f32.gmra.mxu0 %v1873
      %v1895 = vpop.f32.mrf.mxu0
      %v1896 = vadd.f32 %v1172, %v1895
      %1897 = vdwg.mxu0
      %v1899 = vsel %vm1177, %v1765, 0
      %v1902 = vsel %vm1177, %v1803, 0
      %1904 = vmatpush.xpose.msra.mxu0 0.0
      %1905 = vmatpush.xpose.msra.mxu0 0.0
      %1906 = vmatpush.xpose.msra.mxu0 0.0
      %1907 = vmatpush.xpose.msra.mxu0 0.0
      %1908 = vmatpush.xpose.msra.mxu0 0.0
      %1909 = vmatpush.xpose.msra.mxu0 0.0
      %1910 = vmatpush.xpose.msra.mxu0 0.0
      %1911 = vmatpush.xpose.msra.mxu0 0.0
      %1912 = vmatpush.xpose.msra.mxu0 0.0
      %1913 = vmatpush.xpose.msra.mxu0 0.0
      %1914 = vmatpush.xpose.msra.mxu0 0.0
      %1915 = vmatpush.xpose.msra.mxu0 0.0
      %1916 = vmatpush.xpose.msra.mxu0 0.0
      %1917 = vmatpush.xpose.msra.mxu0 0.0
      %1918 = vmatpush.xpose.msra.mxu0 0.0
      %1919 = vmatpush.xpose.msra.mxu0 %v1902
      %1920 = vmatmul.f32.gmra.mxu0 %v1899
      %v1921 = vpop.f32.mrf.mxu0
      %v1922 = vadd.f32 %v1173, %v1921
      %1923 = vdwg.mxu0
      %v1924 = vsel %vm1177, %v1870, -inf
      %1925 = vmax.xlane.f32.xlu0 %v1924
      %v1926 = vpop.xlane.xlu0 %1925
      %v1927 = vsel %vm1177, %v1896, -inf
      %1928 = vmax.xlane.f32.xlu0 %v1927
      %v1929 = vpop.xlane.xlu0 %1928
      %v1930 = vsel %vm1177, %v1922, -inf
      %1931 = vmax.xlane.f32.xlu0 %v1930
      %v1932 = vpop.xlane.xlu0 %1931
      %v1933 = vsub.f32 %v1870, %v1926
      %v1934 = vsub.f32 %v1896, %v1929
      %v1935 = vsub.f32 %v1922, %v1932
      %v1936 = vmul.f32 %v1933, 1.442695
      %v1937 = vpow.pop %v1936
      %v1938 = vmul.f32 %v1934, 1.442695
      %v1939 = vpow.pop %v1938
      %v1940 = vmul.f32 %v1935, 1.442695
      %v1941 = vpow.pop %v1940
      %v1942 = vsel %vm1177, %v1937, 0.0
      %1943 = vadd.xlane.f32.xlu0 %v1942
      %v1944 = vpop.xlane.xlu0 %1943
      %v1945 = vsel %vm1177, %v1939, 0.0
      %1946 = vadd.xlane.f32.xlu0 %v1945
      %v1947 = vpop.xlane.xlu0 %1946
      %v1948 = vsel %vm1177, %v1941, 0.0
      %1949 = vadd.xlane.f32.xlu0 %v1948
      %v1950 = vpop.xlane.xlu0 %1949
      %v1951 = vrcp.pop %v1944
      %v1952 = vrcp.pop %v1947
      %v1953 = vrcp.pop %v1950
      %v1954 = vmul.f32 %v1937, %v1951
      %v1955 = vmul.f32 %v1939, %v1952
      %v1956 = vmul.f32 %v1941, %v1953
      %v1958 = vsel %vm1177, %v1954, 0
      %1960 = vmatpush.msra.mxu0 0.0
      %1961 = vmatpush.msra.mxu0 0.0
      %1962 = vmatpush.msra.mxu0 0.0
      %1963 = vmatpush.msra.mxu0 0.0
      %1964 = vmatpush.msra.mxu0 0.0
      %1965 = vmatpush.msra.mxu0 0.0
      %1966 = vmatpush.msra.mxu0 0.0
      %1967 = vmatpush.msra.mxu0 0.0
      %1968 = vmatpush.msra.mxu0 0.0
      %1969 = vmatpush.msra.mxu0 0.0
      %1970 = vmatpush.msra.mxu0 0.0
      %1971 = vmatpush.msra.mxu0 0.0
      %1972 = vmatpush.msra.mxu0 0.0
      %1973 = vmatpush.msra.mxu0 0.0
      %1974 = vmatpush.msra.mxu0 0.0
      %1975 = vmatpush.msra.mxu0 %v1838
      %1976 = vmatmul.f32.gmra.mxu0 %v1958
      %v1977 = vpop.f32.mrf.mxu0
      %v1978 = vadd.f32 0.0, %v1977
      %1979 = vdwg.mxu0
      %v1981 = vsel %vm1177, %v1955, 0
      %1983 = vmatpush.msra.mxu0 0.0
      %1984 = vmatpush.msra.mxu0 0.0
      %1985 = vmatpush.msra.mxu0 0.0
      %1986 = vmatpush.msra.mxu0 0.0
      %1987 = vmatpush.msra.mxu0 0.0
      %1988 = vmatpush.msra.mxu0 0.0
      %1989 = vmatpush.msra.mxu0 0.0
      %1990 = vmatpush.msra.mxu0 0.0
      %1991 = vmatpush.msra.mxu0 0.0
      %1992 = vmatpush.msra.mxu0 0.0
      %1993 = vmatpush.msra.mxu0 0.0
      %1994 = vmatpush.msra.mxu0 0.0
      %1995 = vmatpush.msra.mxu0 0.0
      %1996 = vmatpush.msra.mxu0 0.0
      %1997 = vmatpush.msra.mxu0 0.0
      %1998 = vmatpush.msra.mxu0 %v1840
      %1999 = vmatmul.f32.gmra.mxu0 %v1981
      %v2000 = vpop.f32.mrf.mxu0
      %v2001 = vadd.f32 0.0, %v2000
      %2002 = vdwg.mxu0
      %v2004 = vsel %vm1177, %v1956, 0
      %2006 = vmatpush.msra.mxu0 0.0
      %2007 = vmatpush.msra.mxu0 0.0
      %2008 = vmatpush.msra.mxu0 0.0
      %2009 = vmatpush.msra.mxu0 0.0
      %2010 = vmatpush.msra.mxu0 0.0
      %2011 = vmatpush.msra.mxu0 0.0
      %2012 = vmatpush.msra.mxu0 0.0
      %2013 = vmatpush.msra.mxu0 0.0
      %2014 = vmatpush.msra.mxu0 0.0
      %2015 = vmatpush.msra.mxu0 0.0
      %2016 = vmatpush.msra.mxu0 0.0
      %2017 = vmatpush.msra.mxu0 0.0
      %2018 = vmatpush.msra.mxu0 0.0
      %2019 = vmatpush.msra.mxu0 0.0
      %2020 = vmatpush.msra.mxu0 0.0
      %2021 = vmatpush.msra.mxu0 %v1843
      %2022 = vmatmul.f32.gmra.mxu0 %v2004
      %v2023 = vpop.f32.mrf.mxu0
      %v2024 = vadd.f32 0.0, %v2023
      %2025 = vdwg.mxu0
      %v2026 = vpack.c.bf16 %v2001, %v1978
      %v2027 = vpack.c.bf16 %v2024, %v2024
      %s2028 = scalar_lea.vmem %s12, 8
      %v2029 = vld [vmem:[%s2028] sm:$0xf]
      %v2031 = vsel %vm1177, %v2026, 0
      %v2034 = vsel %vm1177, %v2027, 0
      %v2037 = vsel %vm1674, %v2029, 0
      %2039 = vmatpush.bf16.msra.mxu0 0
      %2040 = vmatpush.bf16.msra.mxu0 0
      %2041 = vmatpush.bf16.msra.mxu0 0
      %2042 = vmatpush.bf16.msra.mxu0 0
      %2043 = vmatpush.bf16.msra.mxu0 0
      %2044 = vmatpush.bf16.msra.mxu0 0
      %2045 = vmatpush.bf16.msra.mxu0 0
      %2046 = vmatpush.bf16.msra.mxu0 %v2037
      %2047 = vmatmul.bf16.gmra.mxu0 %v2031
      %v2048 = vpop.f32.mrf.mxu0
      %v2049 = vadd.f32 0.0, %v2048
      %v2050 = vpop.f32.mrf.mxu0
      %v2051 = vadd.f32 0.0, %v2050
      %2052 = vmatmul.bf16.gmra.mxu0 %v2034
      %v2053 = vpop.f32.mrf.mxu0
      %v2054 = vadd.f32 0.0, %v2053
      %v2055 = vpop.f32.mrf.mxu0
      %2056 = vdwg.mxu0
      %v2057 = vadd.f32 %v1715, %v2049
      %v2058 = vadd.f32 %v1717, %v2051
      %v2059 = vadd.f32 %v1720, %v2054
      %s2060 = scalar_lea.vmem %s6, 48
      %v2061 = vld [vmem:[%s2060] sm:$0xf]
      %v2062 = vld [vmem:[%s2060 + $0x4] sm:$0xf]
      %v2063 = vld [vmem:[%s2060 + $0x8] sm:$0xf]
      %v2064 = vld [vmem:[%s2060 + $0xc] sm:$0xf]
      %s2065 = scalar_lea.vmem %s7, 3
      %v2066 = vld [vmem:[%s2065] sm:$0x1]
      %v2068 = vperm.slane %v2066, 0
      %v2074 = vunpack.c.l.b16 %v2061
      %v2075 = vunpack.c.l.b16 %v2062
      %v2076 = vunpack.c.l.b16 %v2063
      %v2077 = vunpack.c.l.b16 %v2064
      %v2078 = vpack.c.b16 %v2075, %v2074
      %v2079 = vpack.c.b16 %v2077, %v2076
      %2082 = vmatpush.bf16.msra.mxu0 0
      %2083 = vmatpush.bf16.msra.mxu0 0
      %2084 = vmatpush.bf16.msra.mxu0 0
      %2085 = vmatpush.bf16.msra.mxu0 0
      %2086 = vmatpush.bf16.msra.mxu0 0
      %2087 = vmatpush.bf16.msra.mxu0 0
      %2088 = vmatpush.bf16.msra.mxu0 %v2079
      %2089 = vmatpush.bf16.msra.mxu0 %v2078
      %2090 = vmatmul.bf16.gmra.mxu0 %v1066
      %v2091 = vpop.f32.mrf.mxu0
      %v2092 = vadd.f32 %v2068, %v2091
      %v2093 = vpop.f32.mrf.mxu0
      %v2094 = vadd.f32 %v2068, %v2093
      %2095 = vmatmul.bf16.gmra.mxu0 %v1069
      %v2096 = vpop.f32.mrf.mxu0
      %v2097 = vadd.f32 %v2068, %v2096
      %v2098 = vpop.f32.mrf.mxu0
      %2099 = vdwg.mxu0
      %v2100 = vmul.f32 %v2092, 0.35355338
      %v2101 = vmul.f32 %v2094, 0.35355338
      %v2102 = vmul.f32 %v2097, 0.35355338
      %s2103 = scalar_lea.vmem %s8, 48
      %v2104 = vld [vmem:[%s2103] sm:$0xf]
      %v2105 = vld [vmem:[%s2103 + $0x4] sm:$0xf]
      %v2106 = vld [vmem:[%s2103 + $0x8] sm:$0xf]
      %v2107 = vld [vmem:[%s2103 + $0xc] sm:$0xf]
      %s2108 = scalar_lea.vmem %s9, 3
      %v2109 = vld [vmem:[%s2108] sm:$0x1]
      %v2111 = vperm.slane %v2109, 0
      %v2117 = vunpack.c.l.b16 %v2104
      %v2118 = vunpack.c.l.b16 %v2105
      %v2119 = vunpack.c.l.b16 %v2106
      %v2120 = vunpack.c.l.b16 %v2107
      %v2121 = vpack.c.b16 %v2118, %v2117
      %v2122 = vpack.c.b16 %v2120, %v2119
      %2125 = vmatpush.bf16.msra.mxu0 0
      %2126 = vmatpush.bf16.msra.mxu0 0
      %2127 = vmatpush.bf16.msra.mxu0 0
      %2128 = vmatpush.bf16.msra.mxu0 0
      %2129 = vmatpush.bf16.msra.mxu0 0
      %2130 = vmatpush.bf16.msra.mxu0 0
      %2131 = vmatpush.bf16.msra.mxu0 %v2122
      %2132 = vmatpush.bf16.msra.mxu0 %v2121
      %2133 = vmatmul.bf16.gmra.mxu0 %v1066
      %v2134 = vpop.f32.mrf.mxu0
      %v2135 = vadd.f32 %v2111, %v2134
      %v2136 = vpop.f32.mrf.mxu0
      %v2137 = vadd.f32 %v2111, %v2136
      %2138 = vmatmul.bf16.gmra.mxu0 %v1069
      %v2139 = vpop.f32.mrf.mxu0
      %v2140 = vadd.f32 %v2111, %v2139
      %v2141 = vpop.f32.mrf.mxu0
      %2142 = vdwg.mxu0
      %s2143 = scalar_lea.vmem %s10, 48
      %v2144 = vld [vmem:[%s2143] sm:$0xf]
      %v2145 = vld [vmem:[%s2143 + $0x4] sm:$0xf]
      %v2146 = vld [vmem:[%s2143 + $0x8] sm:$0xf]
      %v2147 = vld [vmem:[%s2143 + $0xc] sm:$0xf]
      %s2148 = scalar_lea.vmem %s11, 3
      %v2149 = vld [vmem:[%s2148] sm:$0x1]
      %v2151 = vperm.slane %v2149, 0
      %v2157 = vunpack.c.l.b16 %v2144
      %v2158 = vunpack.c.l.b16 %v2145
      %v2159 = vunpack.c.l.b16 %v2146
      %v2160 = vunpack.c.l.b16 %v2147
      %v2161 = vpack.c.b16 %v2158, %v2157
      %v2162 = vpack.c.b16 %v2160, %v2159
      %2165 = vmatpush.bf16.msra.mxu0 0
      %2166 = vmatpush.bf16.msra.mxu0 0
      %2167 = vmatpush.bf16.msra.mxu0 0
      %2168 = vmatpush.bf16.msra.mxu0 0
      %2169 = vmatpush.bf16.msra.mxu0 0
      %2170 = vmatpush.bf16.msra.mxu0 0
      %2171 = vmatpush.bf16.msra.mxu0 %v2162
      %2172 = vmatpush.bf16.msra.mxu0 %v2161
      %2173 = vmatmul.bf16.gmra.mxu0 %v1066
      %v2174 = vpop.f32.mrf.mxu0
      %v2175 = vadd.f32 %v2151, %v2174
      %v2176 = vpop.f32.mrf.mxu0
      %v2177 = vadd.f32 %v2151, %v2176
      %2178 = vmatmul.bf16.gmra.mxu0 %v1069
      %v2179 = vpop.f32.mrf.mxu0
      %v2180 = vadd.f32 %v2151, %v2179
      %v2181 = vpop.f32.mrf.mxu0
      %2182 = vdwg.mxu0
      %v2184 = vsel %vm1177, %v2100, 0
      %v2187 = vsel %vm1177, %v2135, 0
      %2189 = vmatpush.xpose.msra.mxu0 0.0
      %2190 = vmatpush.xpose.msra.mxu0 0.0
      %2191 = vmatpush.xpose.msra.mxu0 0.0
      %2192 = vmatpush.xpose.msra.mxu0 0.0
      %2193 = vmatpush.xpose.msra.mxu0 0.0
      %2194 = vmatpush.xpose.msra.mxu0 0.0
      %2195 = vmatpush.xpose.msra.mxu0 0.0
      %2196 = vmatpush.xpose.msra.mxu0 0.0
      %2197 = vmatpush.xpose.msra.mxu0 0.0
      %2198 = vmatpush.xpose.msra.mxu0 0.0
      %2199 = vmatpush.xpose.msra.mxu0 0.0
      %2200 = vmatpush.xpose.msra.mxu0 0.0
      %2201 = vmatpush.xpose.msra.mxu0 0.0
      %2202 = vmatpush.xpose.msra.mxu0 0.0
      %2203 = vmatpush.xpose.msra.mxu0 0.0
      %2204 = vmatpush.xpose.msra.mxu0 %v2187
      %2205 = vmatmul.f32.gmra.mxu0 %v2184
      %v2206 = vpop.f32.mrf.mxu0
      %v2207 = vadd.f32 %v1171, %v2206
      %2208 = vdwg.mxu0
      %v2210 = vsel %vm1177, %v2101, 0
      %v2213 = vsel %vm1177, %v2137, 0
      %2215 = vmatpush.xpose.msra.mxu0 0.0
      %2216 = vmatpush.xpose.msra.mxu0 0.0
      %2217 = vmatpush.xpose.msra.mxu0 0.0
      %2218 = vmatpush.xpose.msra.mxu0 0.0
      %2219 = vmatpush.xpose.msra.mxu0 0.0
      %2220 = vmatpush.xpose.msra.mxu0 0.0
      %2221 = vmatpush.xpose.msra.mxu0 0.0
      %2222 = vmatpush.xpose.msra.mxu0 0.0
      %2223 = vmatpush.xpose.msra.mxu0 0.0
      %2224 = vmatpush.xpose.msra.mxu0 0.0
      %2225 = vmatpush.xpose.msra.mxu0 0.0
      %2226 = vmatpush.xpose.msra.mxu0 0.0
      %2227 = vmatpush.xpose.msra.mxu0 0.0
      %2228 = vmatpush.xpose.msra.mxu0 0.0
      %2229 = vmatpush.xpose.msra.mxu0 0.0
      %2230 = vmatpush.xpose.msra.mxu0 %v2213
      %2231 = vmatmul.f32.gmra.mxu0 %v2210
      %v2232 = vpop.f32.mrf.mxu0
      %v2233 = vadd.f32 %v1172, %v2232
      %2234 = vdwg.mxu0
      %v2236 = vsel %vm1177, %v2102, 0
      %v2239 = vsel %vm1177, %v2140, 0
      %2241 = vmatpush.xpose.msra.mxu0 0.0
      %2242 = vmatpush.xpose.msra.mxu0 0.0
      %2243 = vmatpush.xpose.msra.mxu0 0.0
      %2244 = vmatpush.xpose.msra.mxu0 0.0
      %2245 = vmatpush.xpose.msra.mxu0 0.0
      %2246 = vmatpush.xpose.msra.mxu0 0.0
      %2247 = vmatpush.xpose.msra.mxu0 0.0
      %2248 = vmatpush.xpose.msra.mxu0 0.0
      %2249 = vmatpush.xpose.msra.mxu0 0.0
      %2250 = vmatpush.xpose.msra.mxu0 0.0
      %2251 = vmatpush.xpose.msra.mxu0 0.0
      %2252 = vmatpush.xpose.msra.mxu0 0.0
      %2253 = vmatpush.xpose.msra.mxu0 0.0
      %2254 = vmatpush.xpose.msra.mxu0 0.0
      %2255 = vmatpush.xpose.msra.mxu0 0.0
      %2256 = vmatpush.xpose.msra.mxu0 %v2239
      %2257 = vmatmul.f32.gmra.mxu0 %v2236
      %v2258 = vpop.f32.mrf.mxu0
      %v2259 = vadd.f32 %v1173, %v2258
      %2260 = vdwg.mxu0
      %v2261 = vsel %vm1177, %v2207, -inf
      %2262 = vmax.xlane.f32.xlu0 %v2261
      %v2263 = vpop.xlane.xlu0 %2262
      %v2264 = vsel %vm1177, %v2233, -inf
      %2265 = vmax.xlane.f32.xlu0 %v2264
      %v2266 = vpop.xlane.xlu0 %2265
      %v2267 = vsel %vm1177, %v2259, -inf
      %2268 = vmax.xlane.f32.xlu0 %v2267
      %v2269 = vpop.xlane.xlu0 %2268
      %v2270 = vsub.f32 %v2207, %v2263
      %v2271 = vsub.f32 %v2233, %v2266
      %v2272 = vsub.f32 %v2259, %v2269
      %v2273 = vmul.f32 %v2270, 1.442695
      %v2274 = vpow.pop %v2273
      %v2275 = vmul.f32 %v2271, 1.442695
      %v2276 = vpow.pop %v2275
      %v2277 = vmul.f32 %v2272, 1.442695
      %v2278 = vpow.pop %v2277
      %v2279 = vsel %vm1177, %v2274, 0.0
      %2280 = vadd.xlane.f32.xlu0 %v2279
      %v2281 = vpop.xlane.xlu0 %2280
      %v2282 = vsel %vm1177, %v2276, 0.0
      %2283 = vadd.xlane.f32.xlu0 %v2282
      %v2284 = vpop.xlane.xlu0 %2283
      %v2285 = vsel %vm1177, %v2278, 0.0
      %2286 = vadd.xlane.f32.xlu0 %v2285
      %v2287 = vpop.xlane.xlu0 %2286
      %v2288 = vrcp.pop %v2281
      %v2289 = vrcp.pop %v2284
      %v2290 = vrcp.pop %v2287
      %v2291 = vmul.f32 %v2274, %v2288
      %v2292 = vmul.f32 %v2276, %v2289
      %v2293 = vmul.f32 %v2278, %v2290
      %v2295 = vsel %vm1177, %v2291, 0
      %2297 = vmatpush.msra.mxu0 0.0
      %2298 = vmatpush.msra.mxu0 0.0
      %2299 = vmatpush.msra.mxu0 0.0
      %2300 = vmatpush.msra.mxu0 0.0
      %2301 = vmatpush.msra.mxu0 0.0
      %2302 = vmatpush.msra.mxu0 0.0
      %2303 = vmatpush.msra.mxu0 0.0
      %2304 = vmatpush.msra.mxu0 0.0
      %2305 = vmatpush.msra.mxu0 0.0
      %2306 = vmatpush.msra.mxu0 0.0
      %2307 = vmatpush.msra.mxu0 0.0
      %2308 = vmatpush.msra.mxu0 0.0
      %2309 = vmatpush.msra.mxu0 0.0
      %2310 = vmatpush.msra.mxu0 0.0
      %2311 = vmatpush.msra.mxu0 0.0
      %2312 = vmatpush.msra.mxu0 %v2175
      %2313 = vmatmul.f32.gmra.mxu0 %v2295
      %v2314 = vpop.f32.mrf.mxu0
      %v2315 = vadd.f32 0.0, %v2314
      %2316 = vdwg.mxu0
      %v2318 = vsel %vm1177, %v2292, 0
      %2320 = vmatpush.msra.mxu0 0.0
      %2321 = vmatpush.msra.mxu0 0.0
      %2322 = vmatpush.msra.mxu0 0.0
      %2323 = vmatpush.msra.mxu0 0.0
      %2324 = vmatpush.msra.mxu0 0.0
      %2325 = vmatpush.msra.mxu0 0.0
      %2326 = vmatpush.msra.mxu0 0.0
      %2327 = vmatpush.msra.mxu0 0.0
      %2328 = vmatpush.msra.mxu0 0.0
      %2329 = vmatpush.msra.mxu0 0.0
      %2330 = vmatpush.msra.mxu0 0.0
      %2331 = vmatpush.msra.mxu0 0.0
      %2332 = vmatpush.msra.mxu0 0.0
      %2333 = vmatpush.msra.mxu0 0.0
      %2334 = vmatpush.msra.mxu0 0.0
      %2335 = vmatpush.msra.mxu0 %v2177
      %2336 = vmatmul.f32.gmra.mxu0 %v2318
      %v2337 = vpop.f32.mrf.mxu0
      %v2338 = vadd.f32 0.0, %v2337
      %2339 = vdwg.mxu0
      %v2341 = vsel %vm1177, %v2293, 0
      %2343 = vmatpush.msra.mxu0 0.0
      %2344 = vmatpush.msra.mxu0 0.0
      %2345 = vmatpush.msra.mxu0 0.0
      %2346 = vmatpush.msra.mxu0 0.0
      %2347 = vmatpush.msra.mxu0 0.0
      %2348 = vmatpush.msra.mxu0 0.0
      %2349 = vmatpush.msra.mxu0 0.0
      %2350 = vmatpush.msra.mxu0 0.0
      %2351 = vmatpush.msra.mxu0 0.0
      %2352 = vmatpush.msra.mxu0 0.0
      %2353 = vmatpush.msra.mxu0 0.0
      %2354 = vmatpush.msra.mxu0 0.0
      %2355 = vmatpush.msra.mxu0 0.0
      %2356 = vmatpush.msra.mxu0 0.0
      %2357 = vmatpush.msra.mxu0 0.0
      %2358 = vmatpush.msra.mxu0 %v2180
      %2359 = vmatmul.f32.gmra.mxu0 %v2341
      %v2360 = vpop.f32.mrf.mxu0
      %v2361 = vadd.f32 0.0, %v2360
      %2362 = vdwg.mxu0
      %v2363 = vpack.c.bf16 %v2338, %v2315
      %v2364 = vpack.c.bf16 %v2361, %v2361
      %s2365 = scalar_lea.vmem %s12, 12
      %v2366 = vld [vmem:[%s2365] sm:$0xf]
      %v2368 = vsel %vm1177, %v2363, 0
      %v2371 = vsel %vm1177, %v2364, 0
      %v2374 = vsel %vm1674, %v2366, 0
      %2376 = vmatpush.bf16.msra.mxu0 0
      %2377 = vmatpush.bf16.msra.mxu0 0
      %2378 = vmatpush.bf16.msra.mxu0 0
      %2379 = vmatpush.bf16.msra.mxu0 0
      %2380 = vmatpush.bf16.msra.mxu0 0
      %2381 = vmatpush.bf16.msra.mxu0 0
      %2382 = vmatpush.bf16.msra.mxu0 0
      %2383 = vmatpush.bf16.msra.mxu0 %v2374
      %2384 = vmatmul.bf16.gmra.mxu0 %v2368
      %v2385 = vpop.f32.mrf.mxu0
      %v2386 = vadd.f32 0.0, %v2385
      %v2387 = vpop.f32.mrf.mxu0
      %v2388 = vadd.f32 0.0, %v2387
      %2389 = vmatmul.bf16.gmra.mxu0 %v2371
      %v2390 = vpop.f32.mrf.mxu0
      %v2391 = vadd.f32 0.0, %v2390
      %v2392 = vpop.f32.mrf.mxu0
      %2393 = vdwg.mxu0
      %v2394 = vadd.f32 %v2057, %v2386
      %v2395 = vadd.f32 %v2058, %v2388
      %v2396 = vadd.f32 %v2059, %v2391
      %v2397 = vadd.f32 %v960, %v2394
      %v2398 = vadd.f32 %v961, %v2395
      %v2399 = vadd.f32 %v962, %v2396
      %v2400 = vld [vmem:[%s13] sm:$0x1]
      %v2402 = vperm.slane %v2400, 0
      %v2404 = vadd.f32 %v2397, %v2402
      %v2405 = vadd.f32 %v2398, %v2402
      %v2406 = vadd.f32 %v2399, %v2402
      %v2407 = vld [vmem:[%s14] sm:$0x1]
      %v2408 = vld [vmem:[%s15] sm:$0x1]
      %v2409 = vsel %vm877, %v2404, 0.0
      %2410 = vadd.xlane.f32.xlu0 %v2409
      %v2411 = vpop.xlane.xlu0 %2410
      %v2412 = vsel %vm877, %v2405, 0.0
      %2413 = vadd.xlane.f32.xlu0 %v2412
      %v2414 = vpop.xlane.xlu0 %2413
      %v2415 = vsel %vm877, %v2406, 0.0
      %2416 = vadd.xlane.f32.xlu0 %v2415
      %v2417 = vpop.xlane.xlu0 %2416
      %v2418 = vmul.f32 %v2411, %v893
      %v2419 = vmul.f32 %v2414, %v893
      %v2420 = vmul.f32 %v2417, %v893
      %v2421 = vsub.f32 %v2404, %v2418
      %v2422 = vsub.f32 %v2405, %v2419
      %v2423 = vsub.f32 %v2406, %v2420
      %v2424 = vmul.f32 %v2421, %v2421
      %v2425 = vmul.f32 %v2422, %v2422
      %v2426 = vmul.f32 %v2423, %v2423
      %v2427 = vsel %vm877, %v2424, 0.0
      %2428 = vadd.xlane.f32.xlu0 %v2427
      %v2429 = vpop.xlane.xlu0 %2428
      %v2430 = vsel %vm877, %v2425, 0.0
      %2431 = vadd.xlane.f32.xlu0 %v2430
      %v2432 = vpop.xlane.xlu0 %2431
      %v2433 = vsel %vm877, %v2426, 0.0
      %2434 = vadd.xlane.f32.xlu0 %v2433
      %v2435 = vpop.xlane.xlu0 %2434
      %v2436 = vmul.f32 %v2429, %v893
      %v2437 = vmul.f32 %v2432, %v893
      %v2438 = vmul.f32 %v2435, %v893
      %v2439 = vadd.f32 %v2436, 1e-05
      %v2440 = vadd.f32 %v2437, 1e-05
      %v2441 = vadd.f32 %v2438, 1e-05
      %v2442 = vrsqrt.pop %v2439
      %v2443 = vmul.f32 %v2442, %v2439
      %v2444 = vmul.f32 %v2443, %v2442
      %v2445 = vmul.f32 0.5, %v2444
      %v2446 = vsub.f32 1.5, %v2445
      %v2447 = vmul.f32 %v2442, %v2446
      %vm2448 = vweird.f32 %v2439
      %vm2449 = vweird.f32 %v2442
      %vm2450 = vmor %vm2448, %vm2449
      %v2451 = vsel %vm2450, %v2442, %v2447
      %v2452 = vrsqrt.pop %v2440
      %v2453 = vmul.f32 %v2452, %v2440
      %v2454 = vmul.f32 %v2453, %v2452
      %v2455 = vmul.f32 0.5, %v2454
      %v2456 = vsub.f32 1.5, %v2455
      %v2457 = vmul.f32 %v2452, %v2456
      %vm2458 = vweird.f32 %v2440
      %vm2459 = vweird.f32 %v2452
      %vm2460 = vmor %vm2458, %vm2459
      %v2461 = vsel %vm2460, %v2452, %v2457
      %v2462 = vrsqrt.pop %v2441
      %v2463 = vmul.f32 %v2462, %v2441
      %v2464 = vmul.f32 %v2463, %v2462
      %v2465 = vmul.f32 0.5, %v2464
      %v2466 = vsub.f32 1.5, %v2465
      %v2467 = vmul.f32 %v2462, %v2466
      %vm2468 = vweird.f32 %v2441
      %vm2469 = vweird.f32 %v2462
      %vm2470 = vmor %vm2468, %vm2469
      %v2471 = vsel %vm2470, %v2462, %v2467
      %v2472 = vmul.f32 %v2421, %v2451
      %v2473 = vmul.f32 %v2422, %v2461
      %v2474 = vmul.f32 %v2423, %v2471
      %v2476 = vperm.slane %v2407, 0
      %v2478 = vmul.f32 %v2472, %v2476
      %v2479 = vmul.f32 %v2473, %v2476
      %v2480 = vmul.f32 %v2474, %v2476
      %v2482 = vperm.slane %v2408, 0
      %v2484 = vadd.f32 %v2478, %v2482
      %v2485 = vadd.f32 %v2479, %v2482
      %v2486 = vadd.f32 %v2480, %v2482
      %v2487 = vpack.c.bf16 %v2485, %v2484
      %v2488 = vpack.c.bf16 %v2486, %v2486
      %v2489 = vld [vmem:[%s16] sm:$0xf]
      %v2490 = vld [vmem:[%s16 + $0x4] sm:$0xf]
      %v2491 = vld [vmem:[%s16 + $0x8] sm:$0xf]
      %v2492 = vld [vmem:[%s16 + $0xc] sm:$0xf]
      %v2493 = vld [vmem:[%s17] sm:$0x1]
      %v2495 = vperm.slane %v2493, 0
      %v2501 = vunpack.c.l.b16 %v2489
      %v2502 = vunpack.c.l.b16 %v2490
      %v2503 = vunpack.c.l.b16 %v2491
      %v2504 = vunpack.c.l.b16 %v2492
      %v2505 = vpack.c.b16 %v2502, %v2501
      %v2506 = vpack.c.b16 %v2504, %v2503
      %v2510 = vsel %vm877, %v2487, 0
      %v2513 = vsel %vm877, %v2488, 0
      %2515 = vmatpush.bf16.msra.mxu0 0
      %2516 = vmatpush.bf16.msra.mxu0 0
      %2517 = vmatpush.bf16.msra.mxu0 0
      %2518 = vmatpush.bf16.msra.mxu0 0
      %2519 = vmatpush.bf16.msra.mxu0 0
      %2520 = vmatpush.bf16.msra.mxu0 0
      %2521 = vmatpush.bf16.msra.mxu0 %v2506
      %2522 = vmatpush.bf16.msra.mxu0 %v2505
      %2523 = vmatmul.bf16.gmra.mxu0 %v2510
      %v2524 = vpop.f32.mrf.mxu0
      %v2525 = vadd.f32 %v2495, %v2524
      %v2526 = vpop.f32.mrf.mxu0
      %v2527 = vadd.f32 %v2495, %v2526
      %2528 = vmatmul.bf16.gmra.mxu0 %v2513
      %v2529 = vpop.f32.mrf.mxu0
      %v2530 = vadd.f32 %v2495, %v2529
      %v2531 = vpop.f32.mrf.mxu0
      %2532 = vdwg.mxu0
      %v2533 = vmul.f32 %v2525, %v2525
      %v2534 = vmul.f32 %v2527, %v2527
      %v2535 = vmul.f32 %v2530, %v2530
      %v2536 = vmul.f32 %v2525, %v2533
      %v2537 = vmul.f32 %v2527, %v2534
      %v2538 = vmul.f32 %v2530, %v2535
      %v2539 = vmul.f32 %v2536, 0.044715
      %v2540 = vmul.f32 %v2537, 0.044715
      %v2541 = vmul.f32 %v2538, 0.044715
      %v2542 = vadd.f32 %v2525, %v2539
      %v2543 = vadd.f32 %v2527, %v2540
      %v2544 = vadd.f32 %v2530, %v2541
      %v2545 = vmul.f32 %v2542, 0.7978846
      %v2546 = vmul.f32 %v2543, 0.7978846
      %v2547 = vmul.f32 %v2544, 0.7978846
      %v2548 = vtanh.pop %v2545
      %v2549 = vtanh.pop %v2546
      %v2550 = vtanh.pop %v2547
      %v2551 = vadd.f32 %v2548, 1.0
      %v2552 = vadd.f32 %v2549, 1.0
      %v2553 = vadd.f32 %v2550, 1.0
      %v2554 = vmul.f32 %v2551, 0.5
      %v2555 = vmul.f32 %v2552, 0.5
      %v2556 = vmul.f32 %v2553, 0.5
      %v2557 = vmul.f32 %v2525, %v2554
      %v2558 = vmul.f32 %v2527, %v2555
      %v2559 = vmul.f32 %v2530, %v2556
      %v2560 = vpack.c.bf16 %v2558, %v2557
      %v2561 = vpack.c.bf16 %v2559, %v2559
      %v2562 = vld [vmem:[%s18] sm:$0xf]
      %v2563 = vld [vmem:[%s18 + $0x4] sm:$0xf]
      %v2564 = vld [vmem:[%s18 + $0x8] sm:$0xf]
      %v2565 = vld [vmem:[%s18 + $0xc] sm:$0xf]
      %v2566 = vld [vmem:[%s18 + $0x10] sm:$0xf]
      %v2567 = vld [vmem:[%s18 + $0x14] sm:$0xf]
      %v2568 = vld [vmem:[%s18 + $0x18] sm:$0xf]
      %v2569 = vld [vmem:[%s18 + $0x1c] sm:$0xf]
      %v2570 = vld [vmem:[%s18 + $0x20] sm:$0xf]
      %v2571 = vld [vmem:[%s18 + $0x24] sm:$0xf]
      %v2572 = vld [vmem:[%s18 + $0x28] sm:$0xf]
      %v2573 = vld [vmem:[%s18 + $0x2c] sm:$0xf]
      %v2574 = vld [vmem:[%s18 + $0x30] sm:$0xf]
      %v2575 = vld [vmem:[%s18 + $0x34] sm:$0xf]
      %v2576 = vld [vmem:[%s18 + $0x38] sm:$0xf]
      %v2577 = vld [vmem:[%s18 + $0x3c] sm:$0xf]
      %v2594 = vunpack.c.l.b16 %v2562
      %v2595 = vunpack.c.l.b16 %v2563
      %v2596 = vunpack.c.l.b16 %v2564
      %v2597 = vunpack.c.l.b16 %v2565
      %v2598 = vunpack.c.l.b16 %v2566
      %v2599 = vunpack.c.l.b16 %v2567
      %v2600 = vunpack.c.l.b16 %v2568
      %v2601 = vunpack.c.l.b16 %v2569
      %v2602 = vunpack.c.l.b16 %v2570
      %v2603 = vunpack.c.l.b16 %v2571
      %v2604 = vunpack.c.l.b16 %v2572
      %v2605 = vunpack.c.l.b16 %v2573
      %v2606 = vunpack.c.l.b16 %v2574
      %v2607 = vunpack.c.l.b16 %v2575
      %v2608 = vunpack.c.l.b16 %v2576
      %v2609 = vunpack.c.l.b16 %v2577
      %v2610 = vpack.c.b16 %v2595, %v2594
      %v2611 = vpack.c.b16 %v2597, %v2596
      %v2612 = vpack.c.b16 %v2599, %v2598
      %v2613 = vpack.c.b16 %v2601, %v2600
      %v2614 = vpack.c.b16 %v2603, %v2602
      %v2615 = vpack.c.b16 %v2605, %v2604
      %v2616 = vpack.c.b16 %v2607, %v2606
      %v2617 = vpack.c.b16 %v2609, %v2608
      %2626 = vmatpush.bf16.msra.mxu0 %v2617
      %2627 = vmatpush.bf16.msra.mxu0 %v2616
      %2628 = vmatpush.bf16.msra.mxu0 %v2615
      %2629 = vmatpush.bf16.msra.mxu0 %v2614
      %2630 = vmatpush.bf16.msra.mxu0 %v2613
      %2631 = vmatpush.bf16.msra.mxu0 %v2612
      %2632 = vmatpush.bf16.msra.mxu0 %v2611
      %2633 = vmatpush.bf16.msra.mxu0 %v2610
      %2634 = vmatmul.bf16.gmra.mxu0 %v2560
      %v2635 = vpop.f32.mrf.mxu0
      %v2636 = vadd.f32 0.0, %v2635
      %v2637 = vpop.f32.mrf.mxu0
      %v2638 = vadd.f32 0.0, %v2637
      %2639 = vmatmul.bf16.gmra.mxu0 %v2561
      %v2640 = vpop.f32.mrf.mxu0
      %v2641 = vadd.f32 0.0, %v2640
      %v2642 = vpop.f32.mrf.mxu0
      %2643 = vdwg.mxu0
      %v2644 = vadd.f32 %v2404, %v2636
      %v2645 = vadd.f32 %v2405, %v2638
      %v2646 = vadd.f32 %v2406, %v2641
      %v2647 = vld [vmem:[%s19] sm:$0x1]
      %v2649 = vperm.slane %v2647, 0
      %v2651 = vadd.f32 %v2644, %v2649
      %v2652 = vadd.f32 %v2645, %v2649
      %v2653 = vadd.f32 %v2646, %v2649
      %s2654 = scalar_lea.vmem %s4, 1
      %v2655 = vld [vmem:[%s2654] sm:$0x1]
      %s2656 = scalar_lea.vmem %s5, 1
      %v2657 = vld [vmem:[%s2656] sm:$0x1]
      %v2658 = vsel %vm877, %v2651, 0.0
      %2659 = vadd.xlane.f32.xlu0 %v2658
      %v2660 = vpop.xlane.xlu0 %2659
      %v2661 = vsel %vm877, %v2652, 0.0
      %2662 = vadd.xlane.f32.xlu0 %v2661
      %v2663 = vpop.xlane.xlu0 %2662
      %v2664 = vsel %vm877, %v2653, 0.0
      %2665 = vadd.xlane.f32.xlu0 %v2664
      %v2666 = vpop.xlane.xlu0 %2665
      %v2667 = vmul.f32 %v2660, %v893
      %v2668 = vmul.f32 %v2663, %v893
      %v2669 = vmul.f32 %v2666, %v893
      %v2670 = vsub.f32 %v2651, %v2667
      %v2671 = vsub.f32 %v2652, %v2668
      %v2672 = vsub.f32 %v2653, %v2669
      %v2673 = vmul.f32 %v2670, %v2670
      %v2674 = vmul.f32 %v2671, %v2671
      %v2675 = vmul.f32 %v2672, %v2672
      %v2676 = vsel %vm877, %v2673, 0.0
      %2677 = vadd.xlane.f32.xlu0 %v2676
      %v2678 = vpop.xlane.xlu0 %2677
      %v2679 = vsel %vm877, %v2674, 0.0
      %2680 = vadd.xlane.f32.xlu0 %v2679
      %v2681 = vpop.xlane.xlu0 %2680
      %v2682 = vsel %vm877, %v2675, 0.0
      %2683 = vadd.xlane.f32.xlu0 %v2682
      %v2684 = vpop.xlane.xlu0 %2683
      %v2685 = vmul.f32 %v2678, %v893
      %v2686 = vmul.f32 %v2681, %v893
      %v2687 = vmul.f32 %v2684, %v893
      %v2688 = vadd.f32 %v2685, 1e-05
      %v2689 = vadd.f32 %v2686, 1e-05
      %v2690 = vadd.f32 %v2687, 1e-05
      %v2691 = vrsqrt.pop %v2688
      %v2692 = vmul.f32 %v2691, %v2688
      %v2693 = vmul.f32 %v2692, %v2691
      %v2694 = vmul.f32 0.5, %v2693
      %v2695 = vsub.f32 1.5, %v2694
      %v2696 = vmul.f32 %v2691, %v2695
      %vm2697 = vweird.f32 %v2688
      %vm2698 = vweird.f32 %v2691
      %vm2699 = vmor %vm2697, %vm2698
      %v2700 = vsel %vm2699, %v2691, %v2696
      %v2701 = vrsqrt.pop %v2689
      %v2702 = vmul.f32 %v2701, %v2689
      %v2703 = vmul.f32 %v2702, %v2701
      %v2704 = vmul.f32 0.5, %v2703
      %v2705 = vsub.f32 1.5, %v2704
      %v2706 = vmul.f32 %v2701, %v2705
      %vm2707 = vweird.f32 %v2689
      %vm2708 = vweird.f32 %v2701
      %vm2709 = vmor %vm2707, %vm2708
      %v2710 = vsel %vm2709, %v2701, %v2706
      %v2711 = vrsqrt.pop %v2690
      %v2712 = vmul.f32 %v2711, %v2690
      %v2713 = vmul.f32 %v2712, %v2711
      %v2714 = vmul.f32 0.5, %v2713
      %v2715 = vsub.f32 1.5, %v2714
      %v2716 = vmul.f32 %v2711, %v2715
      %vm2717 = vweird.f32 %v2690
      %vm2718 = vweird.f32 %v2711
      %vm2719 = vmor %vm2717, %vm2718
      %v2720 = vsel %vm2719, %v2711, %v2716
      %v2721 = vmul.f32 %v2670, %v2700
      %v2722 = vmul.f32 %v2671, %v2710
      %v2723 = vmul.f32 %v2672, %v2720
      %v2725 = vperm.slane %v2655, 0
      %v2727 = vmul.f32 %v2721, %v2725
      %v2728 = vmul.f32 %v2722, %v2725
      %v2729 = vmul.f32 %v2723, %v2725
      %v2731 = vperm.slane %v2657, 0
      %v2733 = vadd.f32 %v2727, %v2731
      %v2734 = vadd.f32 %v2728, %v2731
      %v2735 = vadd.f32 %v2729, %v2731
      %v2736 = vpack.c.bf16 %v2734, %v2733
      %v2737 = vpack.c.bf16 %v2735, %v2735
      %s2738 = scalar_lea.vmem %s6, 64
      %v2739 = vld [vmem:[%s2738] sm:$0xf]
      %v2740 = vld [vmem:[%s2738 + $0x4] sm:$0xf]
      %v2741 = vld [vmem:[%s2738 + $0x8] sm:$0xf]
      %v2742 = vld [vmem:[%s2738 + $0xc] sm:$0xf]
      %s2743 = scalar_lea.vmem %s7, 4
      %v2744 = vld [vmem:[%s2743] sm:$0x1]
      %v2746 = vperm.slane %v2744, 0
      %v2752 = vunpack.c.l.b16 %v2739
      %v2753 = vunpack.c.l.b16 %v2740
      %v2754 = vunpack.c.l.b16 %v2741
      %v2755 = vunpack.c.l.b16 %v2742
      %v2756 = vpack.c.b16 %v2753, %v2752
      %v2757 = vpack.c.b16 %v2755, %v2754
      %v2761 = vsel %vm877, %v2736, 0
      %v2764 = vsel %vm877, %v2737, 0
      %2766 = vmatpush.bf16.msra.mxu0 0
      %2767 = vmatpush.bf16.msra.mxu0 0
      %2768 = vmatpush.bf16.msra.mxu0 0
      %2769 = vmatpush.bf16.msra.mxu0 0
      %2770 = vmatpush.bf16.msra.mxu0 0
      %2771 = vmatpush.bf16.msra.mxu0 0
      %2772 = vmatpush.bf16.msra.mxu0 %v2757
      %2773 = vmatpush.bf16.msra.mxu0 %v2756
      %2774 = vmatmul.bf16.gmra.mxu0 %v2761
      %v2775 = vpop.f32.mrf.mxu0
      %v2776 = vadd.f32 %v2746, %v2775
      %v2777 = vpop.f32.mrf.mxu0
      %v2778 = vadd.f32 %v2746, %v2777
      %2779 = vmatmul.bf16.gmra.mxu0 %v2764
      %v2780 = vpop.f32.mrf.mxu0
      %v2781 = vadd.f32 %v2746, %v2780
      %v2782 = vpop.f32.mrf.mxu0
      %2783 = vdwg.mxu0
      %v2784 = vmul.f32 %v2776, 0.35355338
      %v2785 = vmul.f32 %v2778, 0.35355338
      %v2786 = vmul.f32 %v2781, 0.35355338
      %s2787 = scalar_lea.vmem %s8, 64
      %v2788 = vld [vmem:[%s2787] sm:$0xf]
      %v2789 = vld [vmem:[%s2787 + $0x4] sm:$0xf]
      %v2790 = vld [vmem:[%s2787 + $0x8] sm:$0xf]
      %v2791 = vld [vmem:[%s2787 + $0xc] sm:$0xf]
      %s2792 = scalar_lea.vmem %s9, 4
      %v2793 = vld [vmem:[%s2792] sm:$0x1]
      %v2795 = vperm.slane %v2793, 0
      %v2801 = vunpack.c.l.b16 %v2788
      %v2802 = vunpack.c.l.b16 %v2789
      %v2803 = vunpack.c.l.b16 %v2790
      %v2804 = vunpack.c.l.b16 %v2791
      %v2805 = vpack.c.b16 %v2802, %v2801
      %v2806 = vpack.c.b16 %v2804, %v2803
      %2809 = vmatpush.bf16.msra.mxu0 0
      %2810 = vmatpush.bf16.msra.mxu0 0
      %2811 = vmatpush.bf16.msra.mxu0 0
      %2812 = vmatpush.bf16.msra.mxu0 0
      %2813 = vmatpush.bf16.msra.mxu0 0
      %2814 = vmatpush.bf16.msra.mxu0 0
      %2815 = vmatpush.bf16.msra.mxu0 %v2806
      %2816 = vmatpush.bf16.msra.mxu0 %v2805
      %2817 = vmatmul.bf16.gmra.mxu0 %v2761
      %v2818 = vpop.f32.mrf.mxu0
      %v2819 = vadd.f32 %v2795, %v2818
      %v2820 = vpop.f32.mrf.mxu0
      %v2821 = vadd.f32 %v2795, %v2820
      %2822 = vmatmul.bf16.gmra.mxu0 %v2764
      %v2823 = vpop.f32.mrf.mxu0
      %v2824 = vadd.f32 %v2795, %v2823
      %v2825 = vpop.f32.mrf.mxu0
      %2826 = vdwg.mxu0
      %s2827 = scalar_lea.vmem %s10, 64
      %v2828 = vld [vmem:[%s2827] sm:$0xf]
      %v2829 = vld [vmem:[%s2827 + $0x4] sm:$0xf]
      %v2830 = vld [vmem:[%s2827 + $0x8] sm:$0xf]
      %v2831 = vld [vmem:[%s2827 + $0xc] sm:$0xf]
      %s2832 = scalar_lea.vmem %s11, 4
      %v2833 = vld [vmem:[%s2832] sm:$0x1]
      %v2835 = vperm.slane %v2833, 0
      %v2841 = vunpack.c.l.b16 %v2828
      %v2842 = vunpack.c.l.b16 %v2829
      %v2843 = vunpack.c.l.b16 %v2830
      %v2844 = vunpack.c.l.b16 %v2831
      %v2845 = vpack.c.b16 %v2842, %v2841
      %v2846 = vpack.c.b16 %v2844, %v2843
      %2849 = vmatpush.bf16.msra.mxu0 0
      %2850 = vmatpush.bf16.msra.mxu0 0
      %2851 = vmatpush.bf16.msra.mxu0 0
      %2852 = vmatpush.bf16.msra.mxu0 0
      %2853 = vmatpush.bf16.msra.mxu0 0
      %2854 = vmatpush.bf16.msra.mxu0 0
      %2855 = vmatpush.bf16.msra.mxu0 %v2846
      %2856 = vmatpush.bf16.msra.mxu0 %v2845
      %2857 = vmatmul.bf16.gmra.mxu0 %v2761
      %v2858 = vpop.f32.mrf.mxu0
      %v2859 = vadd.f32 %v2835, %v2858
      %v2860 = vpop.f32.mrf.mxu0
      %v2861 = vadd.f32 %v2835, %v2860
      %2862 = vmatmul.bf16.gmra.mxu0 %v2764
      %v2863 = vpop.f32.mrf.mxu0
      %v2864 = vadd.f32 %v2835, %v2863
      %v2865 = vpop.f32.mrf.mxu0
      %2866 = vdwg.mxu0
      %v2868 = vsel %vm1177, %v2784, 0
      %v2871 = vsel %vm1177, %v2819, 0
      %2873 = vmatpush.xpose.msra.mxu0 0.0
      %2874 = vmatpush.xpose.msra.mxu0 0.0
      %2875 = vmatpush.xpose.msra.mxu0 0.0
      %2876 = vmatpush.xpose.msra.mxu0 0.0
      %2877 = vmatpush.xpose.msra.mxu0 0.0
      %2878 = vmatpush.xpose.msra.mxu0 0.0
      %2879 = vmatpush.xpose.msra.mxu0 0.0
      %2880 = vmatpush.xpose.msra.mxu0 0.0
      %2881 = vmatpush.xpose.msra.mxu0 0.0
      %2882 = vmatpush.xpose.msra.mxu0 0.0
      %2883 = vmatpush.xpose.msra.mxu0 0.0
      %2884 = vmatpush.xpose.msra.mxu0 0.0
      %2885 = vmatpush.xpose.msra.mxu0 0.0
      %2886 = vmatpush.xpose.msra.mxu0 0.0
      %2887 = vmatpush.xpose.msra.mxu0 0.0
      %2888 = vmatpush.xpose.msra.mxu0 %v2871
      %2889 = vmatmul.f32.gmra.mxu0 %v2868
      %v2890 = vpop.f32.mrf.mxu0
      %v2891 = vadd.f32 %v1171, %v2890
      %2892 = vdwg.mxu0
      %v2894 = vsel %vm1177, %v2785, 0
      %v2897 = vsel %vm1177, %v2821, 0
      %2899 = vmatpush.xpose.msra.mxu0 0.0
      %2900 = vmatpush.xpose.msra.mxu0 0.0
      %2901 = vmatpush.xpose.msra.mxu0 0.0
      %2902 = vmatpush.xpose.msra.mxu0 0.0
      %2903 = vmatpush.xpose.msra.mxu0 0.0
      %2904 = vmatpush.xpose.msra.mxu0 0.0
      %2905 = vmatpush.xpose.msra.mxu0 0.0
      %2906 = vmatpush.xpose.msra.mxu0 0.0
      %2907 = vmatpush.xpose.msra.mxu0 0.0
      %2908 = vmatpush.xpose.msra.mxu0 0.0
      %2909 = vmatpush.xpose.msra.mxu0 0.0
      %2910 = vmatpush.xpose.msra.mxu0 0.0
      %2911 = vmatpush.xpose.msra.mxu0 0.0
      %2912 = vmatpush.xpose.msra.mxu0 0.0
      %2913 = vmatpush.xpose.msra.mxu0 0.0
      %2914 = vmatpush.xpose.msra.mxu0 %v2897
      %2915 = vmatmul.f32.gmra.mxu0 %v2894
      %v2916 = vpop.f32.mrf.mxu0
      %v2917 = vadd.f32 %v1172, %v2916
      %2918 = vdwg.mxu0
      %v2920 = vsel %vm1177, %v2786, 0
      %v2923 = vsel %vm1177, %v2824, 0
      %2925 = vmatpush.xpose.msra.mxu0 0.0
      %2926 = vmatpush.xpose.msra.mxu0 0.0
      %2927 = vmatpush.xpose.msra.mxu0 0.0
      %2928 = vmatpush.xpose.msra.mxu0 0.0
      %2929 = vmatpush.xpose.msra.mxu0 0.0
      %2930 = vmatpush.xpose.msra.mxu0 0.0
      %2931 = vmatpush.xpose.msra.mxu0 0.0
      %2932 = vmatpush.xpose.msra.mxu0 0.0
      %2933 = vmatpush.xpose.msra.mxu0 0.0
      %2934 = vmatpush.xpose.msra.mxu0 0.0
      %2935 = vmatpush.xpose.msra.mxu0 0.0
      %2936 = vmatpush.xpose.msra.mxu0 0.0
      %2937 = vmatpush.xpose.msra.mxu0 0.0
      %2938 = vmatpush.xpose.msra.mxu0 0.0
      %2939 = vmatpush.xpose.msra.mxu0 0.0
      %2940 = vmatpush.xpose.msra.mxu0 %v2923
      %2941 = vmatmul.f32.gmra.mxu0 %v2920
      %v2942 = vpop.f32.mrf.mxu0
      %v2943 = vadd.f32 %v1173, %v2942
      %2944 = vdwg.mxu0
      %v2945 = vsel %vm1177, %v2891, -inf
      %2946 = vmax.xlane.f32.xlu0 %v2945
      %v2947 = vpop.xlane.xlu0 %2946
      %v2948 = vsel %vm1177, %v2917, -inf
      %2949 = vmax.xlane.f32.xlu0 %v2948
      %v2950 = vpop.xlane.xlu0 %2949
      %v2951 = vsel %vm1177, %v2943, -inf
      %2952 = vmax.xlane.f32.xlu0 %v2951
      %v2953 = vpop.xlane.xlu0 %2952
      %v2954 = vsub.f32 %v2891, %v2947
      %v2955 = vsub.f32 %v2917, %v2950
      %v2956 = vsub.f32 %v2943, %v2953
      %v2957 = vmul.f32 %v2954, 1.442695
      %v2958 = vpow.pop %v2957
      %v2959 = vmul.f32 %v2955, 1.442695
      %v2960 = vpow.pop %v2959
      %v2961 = vmul.f32 %v2956, 1.442695
      %v2962 = vpow.pop %v2961
      %v2963 = vsel %vm1177, %v2958, 0.0
      %2964 = vadd.xlane.f32.xlu0 %v2963
      %v2965 = vpop.xlane.xlu0 %2964
      %v2966 = vsel %vm1177, %v2960, 0.0
      %2967 = vadd.xlane.f32.xlu0 %v2966
      %v2968 = vpop.xlane.xlu0 %2967
      %v2969 = vsel %vm1177, %v2962, 0.0
      %2970 = vadd.xlane.f32.xlu0 %v2969
      %v2971 = vpop.xlane.xlu0 %2970
      %v2972 = vrcp.pop %v2965
      %v2973 = vrcp.pop %v2968
      %v2974 = vrcp.pop %v2971
      %v2975 = vmul.f32 %v2958, %v2972
      %v2976 = vmul.f32 %v2960, %v2973
      %v2977 = vmul.f32 %v2962, %v2974
      %v2979 = vsel %vm1177, %v2975, 0
      %2981 = vmatpush.msra.mxu0 0.0
      %2982 = vmatpush.msra.mxu0 0.0
      %2983 = vmatpush.msra.mxu0 0.0
      %2984 = vmatpush.msra.mxu0 0.0
      %2985 = vmatpush.msra.mxu0 0.0
      %2986 = vmatpush.msra.mxu0 0.0
      %2987 = vmatpush.msra.mxu0 0.0
      %2988 = vmatpush.msra.mxu0 0.0
      %2989 = vmatpush.msra.mxu0 0.0
      %2990 = vmatpush.msra.mxu0 0.0
      %2991 = vmatpush.msra.mxu0 0.0
      %2992 = vmatpush.msra.mxu0 0.0
      %2993 = vmatpush.msra.mxu0 0.0
      %2994 = vmatpush.msra.mxu0 0.0
      %2995 = vmatpush.msra.mxu0 0.0
      %2996 = vmatpush.msra.mxu0 %v2859
      %2997 = vmatmul.f32.gmra.mxu0 %v2979
      %v2998 = vpop.f32.mrf.mxu0
      %v2999 = vadd.f32 0.0, %v2998
      %3000 = vdwg.mxu0
      %v3002 = vsel %vm1177, %v2976, 0
      %3004 = vmatpush.msra.mxu0 0.0
      %3005 = vmatpush.msra.mxu0 0.0
      %3006 = vmatpush.msra.mxu0 0.0
      %3007 = vmatpush.msra.mxu0 0.0
      %3008 = vmatpush.msra.mxu0 0.0
      %3009 = vmatpush.msra.mxu0 0.0
      %3010 = vmatpush.msra.mxu0 0.0
      %3011 = vmatpush.msra.mxu0 0.0
      %3012 = vmatpush.msra.mxu0 0.0
      %3013 = vmatpush.msra.mxu0 0.0
      %3014 = vmatpush.msra.mxu0 0.0
      %3015 = vmatpush.msra.mxu0 0.0
      %3016 = vmatpush.msra.mxu0 0.0
      %3017 = vmatpush.msra.mxu0 0.0
      %3018 = vmatpush.msra.mxu0 0.0
      %3019 = vmatpush.msra.mxu0 %v2861
      %3020 = vmatmul.f32.gmra.mxu0 %v3002
      %v3021 = vpop.f32.mrf.mxu0
      %v3022 = vadd.f32 0.0, %v3021
      %3023 = vdwg.mxu0
      %v3025 = vsel %vm1177, %v2977, 0
      %3027 = vmatpush.msra.mxu0 0.0
      %3028 = vmatpush.msra.mxu0 0.0
      %3029 = vmatpush.msra.mxu0 0.0
      %3030 = vmatpush.msra.mxu0 0.0
      %3031 = vmatpush.msra.mxu0 0.0
      %3032 = vmatpush.msra.mxu0 0.0
      %3033 = vmatpush.msra.mxu0 0.0
      %3034 = vmatpush.msra.mxu0 0.0
      %3035 = vmatpush.msra.mxu0 0.0
      %3036 = vmatpush.msra.mxu0 0.0
      %3037 = vmatpush.msra.mxu0 0.0
      %3038 = vmatpush.msra.mxu0 0.0
      %3039 = vmatpush.msra.mxu0 0.0
      %3040 = vmatpush.msra.mxu0 0.0
      %3041 = vmatpush.msra.mxu0 0.0
      %3042 = vmatpush.msra.mxu0 %v2864
      %3043 = vmatmul.f32.gmra.mxu0 %v3025
      %v3044 = vpop.f32.mrf.mxu0
      %v3045 = vadd.f32 0.0, %v3044
      %3046 = vdwg.mxu0
      %v3047 = vpack.c.bf16 %v3022, %v2999
      %v3048 = vpack.c.bf16 %v3045, %v3045
      %s3049 = scalar_lea.vmem %s12, 16
      %v3050 = vld [vmem:[%s3049] sm:$0xf]
      %s3051 = scalar_lea.vmem %s6, 80
      %v3052 = vld [vmem:[%s3051] sm:$0xf]
      %v3053 = vld [vmem:[%s3051 + $0x4] sm:$0xf]
      %v3054 = vld [vmem:[%s3051 + $0x8] sm:$0xf]
      %v3055 = vld [vmem:[%s3051 + $0xc] sm:$0xf]
      %s3056 = scalar_lea.vmem %s7, 5
      %v3057 = vld [vmem:[%s3056] sm:$0x1]
      %v3059 = vperm.slane %v3057, 0
      %v3065 = vunpack.c.l.b16 %v3052
      %v3066 = vunpack.c.l.b16 %v3053
      %v3067 = vunpack.c.l.b16 %v3054
      %v3068 = vunpack.c.l.b16 %v3055
      %v3069 = vpack.c.b16 %v3066, %v3065
      %v3070 = vpack.c.b16 %v3068, %v3067
      %3073 = vmatpush.bf16.msra.mxu0 0
      %3074 = vmatpush.bf16.msra.mxu0 0
      %3075 = vmatpush.bf16.msra.mxu0 0
      %3076 = vmatpush.bf16.msra.mxu0 0
      %3077 = vmatpush.bf16.msra.mxu0 0
      %3078 = vmatpush.bf16.msra.mxu0 0
      %3079 = vmatpush.bf16.msra.mxu0 %v3070
      %3080 = vmatpush.bf16.msra.mxu0 %v3069
      %3081 = vmatmul.bf16.gmra.mxu0 %v2761
      %v3082 = vpop.f32.mrf.mxu0
      %v3083 = vadd.f32 %v3059, %v3082
      %v3084 = vpop.f32.mrf.mxu0
      %v3085 = vadd.f32 %v3059, %v3084
      %3086 = vmatmul.bf16.gmra.mxu0 %v2764
      %v3087 = vpop.f32.mrf.mxu0
      %v3088 = vadd.f32 %v3059, %v3087
      %v3089 = vpop.f32.mrf.mxu0
      %3090 = vdwg.mxu0
      %v3091 = vmul.f32 %v3083, 0.35355338
      %v3092 = vmul.f32 %v3085, 0.35355338
      %v3093 = vmul.f32 %v3088, 0.35355338
      %s3094 = scalar_lea.vmem %s8, 80
      %v3095 = vld [vmem:[%s3094] sm:$0xf]
      %v3096 = vld [vmem:[%s3094 + $0x4] sm:$0xf]
      %v3097 = vld [vmem:[%s3094 + $0x8] sm:$0xf]
      %v3098 = vld [vmem:[%s3094 + $0xc] sm:$0xf]
      %s3099 = scalar_lea.vmem %s9, 5
      %v3100 = vld [vmem:[%s3099] sm:$0x1]
      %v3102 = vperm.slane %v3100, 0
      %v3108 = vunpack.c.l.b16 %v3095
      %v3109 = vunpack.c.l.b16 %v3096
      %v3110 = vunpack.c.l.b16 %v3097
      %v3111 = vunpack.c.l.b16 %v3098
      %v3112 = vpack.c.b16 %v3109, %v3108
      %v3113 = vpack.c.b16 %v3111, %v3110
      %3116 = vmatpush.bf16.msra.mxu0 0
      %3117 = vmatpush.bf16.msra.mxu0 0
      %3118 = vmatpush.bf16.msra.mxu0 0
      %3119 = vmatpush.bf16.msra.mxu0 0
      %3120 = vmatpush.bf16.msra.mxu0 0
      %3121 = vmatpush.bf16.msra.mxu0 0
      %3122 = vmatpush.bf16.msra.mxu0 %v3113
      %3123 = vmatpush.bf16.msra.mxu0 %v3112
      %3124 = vmatmul.bf16.gmra.mxu0 %v2761
      %v3125 = vpop.f32.mrf.mxu0
      %v3126 = vadd.f32 %v3102, %v3125
      %v3127 = vpop.f32.mrf.mxu0
      %v3128 = vadd.f32 %v3102, %v3127
      %3129 = vmatmul.bf16.gmra.mxu0 %v2764
      %v3130 = vpop.f32.mrf.mxu0
      %v3131 = vadd.f32 %v3102, %v3130
      %v3132 = vpop.f32.mrf.mxu0
      %3133 = vdwg.mxu0
      %s3134 = scalar_lea.vmem %s10, 80
      %v3135 = vld [vmem:[%s3134] sm:$0xf]
      %v3136 = vld [vmem:[%s3134 + $0x4] sm:$0xf]
      %v3137 = vld [vmem:[%s3134 + $0x8] sm:$0xf]
      %v3138 = vld [vmem:[%s3134 + $0xc] sm:$0xf]
      %s3139 = scalar_lea.vmem %s11, 5
      %v3140 = vld [vmem:[%s3139] sm:$0x1]
      %v3142 = vperm.slane %v3140, 0
      %v3148 = vunpack.c.l.b16 %v3135
      %v3149 = vunpack.c.l.b16 %v3136
      %v3150 = vunpack.c.l.b16 %v3137
      %v3151 = vunpack.c.l.b16 %v3138
      %v3152 = vpack.c.b16 %v3149, %v3148
      %v3153 = vpack.c.b16 %v3151, %v3150
      %3156 = vmatpush.bf16.msra.mxu0 0
      %3157 = vmatpush.bf16.msra.mxu0 0
      %3158 = vmatpush.bf16.msra.mxu0 0
      %3159 = vmatpush.bf16.msra.mxu0 0
      %3160 = vmatpush.bf16.msra.mxu0 0
      %3161 = vmatpush.bf16.msra.mxu0 0
      %3162 = vmatpush.bf16.msra.mxu0 %v3153
      %3163 = vmatpush.bf16.msra.mxu0 %v3152
      %3164 = vmatmul.bf16.gmra.mxu0 %v2761
      %v3165 = vpop.f32.mrf.mxu0
      %v3166 = vadd.f32 %v3142, %v3165
      %v3167 = vpop.f32.mrf.mxu0
      %v3168 = vadd.f32 %v3142, %v3167
      %3169 = vmatmul.bf16.gmra.mxu0 %v2764
      %v3170 = vpop.f32.mrf.mxu0
      %v3171 = vadd.f32 %v3142, %v3170
      %v3172 = vpop.f32.mrf.mxu0
      %3173 = vdwg.mxu0
      %v3175 = vsel %vm1177, %v3091, 0
      %v3178 = vsel %vm1177, %v3126, 0
      %3180 = vmatpush.xpose.msra.mxu0 0.0
      %3181 = vmatpush.xpose.msra.mxu0 0.0
      %3182 = vmatpush.xpose.msra.mxu0 0.0
      %3183 = vmatpush.xpose.msra.mxu0 0.0
      %3184 = vmatpush.xpose.msra.mxu0 0.0
      %3185 = vmatpush.xpose.msra.mxu0 0.0
      %3186 = vmatpush.xpose.msra.mxu0 0.0
      %3187 = vmatpush.xpose.msra.mxu0 0.0
      %3188 = vmatpush.xpose.msra.mxu0 0.0
      %3189 = vmatpush.xpose.msra.mxu0 0.0
      %3190 = vmatpush.xpose.msra.mxu0 0.0
      %3191 = vmatpush.xpose.msra.mxu0 0.0
      %3192 = vmatpush.xpose.msra.mxu0 0.0
      %3193 = vmatpush.xpose.msra.mxu0 0.0
      %3194 = vmatpush.xpose.msra.mxu0 0.0
      %3195 = vmatpush.xpose.msra.mxu0 %v3178
      %3196 = vmatmul.f32.gmra.mxu0 %v3175
      %v3197 = vpop.f32.mrf.mxu0
      %v3198 = vadd.f32 %v1171, %v3197
      %3199 = vdwg.mxu0
      %v3201 = vsel %vm1177, %v3092, 0
      %v3204 = vsel %vm1177, %v3128, 0
      %3206 = vmatpush.xpose.msra.mxu0 0.0
      %3207 = vmatpush.xpose.msra.mxu0 0.0
      %3208 = vmatpush.xpose.msra.mxu0 0.0
      %3209 = vmatpush.xpose.msra.mxu0 0.0
      %3210 = vmatpush.xpose.msra.mxu0 0.0
      %3211 = vmatpush.xpose.msra.mxu0 0.0
      %3212 = vmatpush.xpose.msra.mxu0 0.0
      %3213 = vmatpush.xpose.msra.mxu0 0.0
      %3214 = vmatpush.xpose.msra.mxu0 0.0
      %3215 = vmatpush.xpose.msra.mxu0 0.0
      %3216 = vmatpush.xpose.msra.mxu0 0.0
      %3217 = vmatpush.xpose.msra.mxu0 0.0
      %3218 = vmatpush.xpose.msra.mxu0 0.0
      %3219 = vmatpush.xpose.msra.mxu0 0.0
      %3220 = vmatpush.xpose.msra.mxu0 0.0
      %3221 = vmatpush.xpose.msra.mxu0 %v3204
      %3222 = vmatmul.f32.gmra.mxu0 %v3201
      %v3223 = vpop.f32.mrf.mxu0
      %v3224 = vadd.f32 %v1172, %v3223
      %3225 = vdwg.mxu0
      %v3227 = vsel %vm1177, %v3093, 0
      %v3230 = vsel %vm1177, %v3131, 0
      %3232 = vmatpush.xpose.msra.mxu0 0.0
      %3233 = vmatpush.xpose.msra.mxu0 0.0
      %3234 = vmatpush.xpose.msra.mxu0 0.0
      %3235 = vmatpush.xpose.msra.mxu0 0.0
      %3236 = vmatpush.xpose.msra.mxu0 0.0
      %3237 = vmatpush.xpose.msra.mxu0 0.0
      %3238 = vmatpush.xpose.msra.mxu0 0.0
      %3239 = vmatpush.xpose.msra.mxu0 0.0
      %3240 = vmatpush.xpose.msra.mxu0 0.0
      %3241 = vmatpush.xpose.msra.mxu0 0.0
      %3242 = vmatpush.xpose.msra.mxu0 0.0
      %3243 = vmatpush.xpose.msra.mxu0 0.0
      %3244 = vmatpush.xpose.msra.mxu0 0.0
      %3245 = vmatpush.xpose.msra.mxu0 0.0
      %3246 = vmatpush.xpose.msra.mxu0 0.0
      %3247 = vmatpush.xpose.msra.mxu0 %v3230
      %3248 = vmatmul.f32.gmra.mxu0 %v3227
      %v3249 = vpop.f32.mrf.mxu0
      %v3250 = vadd.f32 %v1173, %v3249
      %3251 = vdwg.mxu0
      %v3252 = vsel %vm1177, %v3198, -inf
      %3253 = vmax.xlane.f32.xlu0 %v3252
      %v3254 = vpop.xlane.xlu0 %3253
      %v3255 = vsel %vm1177, %v3224, -inf
      %3256 = vmax.xlane.f32.xlu0 %v3255
      %v3257 = vpop.xlane.xlu0 %3256
      %v3258 = vsel %vm1177, %v3250, -inf
      %3259 = vmax.xlane.f32.xlu0 %v3258
      %v3260 = vpop.xlane.xlu0 %3259
      %v3261 = vsub.f32 %v3198, %v3254
      %v3262 = vsub.f32 %v3224, %v3257
      %v3263 = vsub.f32 %v3250, %v3260
      %v3264 = vmul.f32 %v3261, 1.442695
      %v3265 = vpow.pop %v3264
      %v3266 = vmul.f32 %v3262, 1.442695
      %v3267 = vpow.pop %v3266
      %v3268 = vmul.f32 %v3263, 1.442695
      %v3269 = vpow.pop %v3268
      %v3270 = vsel %vm1177, %v3265, 0.0
      %3271 = vadd.xlane.f32.xlu0 %v3270
      %v3272 = vpop.xlane.xlu0 %3271
      %v3273 = vsel %vm1177, %v3267, 0.0
      %3274 = vadd.xlane.f32.xlu0 %v3273
      %v3275 = vpop.xlane.xlu0 %3274
      %v3276 = vsel %vm1177, %v3269, 0.0
      %3277 = vadd.xlane.f32.xlu0 %v3276
      %v3278 = vpop.xlane.xlu0 %3277
      %v3279 = vrcp.pop %v3272
      %v3280 = vrcp.pop %v3275
      %v3281 = vrcp.pop %v3278
      %v3282 = vmul.f32 %v3265, %v3279
      %v3283 = vmul.f32 %v3267, %v3280
      %v3284 = vmul.f32 %v3269, %v3281
      %v3286 = vsel %vm1177, %v3282, 0
      %3288 = vmatpush.msra.mxu0 0.0
      %3289 = vmatpush.msra.mxu0 0.0
      %3290 = vmatpush.msra.mxu0 0.0
      %3291 = vmatpush.msra.mxu0 0.0
      %3292 = vmatpush.msra.mxu0 0.0
      %3293 = vmatpush.msra.mxu0 0.0
      %3294 = vmatpush.msra.mxu0 0.0
      %3295 = vmatpush.msra.mxu0 0.0
      %3296 = vmatpush.msra.mxu0 0.0
      %3297 = vmatpush.msra.mxu0 0.0
      %3298 = vmatpush.msra.mxu0 0.0
      %3299 = vmatpush.msra.mxu0 0.0
      %3300 = vmatpush.msra.mxu0 0.0
      %3301 = vmatpush.msra.mxu0 0.0
      %3302 = vmatpush.msra.mxu0 0.0
      %3303 = vmatpush.msra.mxu0 %v3166
      %3304 = vmatmul.f32.gmra.mxu0 %v3286
      %v3305 = vpop.f32.mrf.mxu0
      %v3306 = vadd.f32 0.0, %v3305
      %3307 = vdwg.mxu0
      %v3309 = vsel %vm1177, %v3283, 0
      %3311 = vmatpush.msra.mxu0 0.0
      %3312 = vmatpush.msra.mxu0 0.0
      %3313 = vmatpush.msra.mxu0 0.0
      %3314 = vmatpush.msra.mxu0 0.0
      %3315 = vmatpush.msra.mxu0 0.0
      %3316 = vmatpush.msra.mxu0 0.0
      %3317 = vmatpush.msra.mxu0 0.0
      %3318 = vmatpush.msra.mxu0 0.0
      %3319 = vmatpush.msra.mxu0 0.0
      %3320 = vmatpush.msra.mxu0 0.0
      %3321 = vmatpush.msra.mxu0 0.0
      %3322 = vmatpush.msra.mxu0 0.0
      %3323 = vmatpush.msra.mxu0 0.0
      %3324 = vmatpush.msra.mxu0 0.0
      %3325 = vmatpush.msra.mxu0 0.0
      %3326 = vmatpush.msra.mxu0 %v3168
      %3327 = vmatmul.f32.gmra.mxu0 %v3309
      %v3328 = vpop.f32.mrf.mxu0
      %v3329 = vadd.f32 0.0, %v3328
      %3330 = vdwg.mxu0
      %v3332 = vsel %vm1177, %v3284, 0
      %3334 = vmatpush.msra.mxu0 0.0
      %3335 = vmatpush.msra.mxu0 0.0
      %3336 = vmatpush.msra.mxu0 0.0
      %3337 = vmatpush.msra.mxu0 0.0
      %3338 = vmatpush.msra.mxu0 0.0
      %3339 = vmatpush.msra.mxu0 0.0
      %3340 = vmatpush.msra.mxu0 0.0
      %3341 = vmatpush.msra.mxu0 0.0
      %3342 = vmatpush.msra.mxu0 0.0
      %3343 = vmatpush.msra.mxu0 0.0
      %3344 = vmatpush.msra.mxu0 0.0
      %3345 = vmatpush.msra.mxu0 0.0
      %3346 = vmatpush.msra.mxu0 0.0
      %3347 = vmatpush.msra.mxu0 0.0
      %3348 = vmatpush.msra.mxu0 0.0
      %3349 = vmatpush.msra.mxu0 %v3171
      %3350 = vmatmul.f32.gmra.mxu0 %v3332
      %v3351 = vpop.f32.mrf.mxu0
      %v3352 = vadd.f32 0.0, %v3351
      %3353 = vdwg.mxu0
      %v3354 = vpack.c.bf16 %v3329, %v3306
      %v3355 = vpack.c.bf16 %v3352, %v3352
      %s3356 = scalar_lea.vmem %s12, 20
      %v3357 = vld [vmem:[%s3356] sm:$0xf]
      %v3359 = vsel %vm1177, %v3354, 0
      %v3362 = vsel %vm1177, %v3355, 0
      %v3365 = vsel %vm1674, %v3357, 0
      %3367 = vmatpush.bf16.msra.mxu0 0
      %3368 = vmatpush.bf16.msra.mxu0 0
      %3369 = vmatpush.bf16.msra.mxu0 0
      %3370 = vmatpush.bf16.msra.mxu0 0
      %3371 = vmatpush.bf16.msra.mxu0 0
      %3372 = vmatpush.bf16.msra.mxu0 0
      %3373 = vmatpush.bf16.msra.mxu0 0
      %3374 = vmatpush.bf16.msra.mxu0 %v3365
      %3375 = vmatmul.bf16.gmra.mxu0 %v3359
      %v3376 = vpop.f32.mrf.mxu0
      %v3377 = vadd.f32 0.0, %v3376
      %v3378 = vpop.f32.mrf.mxu0
      %v3379 = vadd.f32 0.0, %v3378
      %3380 = vmatmul.bf16.gmra.mxu0 %v3362
      %v3381 = vpop.f32.mrf.mxu0
      %v3382 = vadd.f32 0.0, %v3381
      %v3383 = vpop.f32.mrf.mxu0
      %3384 = vdwg.mxu0
      %v3386 = vsel %vm1177, %v3047, 0
      %v3389 = vsel %vm1177, %v3048, 0
      %v3392 = vsel %vm1674, %v3050, 0
      %3394 = vmatpush.bf16.msra.mxu0 0
      %3395 = vmatpush.bf16.msra.mxu0 0
      %3396 = vmatpush.bf16.msra.mxu0 0
      %3397 = vmatpush.bf16.msra.mxu0 0
      %3398 = vmatpush.bf16.msra.mxu0 0
      %3399 = vmatpush.bf16.msra.mxu0 0
      %3400 = vmatpush.bf16.msra.mxu0 0
      %3401 = vmatpush.bf16.msra.mxu0 %v3392
      %3402 = vmatmul.bf16.gmra.mxu0 %v3386
      %v3403 = vpop.f32.mrf.mxu0
      %v3404 = vadd.f32 %v3377, %v3403
      %v3405 = vpop.f32.mrf.mxu0
      %v3406 = vadd.f32 %v3379, %v3405
      %3407 = vmatmul.bf16.gmra.mxu0 %v3389
      %v3408 = vpop.f32.mrf.mxu0
      %v3409 = vadd.f32 %v3382, %v3408
      %v3410 = vpop.f32.mrf.mxu0
      %3411 = vdwg.mxu0
      %s3412 = scalar_lea.vmem %s6, 96
      %v3413 = vld [vmem:[%s3412] sm:$0xf]
      %v3414 = vld [vmem:[%s3412 + $0x4] sm:$0xf]
      %v3415 = vld [vmem:[%s3412 + $0x8] sm:$0xf]
      %v3416 = vld [vmem:[%s3412 + $0xc] sm:$0xf]
      %s3417 = scalar_lea.vmem %s7, 6
      %v3418 = vld [vmem:[%s3417] sm:$0x1]
      %v3420 = vperm.slane %v3418, 0
      %v3426 = vunpack.c.l.b16 %v3413
      %v3427 = vunpack.c.l.b16 %v3414
      %v3428 = vunpack.c.l.b16 %v3415
      %v3429 = vunpack.c.l.b16 %v3416
      %v3430 = vpack.c.b16 %v3427, %v3426
      %v3431 = vpack.c.b16 %v3429, %v3428
      %3434 = vmatpush.bf16.msra.mxu0 0
      %3435 = vmatpush.bf16.msra.mxu0 0
      %3436 = vmatpush.bf16.msra.mxu0 0
      %3437 = vmatpush.bf16.msra.mxu0 0
      %3438 = vmatpush.bf16.msra.mxu0 0
      %3439 = vmatpush.bf16.msra.mxu0 0
      %3440 = vmatpush.bf16.msra.mxu0 %v3431
      %3441 = vmatpush.bf16.msra.mxu0 %v3430
      %3442 = vmatmul.bf16.gmra.mxu0 %v2761
      %v3443 = vpop.f32.mrf.mxu0
      %v3444 = vadd.f32 %v3420, %v3443
      %v3445 = vpop.f32.mrf.mxu0
      %v3446 = vadd.f32 %v3420, %v3445
      %3447 = vmatmul.bf16.gmra.mxu0 %v2764
      %v3448 = vpop.f32.mrf.mxu0
      %v3449 = vadd.f32 %v3420, %v3448
      %v3450 = vpop.f32.mrf.mxu0
      %3451 = vdwg.mxu0
      %v3452 = vmul.f32 %v3444, 0.35355338
      %v3453 = vmul.f32 %v3446, 0.35355338
      %v3454 = vmul.f32 %v3449, 0.35355338
      %s3455 = scalar_lea.vmem %s8, 96
      %v3456 = vld [vmem:[%s3455] sm:$0xf]
      %v3457 = vld [vmem:[%s3455 + $0x4] sm:$0xf]
      %v3458 = vld [vmem:[%s3455 + $0x8] sm:$0xf]
      %v3459 = vld [vmem:[%s3455 + $0xc] sm:$0xf]
      %s3460 = scalar_lea.vmem %s9, 6
      %v3461 = vld [vmem:[%s3460] sm:$0x1]
      %v3463 = vperm.slane %v3461, 0
      %v3469 = vunpack.c.l.b16 %v3456
      %v3470 = vunpack.c.l.b16 %v3457
      %v3471 = vunpack.c.l.b16 %v3458
      %v3472 = vunpack.c.l.b16 %v3459
      %v3473 = vpack.c.b16 %v3470, %v3469
      %v3474 = vpack.c.b16 %v3472, %v3471
      %3477 = vmatpush.bf16.msra.mxu0 0
      %3478 = vmatpush.bf16.msra.mxu0 0
      %3479 = vmatpush.bf16.msra.mxu0 0
      %3480 = vmatpush.bf16.msra.mxu0 0
      %3481 = vmatpush.bf16.msra.mxu0 0
      %3482 = vmatpush.bf16.msra.mxu0 0
      %3483 = vmatpush.bf16.msra.mxu0 %v3474
      %3484 = vmatpush.bf16.msra.mxu0 %v3473
      %3485 = vmatmul.bf16.gmra.mxu0 %v2761
      %v3486 = vpop.f32.mrf.mxu0
      %v3487 = vadd.f32 %v3463, %v3486
      %v3488 = vpop.f32.mrf.mxu0
      %v3489 = vadd.f32 %v3463, %v3488
      %3490 = vmatmul.bf16.gmra.mxu0 %v2764
      %v3491 = vpop.f32.mrf.mxu0
      %v3492 = vadd.f32 %v3463, %v3491
      %v3493 = vpop.f32.mrf.mxu0
      %3494 = vdwg.mxu0
      %s3495 = scalar_lea.vmem %s10, 96
      %v3496 = vld [vmem:[%s3495] sm:$0xf]
      %v3497 = vld [vmem:[%s3495 + $0x4] sm:$0xf]
      %v3498 = vld [vmem:[%s3495 + $0x8] sm:$0xf]
      %v3499 = vld [vmem:[%s3495 + $0xc] sm:$0xf]
      %s3500 = scalar_lea.vmem %s11, 6
      %v3501 = vld [vmem:[%s3500] sm:$0x1]
      %v3503 = vperm.slane %v3501, 0
      %v3509 = vunpack.c.l.b16 %v3496
      %v3510 = vunpack.c.l.b16 %v3497
      %v3511 = vunpack.c.l.b16 %v3498
      %v3512 = vunpack.c.l.b16 %v3499
      %v3513 = vpack.c.b16 %v3510, %v3509
      %v3514 = vpack.c.b16 %v3512, %v3511
      %3517 = vmatpush.bf16.msra.mxu0 0
      %3518 = vmatpush.bf16.msra.mxu0 0
      %3519 = vmatpush.bf16.msra.mxu0 0
      %3520 = vmatpush.bf16.msra.mxu0 0
      %3521 = vmatpush.bf16.msra.mxu0 0
      %3522 = vmatpush.bf16.msra.mxu0 0
      %3523 = vmatpush.bf16.msra.mxu0 %v3514
      %3524 = vmatpush.bf16.msra.mxu0 %v3513
      %3525 = vmatmul.bf16.gmra.mxu0 %v2761
      %v3526 = vpop.f32.mrf.mxu0
      %v3527 = vadd.f32 %v3503, %v3526
      %v3528 = vpop.f32.mrf.mxu0
      %v3529 = vadd.f32 %v3503, %v3528
      %3530 = vmatmul.bf16.gmra.mxu0 %v2764
      %v3531 = vpop.f32.mrf.mxu0
      %v3532 = vadd.f32 %v3503, %v3531
      %v3533 = vpop.f32.mrf.mxu0
      %3534 = vdwg.mxu0
      %v3536 = vsel %vm1177, %v3452, 0
      %v3539 = vsel %vm1177, %v3487, 0
      %3541 = vmatpush.xpose.msra.mxu0 0.0
      %3542 = vmatpush.xpose.msra.mxu0 0.0
      %3543 = vmatpush.xpose.msra.mxu0 0.0
      %3544 = vmatpush.xpose.msra.mxu0 0.0
      %3545 = vmatpush.xpose.msra.mxu0 0.0
      %3546 = vmatpush.xpose.msra.mxu0 0.0
      %3547 = vmatpush.xpose.msra.mxu0 0.0
      %3548 = vmatpush.xpose.msra.mxu0 0.0
      %3549 = vmatpush.xpose.msra.mxu0 0.0
      %3550 = vmatpush.xpose.msra.mxu0 0.0
      %3551 = vmatpush.xpose.msra.mxu0 0.0
      %3552 = vmatpush.xpose.msra.mxu0 0.0
      %3553 = vmatpush.xpose.msra.mxu0 0.0
      %3554 = vmatpush.xpose.msra.mxu0 0.0
      %3555 = vmatpush.xpose.msra.mxu0 0.0
      %3556 = vmatpush.xpose.msra.mxu0 %v3539
      %3557 = vmatmul.f32.gmra.mxu0 %v3536
      %v3558 = vpop.f32.mrf.mxu0
      %v3559 = vadd.f32 %v1171, %v3558
      %3560 = vdwg.mxu0
      %v3562 = vsel %vm1177, %v3453, 0
      %v3565 = vsel %vm1177, %v3489, 0
      %3567 = vmatpush.xpose.msra.mxu0 0.0
      %3568 = vmatpush.xpose.msra.mxu0 0.0
      %3569 = vmatpush.xpose.msra.mxu0 0.0
      %3570 = vmatpush.xpose.msra.mxu0 0.0
      %3571 = vmatpush.xpose.msra.mxu0 0.0
      %3572 = vmatpush.xpose.msra.mxu0 0.0
      %3573 = vmatpush.xpose.msra.mxu0 0.0
      %3574 = vmatpush.xpose.msra.mxu0 0.0
      %3575 = vmatpush.xpose.msra.mxu0 0.0
      %3576 = vmatpush.xpose.msra.mxu0 0.0
      %3577 = vmatpush.xpose.msra.mxu0 0.0
      %3578 = vmatpush.xpose.msra.mxu0 0.0
      %3579 = vmatpush.xpose.msra.mxu0 0.0
      %3580 = vmatpush.xpose.msra.mxu0 0.0
      %3581 = vmatpush.xpose.msra.mxu0 0.0
      %3582 = vmatpush.xpose.msra.mxu0 %v3565
      %3583 = vmatmul.f32.gmra.mxu0 %v3562
      %v3584 = vpop.f32.mrf.mxu0
      %v3585 = vadd.f32 %v1172, %v3584
      %3586 = vdwg.mxu0
      %v3588 = vsel %vm1177, %v3454, 0
      %v3591 = vsel %vm1177, %v3492, 0
      %3593 = vmatpush.xpose.msra.mxu0 0.0
      %3594 = vmatpush.xpose.msra.mxu0 0.0
      %3595 = vmatpush.xpose.msra.mxu0 0.0
      %3596 = vmatpush.xpose.msra.mxu0 0.0
      %3597 = vmatpush.xpose.msra.mxu0 0.0
      %3598 = vmatpush.xpose.msra.mxu0 0.0
      %3599 = vmatpush.xpose.msra.mxu0 0.0
      %3600 = vmatpush.xpose.msra.mxu0 0.0
      %3601 = vmatpush.xpose.msra.mxu0 0.0
      %3602 = vmatpush.xpose.msra.mxu0 0.0
      %3603 = vmatpush.xpose.msra.mxu0 0.0
      %3604 = vmatpush.xpose.msra.mxu0 0.0
      %3605 = vmatpush.xpose.msra.mxu0 0.0
      %3606 = vmatpush.xpose.msra.mxu0 0.0
      %3607 = vmatpush.xpose.msra.mxu0 0.0
      %3608 = vmatpush.xpose.msra.mxu0 %v3591
      %3609 = vmatmul.f32.gmra.mxu0 %v3588
      %v3610 = vpop.f32.mrf.mxu0
      %v3611 = vadd.f32 %v1173, %v3610
      %3612 = vdwg.mxu0
      %v3613 = vsel %vm1177, %v3559, -inf
      %3614 = vmax.xlane.f32.xlu0 %v3613
      %v3615 = vpop.xlane.xlu0 %3614
      %v3616 = vsel %vm1177, %v3585, -inf
      %3617 = vmax.xlane.f32.xlu0 %v3616
      %v3618 = vpop.xlane.xlu0 %3617
      %v3619 = vsel %vm1177, %v3611, -inf
      %3620 = vmax.xlane.f32.xlu0 %v3619
      %v3621 = vpop.xlane.xlu0 %3620
      %v3622 = vsub.f32 %v3559, %v3615
      %v3623 = vsub.f32 %v3585, %v3618
      %v3624 = vsub.f32 %v3611, %v3621
      %v3625 = vmul.f32 %v3622, 1.442695
      %v3626 = vpow.pop %v3625
      %v3627 = vmul.f32 %v3623, 1.442695
      %v3628 = vpow.pop %v3627
      %v3629 = vmul.f32 %v3624, 1.442695
      %v3630 = vpow.pop %v3629
      %v3631 = vsel %vm1177, %v3626, 0.0
      %3632 = vadd.xlane.f32.xlu0 %v3631
      %v3633 = vpop.xlane.xlu0 %3632
      %v3634 = vsel %vm1177, %v3628, 0.0
      %3635 = vadd.xlane.f32.xlu0 %v3634
      %v3636 = vpop.xlane.xlu0 %3635
      %v3637 = vsel %vm1177, %v3630, 0.0
      %3638 = vadd.xlane.f32.xlu0 %v3637
      %v3639 = vpop.xlane.xlu0 %3638
      %v3640 = vrcp.pop %v3633
      %v3641 = vrcp.pop %v3636
      %v3642 = vrcp.pop %v3639
      %v3643 = vmul.f32 %v3626, %v3640
      %v3644 = vmul.f32 %v3628, %v3641
      %v3645 = vmul.f32 %v3630, %v3642
      %v3647 = vsel %vm1177, %v3643, 0
      %3649 = vmatpush.msra.mxu0 0.0
      %3650 = vmatpush.msra.mxu0 0.0
      %3651 = vmatpush.msra.mxu0 0.0
      %3652 = vmatpush.msra.mxu0 0.0
      %3653 = vmatpush.msra.mxu0 0.0
      %3654 = vmatpush.msra.mxu0 0.0
      %3655 = vmatpush.msra.mxu0 0.0
      %3656 = vmatpush.msra.mxu0 0.0
      %3657 = vmatpush.msra.mxu0 0.0
      %3658 = vmatpush.msra.mxu0 0.0
      %3659 = vmatpush.msra.mxu0 0.0
      %3660 = vmatpush.msra.mxu0 0.0
      %3661 = vmatpush.msra.mxu0 0.0
      %3662 = vmatpush.msra.mxu0 0.0
      %3663 = vmatpush.msra.mxu0 0.0
      %3664 = vmatpush.msra.mxu0 %v3527
      %3665 = vmatmul.f32.gmra.mxu0 %v3647
      %v3666 = vpop.f32.mrf.mxu0
      %v3667 = vadd.f32 0.0, %v3666
      %3668 = vdwg.mxu0
      %v3670 = vsel %vm1177, %v3644, 0
      %3672 = vmatpush.msra.mxu0 0.0
      %3673 = vmatpush.msra.mxu0 0.0
      %3674 = vmatpush.msra.mxu0 0.0
      %3675 = vmatpush.msra.mxu0 0.0
      %3676 = vmatpush.msra.mxu0 0.0
      %3677 = vmatpush.msra.mxu0 0.0
      %3678 = vmatpush.msra.mxu0 0.0
      %3679 = vmatpush.msra.mxu0 0.0
      %3680 = vmatpush.msra.mxu0 0.0
      %3681 = vmatpush.msra.mxu0 0.0
      %3682 = vmatpush.msra.mxu0 0.0
      %3683 = vmatpush.msra.mxu0 0.0
      %3684 = vmatpush.msra.mxu0 0.0
      %3685 = vmatpush.msra.mxu0 0.0
      %3686 = vmatpush.msra.mxu0 0.0
      %3687 = vmatpush.msra.mxu0 %v3529
      %3688 = vmatmul.f32.gmra.mxu0 %v3670
      %v3689 = vpop.f32.mrf.mxu0
      %v3690 = vadd.f32 0.0, %v3689
      %3691 = vdwg.mxu0
      %v3693 = vsel %vm1177, %v3645, 0
      %3695 = vmatpush.msra.mxu0 0.0
      %3696 = vmatpush.msra.mxu0 0.0
      %3697 = vmatpush.msra.mxu0 0.0
      %3698 = vmatpush.msra.mxu0 0.0
      %3699 = vmatpush.msra.mxu0 0.0
      %3700 = vmatpush.msra.mxu0 0.0
      %3701 = vmatpush.msra.mxu0 0.0
      %3702 = vmatpush.msra.mxu0 0.0
      %3703 = vmatpush.msra.mxu0 0.0
      %3704 = vmatpush.msra.mxu0 0.0
      %3705 = vmatpush.msra.mxu0 0.0
      %3706 = vmatpush.msra.mxu0 0.0
      %3707 = vmatpush.msra.mxu0 0.0
      %3708 = vmatpush.msra.mxu0 0.0
      %3709 = vmatpush.msra.mxu0 0.0
      %3710 = vmatpush.msra.mxu0 %v3532
      %3711 = vmatmul.f32.gmra.mxu0 %v3693
      %v3712 = vpop.f32.mrf.mxu0
      %v3713 = vadd.f32 0.0, %v3712
      %3714 = vdwg.mxu0
      %v3715 = vpack.c.bf16 %v3690, %v3667
      %v3716 = vpack.c.bf16 %v3713, %v3713
      %s3717 = scalar_lea.vmem %s12, 24
      %v3718 = vld [vmem:[%s3717] sm:$0xf]
      %v3720 = vsel %vm1177, %v3715, 0
      %v3723 = vsel %vm1177, %v3716, 0
      %v3726 = vsel %vm1674, %v3718, 0
      %3728 = vmatpush.bf16.msra.mxu0 0
      %3729 = vmatpush.bf16.msra.mxu0 0
      %3730 = vmatpush.bf16.msra.mxu0 0
      %3731 = vmatpush.bf16.msra.mxu0 0
      %3732 = vmatpush.bf16.msra.mxu0 0
      %3733 = vmatpush.bf16.msra.mxu0 0
      %3734 = vmatpush.bf16.msra.mxu0 0
      %3735 = vmatpush.bf16.msra.mxu0 %v3726
      %3736 = vmatmul.bf16.gmra.mxu0 %v3720
      %v3737 = vpop.f32.mrf.mxu0
      %v3738 = vadd.f32 0.0, %v3737
      %v3739 = vpop.f32.mrf.mxu0
      %v3740 = vadd.f32 0.0, %v3739
      %3741 = vmatmul.bf16.gmra.mxu0 %v3723
      %v3742 = vpop.f32.mrf.mxu0
      %v3743 = vadd.f32 0.0, %v3742
      %v3744 = vpop.f32.mrf.mxu0
      %3745 = vdwg.mxu0
      %v3746 = vadd.f32 %v3404, %v3738
      %v3747 = vadd.f32 %v3406, %v3740
      %v3748 = vadd.f32 %v3409, %v3743
      %s3749 = scalar_lea.vmem %s6, 112
      %v3750 = vld [vmem:[%s3749] sm:$0xf]
      %v3751 = vld [vmem:[%s3749 + $0x4] sm:$0xf]
      %v3752 = vld [vmem:[%s3749 + $0x8] sm:$0xf]
      %v3753 = vld [vmem:[%s3749 + $0xc] sm:$0xf]
      %s3754 = scalar_lea.vmem %s7, 7
      %v3755 = vld [vmem:[%s3754] sm:$0x1]
      %v3757 = vperm.slane %v3755, 0
      %v3763 = vunpack.c.l.b16 %v3750
      %v3764 = vunpack.c.l.b16 %v3751
      %v3765 = vunpack.c.l.b16 %v3752
      %v3766 = vunpack.c.l.b16 %v3753
      %v3767 = vpack.c.b16 %v3764, %v3763
      %v3768 = vpack.c.b16 %v3766, %v3765
      %3771 = vmatpush.bf16.msra.mxu0 0
      %3772 = vmatpush.bf16.msra.mxu0 0
      %3773 = vmatpush.bf16.msra.mxu0 0
      %3774 = vmatpush.bf16.msra.mxu0 0
      %3775 = vmatpush.bf16.msra.mxu0 0
      %3776 = vmatpush.bf16.msra.mxu0 0
      %3777 = vmatpush.bf16.msra.mxu0 %v3768
      %3778 = vmatpush.bf16.msra.mxu0 %v3767
      %3779 = vmatmul.bf16.gmra.mxu0 %v2761
      %v3780 = vpop.f32.mrf.mxu0
      %v3781 = vadd.f32 %v3757, %v3780
      %v3782 = vpop.f32.mrf.mxu0
      %v3783 = vadd.f32 %v3757, %v3782
      %3784 = vmatmul.bf16.gmra.mxu0 %v2764
      %v3785 = vpop.f32.mrf.mxu0
      %v3786 = vadd.f32 %v3757, %v3785
      %v3787 = vpop.f32.mrf.mxu0
      %3788 = vdwg.mxu0
      %v3789 = vmul.f32 %v3781, 0.35355338
      %v3790 = vmul.f32 %v3783, 0.35355338
      %v3791 = vmul.f32 %v3786, 0.35355338
      %s3792 = scalar_lea.vmem %s8, 112
      %v3793 = vld [vmem:[%s3792] sm:$0xf]
      %v3794 = vld [vmem:[%s3792 + $0x4] sm:$0xf]
      %v3795 = vld [vmem:[%s3792 + $0x8] sm:$0xf]
      %v3796 = vld [vmem:[%s3792 + $0xc] sm:$0xf]
      %s3797 = scalar_lea.vmem %s9, 7
      %v3798 = vld [vmem:[%s3797] sm:$0x1]
      %v3800 = vperm.slane %v3798, 0
      %v3806 = vunpack.c.l.b16 %v3793
      %v3807 = vunpack.c.l.b16 %v3794
      %v3808 = vunpack.c.l.b16 %v3795
      %v3809 = vunpack.c.l.b16 %v3796
      %v3810 = vpack.c.b16 %v3807, %v3806
      %v3811 = vpack.c.b16 %v3809, %v3808
      %3814 = vmatpush.bf16.msra.mxu0 0
      %3815 = vmatpush.bf16.msra.mxu0 0
      %3816 = vmatpush.bf16.msra.mxu0 0
      %3817 = vmatpush.bf16.msra.mxu0 0
      %3818 = vmatpush.bf16.msra.mxu0 0
      %3819 = vmatpush.bf16.msra.mxu0 0
      %3820 = vmatpush.bf16.msra.mxu0 %v3811
      %3821 = vmatpush.bf16.msra.mxu0 %v3810
      %3822 = vmatmul.bf16.gmra.mxu0 %v2761
      %v3823 = vpop.f32.mrf.mxu0
      %v3824 = vadd.f32 %v3800, %v3823
      %v3825 = vpop.f32.mrf.mxu0
      %v3826 = vadd.f32 %v3800, %v3825
      %3827 = vmatmul.bf16.gmra.mxu0 %v2764
      %v3828 = vpop.f32.mrf.mxu0
      %v3829 = vadd.f32 %v3800, %v3828
      %v3830 = vpop.f32.mrf.mxu0
      %3831 = vdwg.mxu0
      %s3832 = scalar_lea.vmem %s10, 112
      %v3833 = vld [vmem:[%s3832] sm:$0xf]
      %v3834 = vld [vmem:[%s3832 + $0x4] sm:$0xf]
      %v3835 = vld [vmem:[%s3832 + $0x8] sm:$0xf]
      %v3836 = vld [vmem:[%s3832 + $0xc] sm:$0xf]
      %s3837 = scalar_lea.vmem %s11, 7
      %v3838 = vld [vmem:[%s3837] sm:$0x1]
      %v3840 = vperm.slane %v3838, 0
      %v3846 = vunpack.c.l.b16 %v3833
      %v3847 = vunpack.c.l.b16 %v3834
      %v3848 = vunpack.c.l.b16 %v3835
      %v3849 = vunpack.c.l.b16 %v3836
      %v3850 = vpack.c.b16 %v3847, %v3846
      %v3851 = vpack.c.b16 %v3849, %v3848
      %3854 = vmatpush.bf16.msra.mxu0 0
      %3855 = vmatpush.bf16.msra.mxu0 0
      %3856 = vmatpush.bf16.msra.mxu0 0
      %3857 = vmatpush.bf16.msra.mxu0 0
      %3858 = vmatpush.bf16.msra.mxu0 0
      %3859 = vmatpush.bf16.msra.mxu0 0
      %3860 = vmatpush.bf16.msra.mxu0 %v3851
      %3861 = vmatpush.bf16.msra.mxu0 %v3850
      %3862 = vmatmul.bf16.gmra.mxu0 %v2761
      %v3863 = vpop.f32.mrf.mxu0
      %v3864 = vadd.f32 %v3840, %v3863
      %v3865 = vpop.f32.mrf.mxu0
      %v3866 = vadd.f32 %v3840, %v3865
      %3867 = vmatmul.bf16.gmra.mxu0 %v2764
      %v3868 = vpop.f32.mrf.mxu0
      %v3869 = vadd.f32 %v3840, %v3868
      %v3870 = vpop.f32.mrf.mxu0
      %3871 = vdwg.mxu0
      %v3873 = vsel %vm1177, %v3789, 0
      %v3876 = vsel %vm1177, %v3824, 0
      %3878 = vmatpush.xpose.msra.mxu0 0.0
      %3879 = vmatpush.xpose.msra.mxu0 0.0
      %3880 = vmatpush.xpose.msra.mxu0 0.0
      %3881 = vmatpush.xpose.msra.mxu0 0.0
      %3882 = vmatpush.xpose.msra.mxu0 0.0
      %3883 = vmatpush.xpose.msra.mxu0 0.0
      %3884 = vmatpush.xpose.msra.mxu0 0.0
      %3885 = vmatpush.xpose.msra.mxu0 0.0
      %3886 = vmatpush.xpose.msra.mxu0 0.0
      %3887 = vmatpush.xpose.msra.mxu0 0.0
      %3888 = vmatpush.xpose.msra.mxu0 0.0
      %3889 = vmatpush.xpose.msra.mxu0 0.0
      %3890 = vmatpush.xpose.msra.mxu0 0.0
      %3891 = vmatpush.xpose.msra.mxu0 0.0
      %3892 = vmatpush.xpose.msra.mxu0 0.0
      %3893 = vmatpush.xpose.msra.mxu0 %v3876
      %3894 = vmatmul.f32.gmra.mxu0 %v3873
      %v3895 = vpop.f32.mrf.mxu0
      %v3896 = vadd.f32 %v1171, %v3895
      %3897 = vdwg.mxu0
      %v3899 = vsel %vm1177, %v3790, 0
      %v3902 = vsel %vm1177, %v3826, 0
      %3904 = vmatpush.xpose.msra.mxu0 0.0
      %3905 = vmatpush.xpose.msra.mxu0 0.0
      %3906 = vmatpush.xpose.msra.mxu0 0.0
      %3907 = vmatpush.xpose.msra.mxu0 0.0
      %3908 = vmatpush.xpose.msra.mxu0 0.0
      %3909 = vmatpush.xpose.msra.mxu0 0.0
      %3910 = vmatpush.xpose.msra.mxu0 0.0
      %3911 = vmatpush.xpose.msra.mxu0 0.0
      %3912 = vmatpush.xpose.msra.mxu0 0.0
      %3913 = vmatpush.xpose.msra.mxu0 0.0
      %3914 = vmatpush.xpose.msra.mxu0 0.0
      %3915 = vmatpush.xpose.msra.mxu0 0.0
      %3916 = vmatpush.xpose.msra.mxu0 0.0
      %3917 = vmatpush.xpose.msra.mxu0 0.0
      %3918 = vmatpush.xpose.msra.mxu0 0.0
      %3919 = vmatpush.xpose.msra.mxu0 %v3902
      %3920 = vmatmul.f32.gmra.mxu0 %v3899
      %v3921 = vpop.f32.mrf.mxu0
      %v3922 = vadd.f32 %v1172, %v3921
      %3923 = vdwg.mxu0
      %v3925 = vsel %vm1177, %v3791, 0
      %v3928 = vsel %vm1177, %v3829, 0
      %3930 = vmatpush.xpose.msra.mxu0 0.0
      %3931 = vmatpush.xpose.msra.mxu0 0.0
      %3932 = vmatpush.xpose.msra.mxu0 0.0
      %3933 = vmatpush.xpose.msra.mxu0 0.0
      %3934 = vmatpush.xpose.msra.mxu0 0.0
      %3935 = vmatpush.xpose.msra.mxu0 0.0
      %3936 = vmatpush.xpose.msra.mxu0 0.0
      %3937 = vmatpush.xpose.msra.mxu0 0.0
      %3938 = vmatpush.xpose.msra.mxu0 0.0
      %3939 = vmatpush.xpose.msra.mxu0 0.0
      %3940 = vmatpush.xpose.msra.mxu0 0.0
      %3941 = vmatpush.xpose.msra.mxu0 0.0
      %3942 = vmatpush.xpose.msra.mxu0 0.0
      %3943 = vmatpush.xpose.msra.mxu0 0.0
      %3944 = vmatpush.xpose.msra.mxu0 0.0
      %3945 = vmatpush.xpose.msra.mxu0 %v3928
      %3946 = vmatmul.f32.gmra.mxu0 %v3925
      %v3947 = vpop.f32.mrf.mxu0
      %v3948 = vadd.f32 %v1173, %v3947
      %3949 = vdwg.mxu0
      %v3950 = vsel %vm1177, %v3896, -inf
      %3951 = vmax.xlane.f32.xlu0 %v3950
      %v3952 = vpop.xlane.xlu0 %3951
      %v3953 = vsel %vm1177, %v3922, -inf
      %3954 = vmax.xlane.f32.xlu0 %v3953
      %v3955 = vpop.xlane.xlu0 %3954
      %v3956 = vsel %vm1177, %v3948, -inf
      %3957 = vmax.xlane.f32.xlu0 %v3956
      %v3958 = vpop.xlane.xlu0 %3957
      %v3959 = vsub.f32 %v3896, %v3952
      %v3960 = vsub.f32 %v3922, %v3955
      %v3961 = vsub.f32 %v3948, %v3958
      %v3962 = vmul.f32 %v3959, 1.442695
      %v3963 = vpow.pop %v3962
      %v3964 = vmul.f32 %v3960, 1.442695
      %v3965 = vpow.pop %v3964
      %v3966 = vmul.f32 %v3961, 1.442695
      %v3967 = vpow.pop %v3966
      %v3968 = vsel %vm1177, %v3963, 0.0
      %3969 = vadd.xlane.f32.xlu0 %v3968
      %v3970 = vpop.xlane.xlu0 %3969
      %v3971 = vsel %vm1177, %v3965, 0.0
      %3972 = vadd.xlane.f32.xlu0 %v3971
      %v3973 = vpop.xlane.xlu0 %3972
      %v3974 = vsel %vm1177, %v3967, 0.0
      %3975 = vadd.xlane.f32.xlu0 %v3974
      %v3976 = vpop.xlane.xlu0 %3975
      %v3977 = vrcp.pop %v3970
      %v3978 = vrcp.pop %v3973
      %v3979 = vrcp.pop %v3976
      %v3980 = vmul.f32 %v3963, %v3977
      %v3981 = vmul.f32 %v3965, %v3978
      %v3982 = vmul.f32 %v3967, %v3979
      %v3984 = vsel %vm1177, %v3980, 0
      %3986 = vmatpush.msra.mxu0 0.0
      %3987 = vmatpush.msra.mxu0 0.0
      %3988 = vmatpush.msra.mxu0 0.0
      %3989 = vmatpush.msra.mxu0 0.0
      %3990 = vmatpush.msra.mxu0 0.0
      %3991 = vmatpush.msra.mxu0 0.0
      %3992 = vmatpush.msra.mxu0 0.0
      %3993 = vmatpush.msra.mxu0 0.0
      %3994 = vmatpush.msra.mxu0 0.0
      %3995 = vmatpush.msra.mxu0 0.0
      %3996 = vmatpush.msra.mxu0 0.0
      %3997 = vmatpush.msra.mxu0 0.0
      %3998 = vmatpush.msra.mxu0 0.0
      %3999 = vmatpush.msra.mxu0 0.0
      %4000 = vmatpush.msra.mxu0 0.0
      %4001 = vmatpush.msra.mxu0 %v3864
      %4002 = vmatmul.f32.gmra.mxu0 %v3984
      %v4003 = vpop.f32.mrf.mxu0
      %v4004 = vadd.f32 0.0, %v4003
      %4005 = vdwg.mxu0
      %v4007 = vsel %vm1177, %v3981, 0
      %4009 = vmatpush.msra.mxu0 0.0
      %4010 = vmatpush.msra.mxu0 0.0
      %4011 = vmatpush.msra.mxu0 0.0
      %4012 = vmatpush.msra.mxu0 0.0
      %4013 = vmatpush.msra.mxu0 0.0
      %4014 = vmatpush.msra.mxu0 0.0
      %4015 = vmatpush.msra.mxu0 0.0
      %4016 = vmatpush.msra.mxu0 0.0
      %4017 = vmatpush.msra.mxu0 0.0
      %4018 = vmatpush.msra.mxu0 0.0
      %4019 = vmatpush.msra.mxu0 0.0
      %4020 = vmatpush.msra.mxu0 0.0
      %4021 = vmatpush.msra.mxu0 0.0
      %4022 = vmatpush.msra.mxu0 0.0
      %4023 = vmatpush.msra.mxu0 0.0
      %4024 = vmatpush.msra.mxu0 %v3866
      %4025 = vmatmul.f32.gmra.mxu0 %v4007
      %v4026 = vpop.f32.mrf.mxu0
      %v4027 = vadd.f32 0.0, %v4026
      %4028 = vdwg.mxu0
      %v4030 = vsel %vm1177, %v3982, 0
      %4032 = vmatpush.msra.mxu0 0.0
      %4033 = vmatpush.msra.mxu0 0.0
      %4034 = vmatpush.msra.mxu0 0.0
      %4035 = vmatpush.msra.mxu0 0.0
      %4036 = vmatpush.msra.mxu0 0.0
      %4037 = vmatpush.msra.mxu0 0.0
      %4038 = vmatpush.msra.mxu0 0.0
      %4039 = vmatpush.msra.mxu0 0.0
      %4040 = vmatpush.msra.mxu0 0.0
      %4041 = vmatpush.msra.mxu0 0.0
      %4042 = vmatpush.msra.mxu0 0.0
      %4043 = vmatpush.msra.mxu0 0.0
      %4044 = vmatpush.msra.mxu0 0.0
      %4045 = vmatpush.msra.mxu0 0.0
      %4046 = vmatpush.msra.mxu0 0.0
      %4047 = vmatpush.msra.mxu0 %v3869
      %4048 = vmatmul.f32.gmra.mxu0 %v4030
      %v4049 = vpop.f32.mrf.mxu0
      %v4050 = vadd.f32 0.0, %v4049
      %4051 = vdwg.mxu0
      %v4052 = vpack.c.bf16 %v4027, %v4004
      %v4053 = vpack.c.bf16 %v4050, %v4050
      %s4054 = scalar_lea.vmem %s12, 28
      %v4055 = vld [vmem:[%s4054] sm:$0xf]
      %v4057 = vsel %vm1177, %v4052, 0
      %v4060 = vsel %vm1177, %v4053, 0
      %v4063 = vsel %vm1674, %v4055, 0
      %4065 = vmatpush.bf16.msra.mxu0 0
      %4066 = vmatpush.bf16.msra.mxu0 0
      %4067 = vmatpush.bf16.msra.mxu0 0
      %4068 = vmatpush.bf16.msra.mxu0 0
      %4069 = vmatpush.bf16.msra.mxu0 0
      %4070 = vmatpush.bf16.msra.mxu0 0
      %4071 = vmatpush.bf16.msra.mxu0 0
      %4072 = vmatpush.bf16.msra.mxu0 %v4063
      %4073 = vmatmul.bf16.gmra.mxu0 %v4057
      %v4074 = vpop.f32.mrf.mxu0
      %v4075 = vadd.f32 0.0, %v4074
      %v4076 = vpop.f32.mrf.mxu0
      %v4077 = vadd.f32 0.0, %v4076
      %4078 = vmatmul.bf16.gmra.mxu0 %v4060
      %v4079 = vpop.f32.mrf.mxu0
      %v4080 = vadd.f32 0.0, %v4079
      %v4081 = vpop.f32.mrf.mxu0
      %4082 = vdwg.mxu0
      %v4083 = vadd.f32 %v3746, %v4075
      %v4084 = vadd.f32 %v3747, %v4077
      %v4085 = vadd.f32 %v3748, %v4080
      %v4086 = vadd.f32 %v2651, %v4083
      %v4087 = vadd.f32 %v2652, %v4084
      %v4088 = vadd.f32 %v2653, %v4085
      %s4089 = scalar_lea.vmem %s13, 1
      %v4090 = vld [vmem:[%s4089] sm:$0x1]
      %v4092 = vperm.slane %v4090, 0
      %v4094 = vadd.f32 %v4086, %v4092
      %v4095 = vadd.f32 %v4087, %v4092
      %v4096 = vadd.f32 %v4088, %v4092
      %s4097 = scalar_lea.vmem %s14, 1
      %v4098 = vld [vmem:[%s4097] sm:$0x1]
      %s4099 = scalar_lea.vmem %s15, 1
      %v4100 = vld [vmem:[%s4099] sm:$0x1]
      %v4101 = vsel %vm877, %v4094, 0.0
      %4102 = vadd.xlane.f32.xlu0 %v4101
      %v4103 = vpop.xlane.xlu0 %4102
      %v4104 = vsel %vm877, %v4095, 0.0
      %4105 = vadd.xlane.f32.xlu0 %v4104
      %v4106 = vpop.xlane.xlu0 %4105
      %v4107 = vsel %vm877, %v4096, 0.0
      %4108 = vadd.xlane.f32.xlu0 %v4107
      %v4109 = vpop.xlane.xlu0 %4108
      %v4110 = vmul.f32 %v4103, %v893
      %v4111 = vmul.f32 %v4106, %v893
      %v4112 = vmul.f32 %v4109, %v893
      %v4113 = vsub.f32 %v4094, %v4110
      %v4114 = vsub.f32 %v4095, %v4111
      %v4115 = vsub.f32 %v4096, %v4112
      %v4116 = vmul.f32 %v4113, %v4113
      %v4117 = vmul.f32 %v4114, %v4114
      %v4118 = vmul.f32 %v4115, %v4115
      %v4119 = vsel %vm877, %v4116, 0.0
      %4120 = vadd.xlane.f32.xlu0 %v4119
      %v4121 = vpop.xlane.xlu0 %4120
      %v4122 = vsel %vm877, %v4117, 0.0
      %4123 = vadd.xlane.f32.xlu0 %v4122
      %v4124 = vpop.xlane.xlu0 %4123
      %v4125 = vsel %vm877, %v4118, 0.0
      %4126 = vadd.xlane.f32.xlu0 %v4125
      %v4127 = vpop.xlane.xlu0 %4126
      %v4128 = vmul.f32 %v4121, %v893
      %v4129 = vmul.f32 %v4124, %v893
      %v4130 = vmul.f32 %v4127, %v893
      %v4131 = vadd.f32 %v4128, 1e-05
      %v4132 = vadd.f32 %v4129, 1e-05
      %v4133 = vadd.f32 %v4130, 1e-05
      %v4134 = vrsqrt.pop %v4131
      %v4135 = vmul.f32 %v4134, %v4131
      %v4136 = vmul.f32 %v4135, %v4134
      %v4137 = vmul.f32 0.5, %v4136
      %v4138 = vsub.f32 1.5, %v4137
      %v4139 = vmul.f32 %v4134, %v4138
      %vm4140 = vweird.f32 %v4131
      %vm4141 = vweird.f32 %v4134
      %vm4142 = vmor %vm4140, %vm4141
      %v4143 = vsel %vm4142, %v4134, %v4139
      %v4144 = vrsqrt.pop %v4132
      %v4145 = vmul.f32 %v4144, %v4132
      %v4146 = vmul.f32 %v4145, %v4144
      %v4147 = vmul.f32 0.5, %v4146
      %v4148 = vsub.f32 1.5, %v4147
      %v4149 = vmul.f32 %v4144, %v4148
      %vm4150 = vweird.f32 %v4132
      %vm4151 = vweird.f32 %v4144
      %vm4152 = vmor %vm4150, %vm4151
      %v4153 = vsel %vm4152, %v4144, %v4149
      %v4154 = vrsqrt.pop %v4133
      %v4155 = vmul.f32 %v4154, %v4133
      %v4156 = vmul.f32 %v4155, %v4154
      %v4157 = vmul.f32 0.5, %v4156
      %v4158 = vsub.f32 1.5, %v4157
      %v4159 = vmul.f32 %v4154, %v4158
      %vm4160 = vweird.f32 %v4133
      %vm4161 = vweird.f32 %v4154
      %vm4162 = vmor %vm4160, %vm4161
      %v4163 = vsel %vm4162, %v4154, %v4159
      %v4164 = vmul.f32 %v4113, %v4143
      %v4165 = vmul.f32 %v4114, %v4153
      %v4166 = vmul.f32 %v4115, %v4163
      %v4168 = vperm.slane %v4098, 0
      %v4170 = vmul.f32 %v4164, %v4168
      %v4171 = vmul.f32 %v4165, %v4168
      %v4172 = vmul.f32 %v4166, %v4168
      %v4174 = vperm.slane %v4100, 0
      %v4176 = vadd.f32 %v4170, %v4174
      %v4177 = vadd.f32 %v4171, %v4174
      %v4178 = vadd.f32 %v4172, %v4174
      %v4179 = vpack.c.bf16 %v4177, %v4176
      %v4180 = vpack.c.bf16 %v4178, %v4178
      %s4181 = scalar_lea.vmem %s16, 16
      %v4182 = vld [vmem:[%s4181] sm:$0xf]
      %v4183 = vld [vmem:[%s4181 + $0x4] sm:$0xf]
      %v4184 = vld [vmem:[%s4181 + $0x8] sm:$0xf]
      %v4185 = vld [vmem:[%s4181 + $0xc] sm:$0xf]
      %s4186 = scalar_lea.vmem %s17, 1
      %v4187 = vld [vmem:[%s4186] sm:$0x1]
      %v4189 = vperm.slane %v4187, 0
      %v4195 = vunpack.c.l.b16 %v4182
      %v4196 = vunpack.c.l.b16 %v4183
      %v4197 = vunpack.c.l.b16 %v4184
      %v4198 = vunpack.c.l.b16 %v4185
      %v4199 = vpack.c.b16 %v4196, %v4195
      %v4200 = vpack.c.b16 %v4198, %v4197
      %v4204 = vsel %vm877, %v4179, 0
      %v4207 = vsel %vm877, %v4180, 0
      %4209 = vmatpush.bf16.msra.mxu0 0
      %4210 = vmatpush.bf16.msra.mxu0 0
      %4211 = vmatpush.bf16.msra.mxu0 0
      %4212 = vmatpush.bf16.msra.mxu0 0
      %4213 = vmatpush.bf16.msra.mxu0 0
      %4214 = vmatpush.bf16.msra.mxu0 0
      %4215 = vmatpush.bf16.msra.mxu0 %v4200
      %4216 = vmatpush.bf16.msra.mxu0 %v4199
      %4217 = vmatmul.bf16.gmra.mxu0 %v4204
      %v4218 = vpop.f32.mrf.mxu0
      %v4219 = vadd.f32 %v4189, %v4218
      %v4220 = vpop.f32.mrf.mxu0
      %v4221 = vadd.f32 %v4189, %v4220
      %4222 = vmatmul.bf16.gmra.mxu0 %v4207
      %v4223 = vpop.f32.mrf.mxu0
      %v4224 = vadd.f32 %v4189, %v4223
      %v4225 = vpop.f32.mrf.mxu0
      %4226 = vdwg.mxu0
      %v4227 = vmul.f32 %v4219, %v4219
      %v4228 = vmul.f32 %v4221, %v4221
      %v4229 = vmul.f32 %v4224, %v4224
      %v4230 = vmul.f32 %v4219, %v4227
      %v4231 = vmul.f32 %v4221, %v4228
      %v4232 = vmul.f32 %v4224, %v4229
      %v4233 = vmul.f32 %v4230, 0.044715
      %v4234 = vmul.f32 %v4231, 0.044715
      %v4235 = vmul.f32 %v4232, 0.044715
      %v4236 = vadd.f32 %v4219, %v4233
      %v4237 = vadd.f32 %v4221, %v4234
      %v4238 = vadd.f32 %v4224, %v4235
      %v4239 = vmul.f32 %v4236, 0.7978846
      %v4240 = vmul.f32 %v4237, 0.7978846
      %v4241 = vmul.f32 %v4238, 0.7978846
      %v4242 = vtanh.pop %v4239
      %v4243 = vtanh.pop %v4240
      %v4244 = vtanh.pop %v4241
      %v4245 = vadd.f32 %v4242, 1.0
      %v4246 = vadd.f32 %v4243, 1.0
      %v4247 = vadd.f32 %v4244, 1.0
      %v4248 = vmul.f32 %v4245, 0.5
      %v4249 = vmul.f32 %v4246, 0.5
      %v4250 = vmul.f32 %v4247, 0.5
      %v4251 = vmul.f32 %v4219, %v4248
      %v4252 = vmul.f32 %v4221, %v4249
      %v4253 = vmul.f32 %v4224, %v4250
      %v4254 = vpack.c.bf16 %v4252, %v4251
      %v4255 = vpack.c.bf16 %v4253, %v4253
      %s4256 = scalar_lea.vmem %s18, 64
      %v4257 = vld [vmem:[%s4256] sm:$0xf]
      %v4258 = vld [vmem:[%s4256 + $0x4] sm:$0xf]
      %v4259 = vld [vmem:[%s4256 + $0x8] sm:$0xf]
      %v4260 = vld [vmem:[%s4256 + $0xc] sm:$0xf]
      %v4261 = vld [vmem:[%s4256 + $0x10] sm:$0xf]
      %v4262 = vld [vmem:[%s4256 + $0x14] sm:$0xf]
      %v4263 = vld [vmem:[%s4256 + $0x18] sm:$0xf]
      %v4264 = vld [vmem:[%s4256 + $0x1c] sm:$0xf]
      %v4265 = vld [vmem:[%s4256 + $0x20] sm:$0xf]
      %v4266 = vld [vmem:[%s4256 + $0x24] sm:$0xf]
      %v4267 = vld [vmem:[%s4256 + $0x28] sm:$0xf]
      %v4268 = vld [vmem:[%s4256 + $0x2c] sm:$0xf]
      %v4269 = vld [vmem:[%s4256 + $0x30] sm:$0xf]
      %v4270 = vld [vmem:[%s4256 + $0x34] sm:$0xf]
      %v4271 = vld [vmem:[%s4256 + $0x38] sm:$0xf]
      %v4272 = vld [vmem:[%s4256 + $0x3c] sm:$0xf]
      %v4289 = vunpack.c.l.b16 %v4257
      %v4290 = vunpack.c.l.b16 %v4258
      %v4291 = vunpack.c.l.b16 %v4259
      %v4292 = vunpack.c.l.b16 %v4260
      %v4293 = vunpack.c.l.b16 %v4261
      %v4294 = vunpack.c.l.b16 %v4262
      %v4295 = vunpack.c.l.b16 %v4263
      %v4296 = vunpack.c.l.b16 %v4264
      %v4297 = vunpack.c.l.b16 %v4265
      %v4298 = vunpack.c.l.b16 %v4266
      %v4299 = vunpack.c.l.b16 %v4267
      %v4300 = vunpack.c.l.b16 %v4268
      %v4301 = vunpack.c.l.b16 %v4269
      %v4302 = vunpack.c.l.b16 %v4270
      %v4303 = vunpack.c.l.b16 %v4271
      %v4304 = vunpack.c.l.b16 %v4272
      %v4305 = vpack.c.b16 %v4290, %v4289
      %v4306 = vpack.c.b16 %v4292, %v4291
      %v4307 = vpack.c.b16 %v4294, %v4293
      %v4308 = vpack.c.b16 %v4296, %v4295
      %v4309 = vpack.c.b16 %v4298, %v4297
      %v4310 = vpack.c.b16 %v4300, %v4299
      %v4311 = vpack.c.b16 %v4302, %v4301
      %v4312 = vpack.c.b16 %v4304, %v4303
      %4321 = vmatpush.bf16.msra.mxu0 %v4312
      %4322 = vmatpush.bf16.msra.mxu0 %v4311
      %4323 = vmatpush.bf16.msra.mxu0 %v4310
      %4324 = vmatpush.bf16.msra.mxu0 %v4309
      %4325 = vmatpush.bf16.msra.mxu0 %v4308
      %4326 = vmatpush.bf16.msra.mxu0 %v4307
      %4327 = vmatpush.bf16.msra.mxu0 %v4306
      %4328 = vmatpush.bf16.msra.mxu0 %v4305
      %4329 = vmatmul.bf16.gmra.mxu0 %v4254
      %v4330 = vpop.f32.mrf.mxu0
      %v4331 = vadd.f32 0.0, %v4330
      %v4332 = vpop.f32.mrf.mxu0
      %v4333 = vadd.f32 0.0, %v4332
      %4334 = vmatmul.bf16.gmra.mxu0 %v4255
      %v4335 = vpop.f32.mrf.mxu0
      %v4336 = vadd.f32 0.0, %v4335
      %v4337 = vpop.f32.mrf.mxu0
      %4338 = vdwg.mxu0
      %v4339 = vadd.f32 %v4094, %v4331
      %v4340 = vadd.f32 %v4095, %v4333
      %v4341 = vadd.f32 %v4096, %v4336
      %s4342 = scalar_lea.vmem %s19, 1
      %v4343 = vld [vmem:[%s4342] sm:$0x1]
      %v4345 = vperm.slane %v4343, 0
      %v4347 = vadd.f32 %v4339, %v4345
      %v4348 = vadd.f32 %v4340, %v4345
      %v4349 = vadd.f32 %v4341, %v4345
      %v4350 = vld [vmem:[%s20] sm:$0x1]
      %v4351 = vld [vmem:[%s21] sm:$0x1]
      %v4352 = vsel %vm877, %v4347, 0.0
      %4353 = vadd.xlane.f32.xlu0 %v4352
      %v4354 = vpop.xlane.xlu0 %4353
      %v4355 = vsel %vm877, %v4348, 0.0
      %4356 = vadd.xlane.f32.xlu0 %v4355
      %v4357 = vpop.xlane.xlu0 %4356
      %v4358 = vsel %vm877, %v4349, 0.0
      %4359 = vadd.xlane.f32.xlu0 %v4358
      %v4360 = vpop.xlane.xlu0 %4359
      %v4361 = vmul.f32 %v4354, %v893
      %v4362 = vmul.f32 %v4357, %v893
      %v4363 = vmul.f32 %v4360, %v893
      %v4364 = vsub.f32 %v4347, %v4361
      %v4365 = vsub.f32 %v4348, %v4362
      %v4366 = vsub.f32 %v4349, %v4363
      %v4367 = vmul.f32 %v4364, %v4364
      %v4368 = vmul.f32 %v4365, %v4365
      %v4369 = vmul.f32 %v4366, %v4366
      %v4370 = vsel %vm877, %v4367, 0.0
      %4371 = vadd.xlane.f32.xlu0 %v4370
      %v4372 = vpop.xlane.xlu0 %4371
      %v4373 = vsel %vm877, %v4368, 0.0
      %4374 = vadd.xlane.f32.xlu0 %v4373
      %v4375 = vpop.xlane.xlu0 %4374
      %v4376 = vsel %vm877, %v4369, 0.0
      %4377 = vadd.xlane.f32.xlu0 %v4376
      %v4378 = vpop.xlane.xlu0 %4377
      %v4379 = vmul.f32 %v4372, %v893
      %v4380 = vmul.f32 %v4375, %v893
      %v4381 = vmul.f32 %v4378, %v893
      %v4382 = vadd.f32 %v4379, 1e-05
      %v4383 = vadd.f32 %v4380, 1e-05
      %v4384 = vadd.f32 %v4381, 1e-05
      %v4385 = vrsqrt.pop %v4382
      %v4386 = vmul.f32 %v4385, %v4382
      %v4387 = vmul.f32 %v4386, %v4385
      %v4388 = vmul.f32 0.5, %v4387
      %v4389 = vsub.f32 1.5, %v4388
      %v4390 = vmul.f32 %v4385, %v4389
      %vm4391 = vweird.f32 %v4382
      %vm4392 = vweird.f32 %v4385
      %vm4393 = vmor %vm4391, %vm4392
      %v4394 = vsel %vm4393, %v4385, %v4390
      %v4395 = vrsqrt.pop %v4383
      %v4396 = vmul.f32 %v4395, %v4383
      %v4397 = vmul.f32 %v4396, %v4395
      %v4398 = vmul.f32 0.5, %v4397
      %v4399 = vsub.f32 1.5, %v4398
      %v4400 = vmul.f32 %v4395, %v4399
      %vm4401 = vweird.f32 %v4383
      %vm4402 = vweird.f32 %v4395
      %vm4403 = vmor %vm4401, %vm4402
      %v4404 = vsel %vm4403, %v4395, %v4400
      %v4405 = vrsqrt.pop %v4384
      %v4406 = vmul.f32 %v4405, %v4384
      %v4407 = vmul.f32 %v4406, %v4405
      %v4408 = vmul.f32 0.5, %v4407
      %v4409 = vsub.f32 1.5, %v4408
      %v4410 = vmul.f32 %v4405, %v4409
      %vm4411 = vweird.f32 %v4384
      %vm4412 = vweird.f32 %v4405
      %vm4413 = vmor %vm4411, %vm4412
      %v4414 = vsel %vm4413, %v4405, %v4410
      %v4415 = vmul.f32 %v4364, %v4394
      %v4416 = vmul.f32 %v4365, %v4404
      %v4417 = vmul.f32 %v4366, %v4414
      %v4419 = vperm.slane %v4350, 0
      %v4421 = vmul.f32 %v4415, %v4419
      %v4422 = vmul.f32 %v4416, %v4419
      %v4423 = vmul.f32 %v4417, %v4419
      %v4425 = vperm.slane %v4351, 0
      %v4427 = vadd.f32 %v4421, %v4425
      %v4428 = vadd.f32 %v4422, %v4425
      %v4429 = vadd.f32 %v4423, %v4425
      %v4430 = vpack.c.bf16 %v4428, %v4427
      %v4431 = vpack.c.bf16 %v4429, %v4429
      %v4432 = vld [vmem:[%s22] sm:$0xf]
      %v4433 = vld [vmem:[%s22 + $0x4] sm:$0xf]
      %v4434 = vld [vmem:[%s22 + $0x8] sm:$0xf]
      %v4435 = vld [vmem:[%s22 + $0xc] sm:$0xf]
      %v4436 = vld [vmem:[%s23] sm:$0x1]
      %v4438 = vperm.slane %v4436, 0
      %v4444 = vunpack.c.l.b16 %v4432
      %v4445 = vunpack.c.l.b16 %v4433
      %v4446 = vunpack.c.l.b16 %v4434
      %v4447 = vunpack.c.l.b16 %v4435
      %v4448 = vpack.c.b16 %v4445, %v4444
      %v4449 = vpack.c.b16 %v4447, %v4446
      %v4453 = vsel %vm877, %v4430, 0
      %v4456 = vsel %vm877, %v4431, 0
      %4458 = vmatpush.bf16.msra.mxu0 0
      %4459 = vmatpush.bf16.msra.mxu0 0
      %4460 = vmatpush.bf16.msra.mxu0 0
      %4461 = vmatpush.bf16.msra.mxu0 0
      %4462 = vmatpush.bf16.msra.mxu0 0
      %4463 = vmatpush.bf16.msra.mxu0 0
      %4464 = vmatpush.bf16.msra.mxu0 %v4449
      %4465 = vmatpush.bf16.msra.mxu0 %v4448
      %4466 = vmatmul.bf16.gmra.mxu0 %v4453
      %v4467 = vpop.f32.mrf.mxu0
      %v4468 = vadd.f32 %v4438, %v4467
      %v4469 = vpop.f32.mrf.mxu0
      %v4470 = vadd.f32 %v4438, %v4469
      %4471 = vmatmul.bf16.gmra.mxu0 %v4456
      %v4472 = vpop.f32.mrf.mxu0
      %v4473 = vadd.f32 %v4438, %v4472
      %v4474 = vpop.f32.mrf.mxu0
      %4475 = vdwg.mxu0
      %v4476 = vmul.f32 %v4468, %v4468
      %v4477 = vmul.f32 %v4470, %v4470
      %v4478 = vmul.f32 %v4473, %v4473
      %v4479 = vmul.f32 %v4468, %v4476
      %v4480 = vmul.f32 %v4470, %v4477
      %v4481 = vmul.f32 %v4473, %v4478
      %v4482 = vmul.f32 %v4479, 0.044715
      %v4483 = vmul.f32 %v4480, 0.044715
      %v4484 = vmul.f32 %v4481, 0.044715
      %v4485 = vadd.f32 %v4468, %v4482
      %v4486 = vadd.f32 %v4470, %v4483
      %v4487 = vadd.f32 %v4473, %v4484
      %v4488 = vmul.f32 %v4485, 0.7978846
      %v4489 = vmul.f32 %v4486, 0.7978846
      %v4490 = vmul.f32 %v4487, 0.7978846
      %v4491 = vtanh.pop %v4488
      %v4492 = vtanh.pop %v4489
      %v4493 = vtanh.pop %v4490
      %v4494 = vadd.f32 %v4491, 1.0
      %v4495 = vadd.f32 %v4492, 1.0
      %v4496 = vadd.f32 %v4493, 1.0
      %v4497 = vmul.f32 %v4494, 0.5
      %v4498 = vmul.f32 %v4495, 0.5
      %v4499 = vmul.f32 %v4496, 0.5
      %v4500 = vmul.f32 %v4468, %v4497
      %v4501 = vmul.f32 %v4470, %v4498
      %v4502 = vmul.f32 %v4473, %v4499
      %v4503 = vld [vmem:[%s24] sm:$0x1]
      %v4504 = vld [vmem:[%s25] sm:$0x1]
      %v4505 = vsel %vm877, %v4500, 0.0
      %4506 = vadd.xlane.f32.xlu0 %v4505
      %v4507 = vpop.xlane.xlu0 %4506
      %v4508 = vsel %vm877, %v4501, 0.0
      %4509 = vadd.xlane.f32.xlu0 %v4508
      %v4510 = vpop.xlane.xlu0 %4509
      %v4511 = vsel %vm877, %v4502, 0.0
      %4512 = vadd.xlane.f32.xlu0 %v4511
      %v4513 = vpop.xlane.xlu0 %4512
      %v4514 = vmul.f32 %v4507, %v893
      %v4515 = vmul.f32 %v4510, %v893
      %v4516 = vmul.f32 %v4513, %v893
      %v4517 = vsub.f32 %v4500, %v4514
      %v4518 = vsub.f32 %v4501, %v4515
      %v4519 = vsub.f32 %v4502, %v4516
      %v4520 = vmul.f32 %v4517, %v4517
      %v4521 = vmul.f32 %v4518, %v4518
      %v4522 = vmul.f32 %v4519, %v4519
      %v4523 = vsel %vm877, %v4520, 0.0
      %4524 = vadd.xlane.f32.xlu0 %v4523
      %v4525 = vpop.xlane.xlu0 %4524
      %v4526 = vsel %vm877, %v4521, 0.0
      %4527 = vadd.xlane.f32.xlu0 %v4526
      %v4528 = vpop.xlane.xlu0 %4527
      %v4529 = vsel %vm877, %v4522, 0.0
      %4530 = vadd.xlane.f32.xlu0 %v4529
      %v4531 = vpop.xlane.xlu0 %4530
      %v4532 = vmul.f32 %v4525, %v893
      %v4533 = vmul.f32 %v4528, %v893
      %v4534 = vmul.f32 %v4531, %v893
      %v4535 = vadd.f32 %v4532, 1e-05
      %v4536 = vadd.f32 %v4533, 1e-05
      %v4537 = vadd.f32 %v4534, 1e-05
      %v4538 = vrsqrt.pop %v4535
      %v4539 = vmul.f32 %v4538, %v4535
      %v4540 = vmul.f32 %v4539, %v4538
      %v4541 = vmul.f32 0.5, %v4540
      %v4542 = vsub.f32 1.5, %v4541
      %v4543 = vmul.f32 %v4538, %v4542
      %vm4544 = vweird.f32 %v4535
      %vm4545 = vweird.f32 %v4538
      %vm4546 = vmor %vm4544, %vm4545
      %v4547 = vsel %vm4546, %v4538, %v4543
      %v4548 = vrsqrt.pop %v4536
      %v4549 = vmul.f32 %v4548, %v4536
      %v4550 = vmul.f32 %v4549, %v4548
      %v4551 = vmul.f32 0.5, %v4550
      %v4552 = vsub.f32 1.5, %v4551
      %v4553 = vmul.f32 %v4548, %v4552
      %vm4554 = vweird.f32 %v4536
      %vm4555 = vweird.f32 %v4548
      %vm4556 = vmor %vm4554, %vm4555
      %v4557 = vsel %vm4556, %v4548, %v4553
      %v4558 = vrsqrt.pop %v4537
      %v4559 = vmul.f32 %v4558, %v4537
      %v4560 = vmul.f32 %v4559, %v4558
      %v4561 = vmul.f32 0.5, %v4560
      %v4562 = vsub.f32 1.5, %v4561
      %v4563 = vmul.f32 %v4558, %v4562
      %vm4564 = vweird.f32 %v4537
      %vm4565 = vweird.f32 %v4558
      %vm4566 = vmor %vm4564, %vm4565
      %v4567 = vsel %vm4566, %v4558, %v4563
      %v4568 = vmul.f32 %v4517, %v4547
      %v4569 = vmul.f32 %v4518, %v4557
      %v4570 = vmul.f32 %v4519, %v4567
      %v4572 = vperm.slane %v4503, 0
      %v4574 = vmul.f32 %v4568, %v4572
      %v4575 = vmul.f32 %v4569, %v4572
      %v4576 = vmul.f32 %v4570, %v4572
      %v4578 = vperm.slane %v4504, 0
      %v4580 = vadd.f32 %v4574, %v4578
      %v4581 = vadd.f32 %v4575, %v4578
      %v4582 = vadd.f32 %v4576, %v4578
      %v4583 = vpack.c.bf16 %v4581, %v4580
      %v4584 = vpack.c.bf16 %v4582, %v4582
      %v4585 = vld [vmem:[%s26] sm:$0xf]
      %v4586 = vld [vmem:[%s26 + $0x4] sm:$0xf]
      %v4587 = vld [vmem:[%s26 + $0x8] sm:$0xf]
      %v4588 = vld [vmem:[%s26 + $0xc] sm:$0xf]
      %v4589 = vld [vmem:[%s27] sm:$0x1]
      %v4591 = vperm.slane %v4589, 0
      %v4597 = vunpack.c.l.b16 %v4585
      %v4598 = vunpack.c.l.b16 %v4586
      %v4599 = vunpack.c.l.b16 %v4587
      %v4600 = vunpack.c.l.b16 %v4588
      %v4601 = vpack.c.b16 %v4598, %v4597
      %v4602 = vpack.c.b16 %v4600, %v4599
      %v4606 = vsel %vm877, %v4583, 0
      %v4609 = vsel %vm877, %v4584, 0
      %4611 = vmatpush.bf16.msra.mxu0 0
      %4612 = vmatpush.bf16.msra.mxu0 0
      %4613 = vmatpush.bf16.msra.mxu0 0
      %4614 = vmatpush.bf16.msra.mxu0 0
      %4615 = vmatpush.bf16.msra.mxu0 0
      %4616 = vmatpush.bf16.msra.mxu0 0
      %4617 = vmatpush.bf16.msra.mxu0 %v4602
      %4618 = vmatpush.bf16.msra.mxu0 %v4601
      %4619 = vmatmul.bf16.gmra.mxu0 %v4606
      %v4620 = vpop.f32.mrf.mxu0
      %v4621 = vadd.f32 %v4591, %v4620
      %v4622 = vpop.f32.mrf.mxu0
      %v4623 = vadd.f32 %v4591, %v4622
      %4624 = vmatmul.bf16.gmra.mxu0 %v4609
      %v4625 = vpop.f32.mrf.mxu0
      %v4626 = vadd.f32 %v4591, %v4625
      %v4627 = vpop.f32.mrf.mxu0
      %4628 = vdwg.mxu0
      %4629 = vst [vmem:[%s866] sm:$0xff] %v4621
      %4630 = vst [vmem:[%s866 + $0x8] sm:$0xff] %v4623
      %4631 = vst [vmem:[%s866 + $0x10] sm:$0xff] %v4626
      %s4632 = smul.u32 3, %s39
      %p4633 = scmp.lt.s32.totalorder %s4632, 5
      %s4634 = scalar_select %p4633, %s4632, 5
      %s4635 = smul.addr %s4634, 8
      %s4636 = scalar_lea.vmem %s28, %s4635
      // Predicated region
      $region133: #{simplm_forward.1} parent=131 // pred_check
        %p4637 = pneg %p655
      $region134: #{simplm_forward.1} parent=131 // pred_check_branch
        %4639 = sbr.rel (%p4637) target = $region136
      $region135: #{simplm_forward.1} parent=131 // pred_region
        %s4640 = smul.u32 3, %s39
      $region136: #{simplm_forward.1} parent=131 // pred_fallthru
        _
    $region132: #{simplm_forward.1} parent=5 // pred_fallthru
      _
    %p4641 = scmp.le.s32.totalorder 2, %s34
    // Predicated region
    $region137: #{simplm_forward.1} parent=5 // pred_check
      %p4642 = pneg %p4641
    $region138: #{simplm_forward.1} parent=5 // pred_check_branch
      %4644 = sbr.rel (%p4642) target = $region140
    $region139: #{simplm_forward.1} parent=5 // pred_region
      %s4645 = ssub.s32 %s34, 2
      // Predicated region
      $region141: #{simplm_forward.1} parent=139 // pred_check
        %p4646 = pneg %p661
      $region142: #{simplm_forward.1} parent=139 // pred_check_branch
        %4648 = sbr.rel (%p4646) target = $region144
      $region143: #{simplm_forward.1} parent=139 // pred_region
        %s4649 = smul.u32 3, %s40
        %p4650 = scmp.lt.s32.totalorder %s4649, 5
        %s4651 = scalar_select %p4650, %s4649, 5
        %s4652 = smul.addr %s4651, 8
        %s4653 = scalar_lea.vmem %s28, %s4652
      $region144: #{simplm_forward.1} parent=139 // pred_fallthru
        _
    $region140: #{simplm_forward.1} parent=5 // pred_fallthru
      _
  $region6: #{simplm_forward.1} parent=0 // loop_footer
    %s38 = sadd.s32 1, %s34
  $region7: #{simplm_forward.1} parent=0 // loop_footer_branch
    %33 = sbr.rel target = $region3
  $region8: #{simplm_forward.1} parent=0 // loop_exit
    _

</llo_original>
